<compile_context>
chip_gen: v7x
topology: tpu7x:2x2x1
jax: 0.10.0
libtpu: 0.0.40
codegen_flags: <defaults>
</compile_context>

<pallas_src>
import functools

import jax
import jax.numpy as jnp
from jax.experimental import pallas as pl
from jax.experimental.pallas import tpu as pltpu

BN_EPS = 1e-5
LANES = 128


def _round_up(x, m):
    return (x + m - 1) // m * m


# ------------------------------ Pallas kernel -------------------------------

def _basic_block_kernel(*refs, n, ho, wo, cin_p, cout_p, stride, has_ds):
    if has_ds:
        (xph_ref, w1_ref, w2_ref, wd_ref,
         g1_ref, b1_ref, g2_ref, b2_ref, gd_ref, bd_ref,
         o_ref, y1p_ref, im1_ref, im2_ref) = refs
    else:
        (xph_ref, w1_ref, w2_ref,
         g1_ref, b1_ref, g2_ref, b2_ref,
         o_ref, y1p_ref, im1_ref, im2_ref) = refs

    m = n * ho * wo
    s = stride
    inv_m = 1.0 / m

    def in_tap(kh, kw):
        # Static unit-stride slice of the phase-decomposed, spatially padded bf16
        # input: selects x_pad[kh + s*i, kw + s*j, :] for i<ho, j<wo -> (m, cin_p).
        base = ((kh % s) * s + (kw % s)) * n
        oh, ow = kh // s, kw // s
        slab = xph_ref[base:base + n, oh:oh + ho, ow:ow + wo, :]
        return slab.reshape(m, cin_p)

    def batch_stats(acc):
        # Single-pass training-mode BN stats over rows == over (N, H, W).
        mean = jnp.sum(acc, axis=0, keepdims=True) * inv_m
        msq = jnp.sum(acc * acc, axis=0, keepdims=True) * inv_m
        var = jnp.maximum(msq - mean * mean, 0.0)     # biased var, clamp cancellation
        return mean, var

    # ---- conv1: pack 9 taps into bf16 im2col scratch, one big-K MXU matmul ----
    for k in range(9):
        kh, kw = divmod(k, 3)
        im1_ref[:, k * cin_p:(k + 1) * cin_p] = in_tap(kh, kw)
    acc1 = jnp.dot(im1_ref[...], w1_ref[...], preferred_element_type=jnp.float32)

    # ---- bn1 (folded scale/shift) + relu ----
    mean1, var1 = batch_stats(acc1)
    scale1 = g1_ref[...] * jax.lax.rsqrt(var1 + BN_EPS)
    shift1 = b1_ref[...] - mean1 * scale1
    y1 = jnp.maximum(acc1 * scale1 + shift1, 0.0)

    # ---- stage y1 (bf16) into zero-halo VMEM scratch; only the halo is zeroed ----
    y1p_ref[:, 0:1, :, :] = jnp.zeros((n, 1, wo + 2, cout_p), y1p_ref.dtype)
    y1p_ref[:, ho + 1:ho + 2, :, :] = jnp.zeros((n, 1, wo + 2, cout_p), y1p_ref.dtype)
    y1p_ref[:, :, 0:1, :] = jnp.zeros((n, ho + 2, 1, cout_p), y1p_ref.dtype)
    y1p_ref[:, :, wo + 1:wo + 2, :] = jnp.zeros((n, ho + 2, 1, cout_p), y1p_ref.dtype)
    y1p_ref[:, 1:ho + 1, 1:wo + 1, :] = (
        y1.reshape(n, ho, wo, cout_p).astype(y1p_ref.dtype))

    # ---- conv2: pack 9 taps from VMEM-resident y1, one big-K MXU matmul ----
    for k in range(9):
        kh, kw = divmod(k, 3)
        im2_ref[:, k * cout_p:(k + 1) * cout_p] = (
            y1p_ref[:, kh:kh + ho, kw:kw + wo, :].reshape(m, cout_p))
    acc2 = jnp.dot(im2_ref[...], w2_ref[...], preferred_element_type=jnp.float32)

    # ---- bn2 (no relu yet) ----
    mean2, var2 = batch_stats(acc2)
    scale2 = g2_ref[...] * jax.lax.rsqrt(var2 + BN_EPS)
    shift2 = b2_ref[...] - mean2 * scale2
    y2 = acc2 * scale2 + shift2

    # ---- shortcut: 1x1 stride-s conv + bn (downsample) or identity ----
    center = in_tap(1, 1)   # bf16: exactly the stride-s conv centers / the input
    if has_ds:
        r = jnp.dot(center, wd_ref[...], preferred_element_type=jnp.float32)
        meand, vard = batch_stats(r)
        scaled = gd_ref[...] * jax.lax.rsqrt(vard + BN_EPS)
        shiftd = bd_ref[...] - meand * scaled
        res = r * scaled + shiftd
    else:
        res = center.astype(jnp.float32)   # identity shortcut (cin_p == cout_p)

    o_ref[...] = jnp.maximum(res + y2, 0.0).reshape(n, ho, wo, cout_p)


# ------------------------------- glue (JAX) ---------------------------------

def _prep_conv3x3(w_oihw, ci_p, co_p):
    co, ci, kh, kw = w_oihw.shape
    w = jnp.transpose(w_oihw, (2, 3, 1, 0))                       # (3,3,ci,co)
    w = jnp.pad(w, ((0, 0), (0, 0), (0, ci_p - ci), (0, co_p - co)))
    # Row order matches the im2col column order: tap k = kh*3+kw occupies rows
    # [k*ci_p, (k+1)*ci_p).
    return w.reshape(kh * kw * ci_p, co_p).astype(jnp.bfloat16)


def _prep_conv1x1(w_oihw, ci_p, co_p):
    co, ci = w_oihw.shape[0], w_oihw.shape[1]
    w = w_oihw[:, :, 0, 0].T                                      # (ci,co)
    w = jnp.pad(w, ((0, ci_p - ci), (0, co_p - co)))
    return w.astype(jnp.bfloat16)


def _prep_bn(v, co_p):
    return jnp.pad(v, (0, co_p - v.shape[0])).reshape(1, co_p).astype(jnp.float32)


def prepare_params(params, c_in, c_out, has_ds):
    """One-time weight/param prep: layout transpose, lane padding, bf16 cast."""
    ci_p, co_p = _round_up(c_in, LANES), _round_up(c_out, LANES)
    prepped = dict(
        w1=_prep_conv3x3(params["conv1_w"], ci_p, co_p),          # (9*ci_p, co_p)
        w2=_prep_conv3x3(params["conv2_w"], co_p, co_p),          # (9*co_p, co_p)
        g1=_prep_bn(params["bn1_g"], co_p), b1=_prep_bn(params["bn1_b"], co_p),
        g2=_prep_bn(params["bn2_g"], co_p), b2=_prep_bn(params["bn2_b"], co_p),
    )
    if has_ds:
        prepped.update(
            wd=_prep_conv1x1(params["ds_w"], ci_p, co_p),
            gd=_prep_bn(params["bnd_g"], co_p), bd=_prep_bn(params["bnd_b"], co_p),
        )
    return prepped


def _phase_split(xp, s):
    # (n, Hp, Wp, C) -> (s*s*n, Hp/s, Wp/s, C); same byte count, no blow-up.
    # Phase (ph, pw) = rows/cols congruent to ph/pw mod s, occupying block (ph*s+pw).
    n, hp, wp, c = xp.shape
    assert hp % s == 0 and wp % s == 0, "padded spatial dims must divide the stride"
    x6 = xp.reshape(n, hp // s, s, wp // s, s, c)
    x6 = jnp.transpose(x6, (2, 4, 0, 1, 3, 5))
    return x6.reshape(s * s * n, hp // s, wp // s, c)


def basic_block_forward_nhwc(prepped, x_nhwc, c_in, c_out, is_downsample):
    has_ds = is_downsample or (c_in != c_out)
    s = 2 if is_downsample else 1
    n, h, w, _ = x_nhwc.shape
    ho, wo = (h - 1) // s + 1, (w - 1) // s + 1     # 3x3, pad=1
    ci_p = prepped["w1"].shape[0] // 9
    co_p = prepped["w1"].shape[1]
    m = n * ho * wo

    # Single wrapper HBM pass: bf16 cast + channel lane-pad + 1-px spatial pad.
    xp = jnp.pad(x_nhwc.astype(jnp.bfloat16),
                 ((0, 0), (1, 1), (1, 1), (0, ci_p - c_in)))
    # Phase-split only for stride-2 (pure data movement, same byte count); for
    # stride-1 the padded tensor is used directly (no extra pass).
    xph = _phase_split(xp, s) if s > 1 else xp

    inputs = [xph, prepped["w1"], prepped["w2"]]
    if has_ds:
        inputs.append(prepped["wd"])
    inputs += [prepped["g1"], prepped["b1"], prepped["g2"], prepped["b2"]]
    if has_ds:
        inputs += [prepped["gd"], prepped["bd"]]

    kernel = functools.partial(_basic_block_kernel, n=n, ho=ho, wo=wo,
                               cin_p=ci_p, cout_p=co_p, stride=s, has_ds=has_ds)

    scratch_shapes = [
        pltpu.VMEM((n, ho + 2, wo + 2, co_p), jnp.bfloat16),   # padded conv1 output
        pltpu.VMEM((m, 9 * ci_p), jnp.bfloat16),               # conv1 im2col
        pltpu.VMEM((m, 9 * co_p), jnp.bfloat16),               # conv2 im2col
    ]

    # Explicit VMEM budget: refs + in-kernel f32 temps, 2x headroom, raised to at
    # least the 32 MiB scoped default and capped below v7x's 64 MiB physical.
    in_bytes = sum(int(a.size) * a.dtype.itemsize for a in inputs)
    out_bytes = n * ho * wo * co_p * 4
    scratch_bytes = (n * (ho + 2) * (wo + 2) * co_p
                     + m * 9 * ci_p + m * 9 * co_p) * 2
    tmp_bytes = 6 * m * co_p * 4
    est = in_bytes + out_bytes + scratch_bytes + tmp_bytes
    vmem_limit = int(min(max(2 * est + (8 << 20), 32 << 20), 56 << 20))

    out = pl.pallas_call(
        kernel,
        out_shape=jax.ShapeDtypeStruct((n, ho, wo, co_p), jnp.float32),
        in_specs=[pl.BlockSpec(memory_space=pltpu.MemorySpace.VMEM)] * len(inputs),
        out_specs=pl.BlockSpec(memory_space=pltpu.MemorySpace.VMEM),
        scratch_shapes=scratch_shapes,
        compiler_params=pltpu.CompilerParams(vmem_limit_bytes=vmem_limit),
    )(*inputs)
    return out[..., :c_out]


def basic_block_forward(prepped, x_nchw, c_in, c_out, is_downsample):
    # Thin NCHW (PyTorch) adapter; the core path stays NHWC.
    x = jnp.transpose(x_nchw, (0, 2, 3, 1))
    y = basic_block_forward_nhwc(prepped, x, c_in, c_out, is_downsample)
    return jnp.transpose(y, (0, 3, 1, 2))


def init_params(key, c_in, c_out, is_downsample):
    k1, k2, k3 = jax.random.split(key, 3)
    params = dict(
        conv1_w=jax.random.normal(k1, (c_out, c_in, 3, 3), jnp.float32) * 0.1,
        bn1_g=jnp.ones((c_out,), jnp.float32), bn1_b=jnp.zeros((c_out,), jnp.float32),
        conv2_w=jax.random.normal(k2, (c_out, c_out, 3, 3), jnp.float32) * 0.1,
        bn2_g=jnp.ones((c_out,), jnp.float32), bn2_b=jnp.zeros((c_out,), jnp.float32),
    )
    has_ds = is_downsample or (c_in != c_out)
    if has_ds:
        params.update(
            ds_w=jax.random.normal(k3, (c_out, c_in, 1, 1), jnp.float32) * 0.1,
            bnd_g=jnp.ones((c_out,), jnp.float32), bnd_b=jnp.zeros((c_out,), jnp.float32),
        )
    return params, has_ds


# --------------------------- pure-JAX reference -----------------------------
# Mirrors the kernel's numerics: bf16 conv operands, f32 accumulation, f32 BN,
# bf16-precision identity residual (activations are stored/consumed as bf16).

def reference_forward(params, x_nchw, c_in, c_out, is_downsample):
    def conv(x, w, stride, pad):
        return jax.lax.conv_general_dilated(
            x.astype(jnp.bfloat16), w.astype(jnp.bfloat16),
            (stride, stride), [(pad, pad), (pad, pad)],
            dimension_numbers=("NCHW", "OIHW", "NCHW"),
            preferred_element_type=jnp.float32)

    def bn(x, g, b):
        mean = jnp.mean(x, axis=(0, 2, 3), keepdims=True)
        var = jnp.mean(jnp.square(x - mean), axis=(0, 2, 3), keepdims=True)
        return (x - mean) * jax.lax.rsqrt(var + BN_EPS) * g.reshape(1, -1, 1, 1) \
            + b.reshape(1, -1, 1, 1)

    has_ds = is_downsample or (c_in != c_out)
    stride = 2 if is_downsample else 1
    y = conv(x_nchw, params["conv1_w"], stride, 1)
    y = jnp.maximum(bn(y, params["bn1_g"], params["bn1_b"]), 0.0)
    y = conv(y, params["conv2_w"], 1, 1)
    y = bn(y, params["bn2_g"], params["bn2_b"])
    if has_ds:
        xr = bn(conv(x_nchw, params["ds_w"], stride, 0),
                params["bnd_g"], params["bnd_b"])
    else:
        xr = x_nchw.astype(jnp.bfloat16).astype(jnp.float32)
    return jnp.maximum(xr + y, 0.0)


if __name__ == "__main__":
    key = jax.random.PRNGKey(0)
    kx1, kp1, kx2, kp2 = jax.random.split(key, 4)

    # Case 1: downsample block (stride 2, 1x1-conv + BN shortcut).
    c_in, c_out, is_ds = 4, 8, True
    x = jax.random.normal(kx1, (2, c_in, 16, 16), jnp.float32)
    params, has_ds = init_params(kp1, c_in, c_out, is_ds)
    prepped = prepare_params(params, c_in, c_out, has_ds)
    out = jax.block_until_ready(basic_block_forward(prepped, x, c_in, c_out, is_ds))
    ref = reference_forward(params, x, c_in, c_out, is_ds)
    assert out.shape == ref.shape == (2, c_out, 8, 8), out.shape
    assert jnp.allclose(out, ref, atol=5e-3, rtol=5e-3), \
        float(jnp.max(jnp.abs(out - ref)))

    # Case 2: identity-shortcut block (stride 1, c_in == c_out).
    c_in2, c_out2, is_ds2 = 8, 8, False
    x2 = jax.random.normal(kx2, (2, c_in2, 16, 16), jnp.float32)
    params2, has_ds2 = init_params(kp2, c_in2, c_out2, is_ds2)
    prepped2 = prepare_params(params2, c_in2, c_out2, has_ds2)
    out2 = jax.block_until_ready(
        basic_block_forward(prepped2, x2, c_in2, c_out2, is_ds2))
    ref2 = reference_forward(params2, x2, c_in2, c_out2, is_ds2)
    assert out2.shape == ref2.shape == (2, c_out2, 16, 16), out2.shape
    assert jnp.allclose(out2, ref2, atol=5e-3, rtol=5e-3), \
        float(jnp.max(jnp.abs(out2 - ref2)))

    print("KERNEL_OK")
</pallas_src>

<mosaic_0001>
module attributes {stable_mosaic.version = 11 : i64} {
  func.func @_basic_block_kernel(%arg0: memref<8x9x9x128xbf16, #tpu.memory_space<vmem>>, %arg1: memref<1152x128xbf16, #tpu.memory_space<vmem>>, %arg2: memref<1152x128xbf16, #tpu.memory_space<vmem>>, %arg3: memref<128x128xbf16, #tpu.memory_space<vmem>>, %arg4: memref<1x128xf32, #tpu.memory_space<vmem>>, %arg5: memref<1x128xf32, #tpu.memory_space<vmem>>, %arg6: memref<1x128xf32, #tpu.memory_space<vmem>>, %arg7: memref<1x128xf32, #tpu.memory_space<vmem>>, %arg8: memref<1x128xf32, #tpu.memory_space<vmem>>, %arg9: memref<1x128xf32, #tpu.memory_space<vmem>>, %arg10: memref<2x8x8x128xf32, #tpu.memory_space<vmem>>, %arg11: memref<2x10x10x128xbf16, #tpu.memory_space<vmem>>, %arg12: memref<128x1152xbf16, #tpu.memory_space<vmem>>, %arg13: memref<128x1152xbf16, #tpu.memory_space<vmem>>) attributes {dimension_semantics = [], scalar_prefetch = 0 : i64, scratch_operands = 3 : i64, tpu.core_type = #tpu.core_type<tc>} {
    %c0 = arith.constant 0 : index
    %c0_0 = arith.constant 0 : index
    %c0_1 = arith.constant 0 : index
    %c0_2 = arith.constant 0 : index
    %0 = vector.load %arg0[%c0, %c0_0, %c0_1, %c0_2] : memref<8x9x9x128xbf16, #tpu.memory_space<vmem>>, vector<2x8x8x128xbf16>
    %1 = vector.shape_cast %0 : vector<2x8x8x128xbf16> to vector<128x128xbf16>
    %c0_3 = arith.constant 0 : index
    %c0_4 = arith.constant 0 : index
    %2 = vector.load %arg12[%c0_3, %c0_4] : memref<128x1152xbf16, #tpu.memory_space<vmem>>, vector<128x128xbf16>
    tpu.vector_store %arg12[%c0_3, %c0_4], %1 {strides = array<i32>} : memref<128x1152xbf16, #tpu.memory_space<vmem>>, vector<128x128xbf16>,
    %c2 = arith.constant 2 : index
    %c0_5 = arith.constant 0 : index
    %c0_6 = arith.constant 0 : index
    %c0_7 = arith.constant 0 : index
    %3 = vector.load %arg0[%c2, %c0_5, %c0_6, %c0_7] : memref<8x9x9x128xbf16, #tpu.memory_space<vmem>>, vector<2x8x8x128xbf16>
    %4 = vector.shape_cast %3 : vector<2x8x8x128xbf16> to vector<128x128xbf16>
    %c0_8 = arith.constant 0 : index
    %c128 = arith.constant 128 : index
    %5 = vector.load %arg12[%c0_8, %c128] : memref<128x1152xbf16, #tpu.memory_space<vmem>>, vector<128x128xbf16>
    tpu.vector_store %arg12[%c0_8, %c128], %4 {strides = array<i32>} : memref<128x1152xbf16, #tpu.memory_space<vmem>>, vector<128x128xbf16>,
    %c0_9 = arith.constant 0 : index
    %c0_10 = arith.constant 0 : index
    %c1 = arith.constant 1 : index
    %c0_11 = arith.constant 0 : index
    %6 = vector.load %arg0[%c0_9, %c0_10, %c1, %c0_11] : memref<8x9x9x128xbf16, #tpu.memory_space<vmem>>, vector<2x8x8x128xbf16>
    %7 = vector.shape_cast %6 : vector<2x8x8x128xbf16> to vector<128x128xbf16>
    %c0_12 = arith.constant 0 : index
    %c256 = arith.constant 256 : index
    %8 = vector.load %arg12[%c0_12, %c256] : memref<128x1152xbf16, #tpu.memory_space<vmem>>, vector<128x128xbf16>
    tpu.vector_store %arg12[%c0_12, %c256], %7 {strides = array<i32>} : memref<128x1152xbf16, #tpu.memory_space<vmem>>, vector<128x128xbf16>,
    %c4 = arith.constant 4 : index
    %c0_13 = arith.constant 0 : index
    %c0_14 = arith.constant 0 : index
    %c0_15 = arith.constant 0 : index
    %9 = vector.load %arg0[%c4, %c0_13, %c0_14, %c0_15] : memref<8x9x9x128xbf16, #tpu.memory_space<vmem>>, vector<2x8x8x128xbf16>
    %10 = vector.shape_cast %9 : vector<2x8x8x128xbf16> to vector<128x128xbf16>
    %c0_16 = arith.constant 0 : index
    %c384 = arith.constant 384 : index
    %11 = vector.load %arg12[%c0_16, %c384] : memref<128x1152xbf16, #tpu.memory_space<vmem>>, vector<128x128xbf16>
    tpu.vector_store %arg12[%c0_16, %c384], %10 {strides = array<i32>} : memref<128x1152xbf16, #tpu.memory_space<vmem>>, vector<128x128xbf16>,
    %c6 = arith.constant 6 : index
    %c0_17 = arith.constant 0 : index
    %c0_18 = arith.constant 0 : index
    %c0_19 = arith.constant 0 : index
    %12 = vector.load %arg0[%c6, %c0_17, %c0_18, %c0_19] : memref<8x9x9x128xbf16, #tpu.memory_space<vmem>>, vector<2x8x8x128xbf16>
    %13 = vector.shape_cast %12 : vector<2x8x8x128xbf16> to vector<128x128xbf16>
    %c0_20 = arith.constant 0 : index
    %c512 = arith.constant 512 : index
    %14 = vector.load %arg12[%c0_20, %c512] : memref<128x1152xbf16, #tpu.memory_space<vmem>>, vector<128x128xbf16>
    tpu.vector_store %arg12[%c0_20, %c512], %13 {strides = array<i32>} : memref<128x1152xbf16, #tpu.memory_space<vmem>>, vector<128x128xbf16>,
    %c4_21 = arith.constant 4 : index
    %c0_22 = arith.constant 0 : index
    %c1_23 = arith.constant 1 : index
    %c0_24 = arith.constant 0 : index
    %15 = vector.load %arg0[%c4_21, %c0_22, %c1_23, %c0_24] : memref<8x9x9x128xbf16, #tpu.memory_space<vmem>>, vector<2x8x8x128xbf16>
    %16 = vector.shape_cast %15 : vector<2x8x8x128xbf16> to vector<128x128xbf16>
    %c0_25 = arith.constant 0 : index
    %c640 = arith.constant 640 : index
    %17 = vector.load %arg12[%c0_25, %c640] : memref<128x1152xbf16, #tpu.memory_space<vmem>>, vector<128x128xbf16>
    tpu.vector_store %arg12[%c0_25, %c640], %16 {strides = array<i32>} : memref<128x1152xbf16, #tpu.memory_space<vmem>>, vector<128x128xbf16>,
    %c0_26 = arith.constant 0 : index
    %c1_27 = arith.constant 1 : index
    %c0_28 = arith.constant 0 : index
    %c0_29 = arith.constant 0 : index
    %18 = vector.load %arg0[%c0_26, %c1_27, %c0_28, %c0_29] : memref<8x9x9x128xbf16, #tpu.memory_space<vmem>>, vector<2x8x8x128xbf16>
    %19 = vector.shape_cast %18 : vector<2x8x8x128xbf16> to vector<128x128xbf16>
    %c0_30 = arith.constant 0 : index
    %c768 = arith.constant 768 : index
    %20 = vector.load %arg12[%c0_30, %c768] : memref<128x1152xbf16, #tpu.memory_space<vmem>>, vector<128x128xbf16>
    tpu.vector_store %arg12[%c0_30, %c768], %19 {strides = array<i32>} : memref<128x1152xbf16, #tpu.memory_space<vmem>>, vector<128x128xbf16>,
    %c2_31 = arith.constant 2 : index
    %c1_32 = arith.constant 1 : index
    %c0_33 = arith.constant 0 : index
    %c0_34 = arith.constant 0 : index
    %21 = vector.load %arg0[%c2_31, %c1_32, %c0_33, %c0_34] : memref<8x9x9x128xbf16, #tpu.memory_space<vmem>>, vector<2x8x8x128xbf16>
    %22 = vector.shape_cast %21 : vector<2x8x8x128xbf16> to vector<128x128xbf16>
    %c0_35 = arith.constant 0 : index
    %c896 = arith.constant 896 : index
    %23 = vector.load %arg12[%c0_35, %c896] : memref<128x1152xbf16, #tpu.memory_space<vmem>>, vector<128x128xbf16>
    tpu.vector_store %arg12[%c0_35, %c896], %22 {strides = array<i32>} : memref<128x1152xbf16, #tpu.memory_space<vmem>>, vector<128x128xbf16>,
    %c0_36 = arith.constant 0 : index
    %c1_37 = arith.constant 1 : index
    %c1_38 = arith.constant 1 : index
    %c0_39 = arith.constant 0 : index
    %24 = vector.load %arg0[%c0_36, %c1_37, %c1_38, %c0_39] : memref<8x9x9x128xbf16, #tpu.memory_space<vmem>>, vector<2x8x8x128xbf16>
    %25 = vector.shape_cast %24 : vector<2x8x8x128xbf16> to vector<128x128xbf16>
    %c0_40 = arith.constant 0 : index
    %c1024 = arith.constant 1024 : index
    %26 = vector.load %arg12[%c0_40, %c1024] : memref<128x1152xbf16, #tpu.memory_space<vmem>>, vector<128x128xbf16>
    tpu.vector_store %arg12[%c0_40, %c1024], %25 {strides = array<i32>} : memref<128x1152xbf16, #tpu.memory_space<vmem>>, vector<128x128xbf16>,
    %c0_41 = arith.constant 0 : index
    %c0_42 = arith.constant 0 : index
    %27 = vector.load %arg12[%c0_41, %c0_42] : memref<128x1152xbf16, #tpu.memory_space<vmem>>, vector<128x1152xbf16>
    %c0_43 = arith.constant 0 : index
    %c0_44 = arith.constant 0 : index
    %28 = vector.load %arg1[%c0_43, %c0_44] : memref<1152x128xbf16, #tpu.memory_space<vmem>>, vector<1152x128xbf16>
    %cst = arith.constant dense<0.000000e+00> : vector<128x128xf32>
    %29 = tpu.matmul %27, %28, %cst {dimension_numbers = #tpu.dot_dimension_numbers<[1], [0], [0], [1], [0, 0, 1, 1], [], []>} : vector<128x1152xbf16>, vector<1152x128xbf16>, vector<128x128xf32> -> vector<128x128xf32>
    %cst_45 = arith.constant dense<0.000000e+00> : vector<128xf32>
    %30 = vector.multi_reduction <add>, %29, %cst_45 [0] : vector<128x128xf32> to vector<128xf32>
    %31 = vector.shape_cast %30 : vector<128xf32> to vector<1x128xf32>
    %cst_46 = arith.constant 7.812500e-03 : f32
    %32 = vector.broadcast %cst_46 : f32 to vector<1x128xf32>
    %33 = arith.mulf %31, %32 : vector<1x128xf32>
    %34 = arith.mulf %29, %29 : vector<128x128xf32>
    %cst_47 = arith.constant dense<0.000000e+00> : vector<128xf32>
    %35 = vector.multi_reduction <add>, %34, %cst_47 [0] : vector<128x128xf32> to vector<128xf32>
    %36 = vector.shape_cast %35 : vector<128xf32> to vector<1x128xf32>
    %cst_48 = arith.constant 7.812500e-03 : f32
    %37 = vector.broadcast %cst_48 : f32 to vector<1x128xf32>
    %38 = arith.mulf %36, %37 : vector<1x128xf32>
    %39 = arith.mulf %33, %33 : vector<1x128xf32>
    %40 = arith.subf %38, %39 : vector<1x128xf32>
    %cst_49 = arith.constant 0.000000e+00 : f32
    %41 = vector.broadcast %cst_49 : f32 to vector<1x128xf32>
    %42 = arith.maximumf %40, %41 : vector<1x128xf32>
    %c0_50 = arith.constant 0 : index
    %c0_51 = arith.constant 0 : index
    %43 = vector.load %arg4[%c0_50, %c0_51] : memref<1x128xf32, #tpu.memory_space<vmem>>, vector<1x128xf32>
    %cst_52 = arith.constant 9.99999974E-6 : f32
    %44 = vector.broadcast %cst_52 : f32 to vector<1x128xf32>
    %45 = arith.addf %42, %44 : vector<1x128xf32>
    %46 = math.rsqrt %45 : vector<1x128xf32>
    %47 = arith.mulf %43, %46 : vector<1x128xf32>
    %c0_53 = arith.constant 0 : index
    %c0_54 = arith.constant 0 : index
    %48 = vector.load %arg5[%c0_53, %c0_54] : memref<1x128xf32, #tpu.memory_space<vmem>>, vector<1x128xf32>
    %49 = arith.mulf %33, %47 : vector<1x128xf32>
    %50 = arith.subf %48, %49 : vector<1x128xf32>
    %51 = vector.broadcast %47 : vector<1x128xf32> to vector<128x128xf32>
    %52 = arith.mulf %29, %51 : vector<128x128xf32>
    %53 = vector.broadcast %50 : vector<1x128xf32> to vector<128x128xf32>
    %54 = arith.addf %52, %53 : vector<128x128xf32>
    %cst_55 = arith.constant 0.000000e+00 : f32
    %55 = vector.broadcast %cst_55 : f32 to vector<128x128xf32>
    %56 = arith.maximumf %54, %55 : vector<128x128xf32>
    %cst_56 = arith.constant 0.000000e+00 : bf16
    %57 = vector.broadcast %cst_56 : bf16 to vector<2x1x10x128xbf16>
    %c0_57 = arith.constant 0 : index
    %c0_58 = arith.constant 0 : index
    %c0_59 = arith.constant 0 : index
    %c0_60 = arith.constant 0 : index
    %58 = vector.load %arg11[%c0_57, %c0_58, %c0_59, %c0_60] : memref<2x10x10x128xbf16, #tpu.memory_space<vmem>>, vector<2x1x10x128xbf16>
    tpu.vector_store %arg11[%c0_57, %c0_58, %c0_59, %c0_60], %57 {strides = array<i32>} : memref<2x10x10x128xbf16, #tpu.memory_space<vmem>>, vector<2x1x10x128xbf16>,
    %cst_61 = arith.constant 0.000000e+00 : bf16
    %59 = vector.broadcast %cst_61 : bf16 to vector<2x1x10x128xbf16>
    %c0_62 = arith.constant 0 : index
    %c9 = arith.constant 9 : index
    %c0_63 = arith.constant 0 : index
    %c0_64 = arith.constant 0 : index
    %60 = vector.load %arg11[%c0_62, %c9, %c0_63, %c0_64] : memref<2x10x10x128xbf16, #tpu.memory_space<vmem>>, vector<2x1x10x128xbf16>
    tpu.vector_store %arg11[%c0_62, %c9, %c0_63, %c0_64], %59 {strides = array<i32>} : memref<2x10x10x128xbf16, #tpu.memory_space<vmem>>, vector<2x1x10x128xbf16>,
    %cst_65 = arith.constant 0.000000e+00 : bf16
    %61 = vector.broadcast %cst_65 : bf16 to vector<2x10x1x128xbf16>
    %c0_66 = arith.constant 0 : index
    %c0_67 = arith.constant 0 : index
    %c0_68 = arith.constant 0 : index
    %c0_69 = arith.constant 0 : index
    %62 = vector.load %arg11[%c0_66, %c0_67, %c0_68, %c0_69] : memref<2x10x10x128xbf16, #tpu.memory_space<vmem>>, vector<2x10x1x128xbf16>
    tpu.vector_store %arg11[%c0_66, %c0_67, %c0_68, %c0_69], %61 {strides = array<i32>} : memref<2x10x10x128xbf16, #tpu.memory_space<vmem>>, vector<2x10x1x128xbf16>,
    %cst_70 = arith.constant 0.000000e+00 : bf16
    %63 = vector.broadcast %cst_70 : bf16 to vector<2x10x1x128xbf16>
    %c0_71 = arith.constant 0 : index
    %c0_72 = arith.constant 0 : index
    %c9_73 = arith.constant 9 : index
    %c0_74 = arith.constant 0 : index
    %64 = vector.load %arg11[%c0_71, %c0_72, %c9_73, %c0_74] : memref<2x10x10x128xbf16, #tpu.memory_space<vmem>>, vector<2x10x1x128xbf16>
    tpu.vector_store %arg11[%c0_71, %c0_72, %c9_73, %c0_74], %63 {strides = array<i32>} : memref<2x10x10x128xbf16, #tpu.memory_space<vmem>>, vector<2x10x1x128xbf16>,
    %65 = vector.shape_cast %56 : vector<128x128xf32> to vector<2x8x8x128xf32>
    %66 = arith.truncf %65 : vector<2x8x8x128xf32> to vector<2x8x8x128xbf16>
    %c0_75 = arith.constant 0 : index
    %c1_76 = arith.constant 1 : index
    %c1_77 = arith.constant 1 : index
    %c0_78 = arith.constant 0 : index
    %67 = vector.load %arg11[%c0_75, %c1_76, %c1_77, %c0_78] : memref<2x10x10x128xbf16, #tpu.memory_space<vmem>>, vector<2x8x8x128xbf16>
    tpu.vector_store %arg11[%c0_75, %c1_76, %c1_77, %c0_78], %66 {strides = array<i32>} : memref<2x10x10x128xbf16, #tpu.memory_space<vmem>>, vector<2x8x8x128xbf16>,
    %c0_79 = arith.constant 0 : index
    %c0_80 = arith.constant 0 : index
    %c0_81 = arith.constant 0 : index
    %c0_82 = arith.constant 0 : index
    %68 = vector.load %arg11[%c0_79, %c0_80, %c0_81, %c0_82] : memref<2x10x10x128xbf16, #tpu.memory_space<vmem>>, vector<2x8x8x128xbf16>
    %69 = vector.shape_cast %68 : vector<2x8x8x128xbf16> to vector<128x128xbf16>
    %c0_83 = arith.constant 0 : index
    %c0_84 = arith.constant 0 : index
    %70 = vector.load %arg13[%c0_83, %c0_84] : memref<128x1152xbf16, #tpu.memory_space<vmem>>, vector<128x128xbf16>
    tpu.vector_store %arg13[%c0_83, %c0_84], %69 {strides = array<i32>} : memref<128x1152xbf16, #tpu.memory_space<vmem>>, vector<128x128xbf16>,
    %c0_85 = arith.constant 0 : index
    %c0_86 = arith.constant 0 : index
    %c1_87 = arith.constant 1 : index
    %c0_88 = arith.constant 0 : index
    %71 = vector.load %arg11[%c0_85, %c0_86, %c1_87, %c0_88] : memref<2x10x10x128xbf16, #tpu.memory_space<vmem>>, vector<2x8x8x128xbf16>
    %72 = vector.shape_cast %71 : vector<2x8x8x128xbf16> to vector<128x128xbf16>
    %c0_89 = arith.constant 0 : index
    %c128_90 = arith.constant 128 : index
    %73 = vector.load %arg13[%c0_89, %c128_90] : memref<128x1152xbf16, #tpu.memory_space<vmem>>, vector<128x128xbf16>
    tpu.vector_store %arg13[%c0_89, %c128_90], %72 {strides = array<i32>} : memref<128x1152xbf16, #tpu.memory_space<vmem>>, vector<128x128xbf16>,
    %c0_91 = arith.constant 0 : index
    %c0_92 = arith.constant 0 : index
    %c2_93 = arith.constant 2 : index
    %c0_94 = arith.constant 0 : index
    %74 = vector.load %arg11[%c0_91, %c0_92, %c2_93, %c0_94] : memref<2x10x10x128xbf16, #tpu.memory_space<vmem>>, vector<2x8x8x128xbf16>
    %75 = vector.shape_cast %74 : vector<2x8x8x128xbf16> to vector<128x128xbf16>
    %c0_95 = arith.constant 0 : index
    %c256_96 = arith.constant 256 : index
    %76 = vector.load %arg13[%c0_95, %c256_96] : memref<128x1152xbf16, #tpu.memory_space<vmem>>, vector<128x128xbf16>
    tpu.vector_store %arg13[%c0_95, %c256_96], %75 {strides = array<i32>} : memref<128x1152xbf16, #tpu.memory_space<vmem>>, vector<128x128xbf16>,
    %c0_97 = arith.constant 0 : index
    %c1_98 = arith.constant 1 : index
    %c0_99 = arith.constant 0 : index
    %c0_100 = arith.constant 0 : index
    %77 = vector.load %arg11[%c0_97, %c1_98, %c0_99, %c0_100] : memref<2x10x10x128xbf16, #tpu.memory_space<vmem>>, vector<2x8x8x128xbf16>
    %78 = vector.shape_cast %77 : vector<2x8x8x128xbf16> to vector<128x128xbf16>
    %c0_101 = arith.constant 0 : index
    %c384_102 = arith.constant 384 : index
    %79 = vector.load %arg13[%c0_101, %c384_102] : memref<128x1152xbf16, #tpu.memory_space<vmem>>, vector<128x128xbf16>
    tpu.vector_store %arg13[%c0_101, %c384_102], %78 {strides = array<i32>} : memref<128x1152xbf16, #tpu.memory_space<vmem>>, vector<128x128xbf16>,
    %c0_103 = arith.constant 0 : index
    %c1_104 = arith.constant 1 : index
    %c1_105 = arith.constant 1 : index
    %c0_106 = arith.constant 0 : index
    %80 = vector.load %arg11[%c0_103, %c1_104, %c1_105, %c0_106] : memref<2x10x10x128xbf16, #tpu.memory_space<vmem>>, vector<2x8x8x128xbf16>
    %81 = vector.shape_cast %80 : vector<2x8x8x128xbf16> to vector<128x128xbf16>
    %c0_107 = arith.constant 0 : index
    %c512_108 = arith.constant 512 : index
    %82 = vector.load %arg13[%c0_107, %c512_108] : memref<128x1152xbf16, #tpu.memory_space<vmem>>, vector<128x128xbf16>
    tpu.vector_store %arg13[%c0_107, %c512_108], %81 {strides = array<i32>} : memref<128x1152xbf16, #tpu.memory_space<vmem>>, vector<128x128xbf16>,
    %c0_109 = arith.constant 0 : index
    %c1_110 = arith.constant 1 : index
    %c2_111 = arith.constant 2 : index
    %c0_112 = arith.constant 0 : index
    %83 = vector.load %arg11[%c0_109, %c1_110, %c2_111, %c0_112] : memref<2x10x10x128xbf16, #tpu.memory_space<vmem>>, vector<2x8x8x128xbf16>
    %84 = vector.shape_cast %83 : vector<2x8x8x128xbf16> to vector<128x128xbf16>
    %c0_113 = arith.constant 0 : index
    %c640_114 = arith.constant 640 : index
    %85 = vector.load %arg13[%c0_113, %c640_114] : memref<128x1152xbf16, #tpu.memory_space<vmem>>, vector<128x128xbf16>
    tpu.vector_store %arg13[%c0_113, %c640_114], %84 {strides = array<i32>} : memref<128x1152xbf16, #tpu.memory_space<vmem>>, vector<128x128xbf16>,
    %c0_115 = arith.constant 0 : index
    %c2_116 = arith.constant 2 : index
    %c0_117 = arith.constant 0 : index
    %c0_118 = arith.constant 0 : index
    %86 = vector.load %arg11[%c0_115, %c2_116, %c0_117, %c0_118] : memref<2x10x10x128xbf16, #tpu.memory_space<vmem>>, vector<2x8x8x128xbf16>
    %87 = vector.shape_cast %86 : vector<2x8x8x128xbf16> to vector<128x128xbf16>
    %c0_119 = arith.constant 0 : index
    %c768_120 = arith.constant 768 : index
    %88 = vector.load %arg13[%c0_119, %c768_120] : memref<128x1152xbf16, #tpu.memory_space<vmem>>, vector<128x128xbf16>
    tpu.vector_store %arg13[%c0_119, %c768_120], %87 {strides = array<i32>} : memref<128x1152xbf16, #tpu.memory_space<vmem>>, vector<128x128xbf16>,
    %c0_121 = arith.constant 0 : index
    %c2_122 = arith.constant 2 : index
    %c1_123 = arith.constant 1 : index
    %c0_124 = arith.constant 0 : index
    %89 = vector.load %arg11[%c0_121, %c2_122, %c1_123, %c0_124] : memref<2x10x10x128xbf16, #tpu.memory_space<vmem>>, vector<2x8x8x128xbf16>
    %90 = vector.shape_cast %89 : vector<2x8x8x128xbf16> to vector<128x128xbf16>
    %c0_125 = arith.constant 0 : index
    %c896_126 = arith.constant 896 : index
    %91 = vector.load %arg13[%c0_125, %c896_126] : memref<128x1152xbf16, #tpu.memory_space<vmem>>, vector<128x128xbf16>
    tpu.vector_store %arg13[%c0_125, %c896_126], %90 {strides = array<i32>} : memref<128x1152xbf16, #tpu.memory_space<vmem>>, vector<128x128xbf16>,
    %c0_127 = arith.constant 0 : index
    %c2_128 = arith.constant 2 : index
    %c2_129 = arith.constant 2 : index
    %c0_130 = arith.constant 0 : index
    %92 = vector.load %arg11[%c0_127, %c2_128, %c2_129, %c0_130] : memref<2x10x10x128xbf16, #tpu.memory_space<vmem>>, vector<2x8x8x128xbf16>
    %93 = vector.shape_cast %92 : vector<2x8x8x128xbf16> to vector<128x128xbf16>
    %c0_131 = arith.constant 0 : index
    %c1024_132 = arith.constant 1024 : index
    %94 = vector.load %arg13[%c0_131, %c1024_132] : memref<128x1152xbf16, #tpu.memory_space<vmem>>, vector<128x128xbf16>
    tpu.vector_store %arg13[%c0_131, %c1024_132], %93 {strides = array<i32>} : memref<128x1152xbf16, #tpu.memory_space<vmem>>, vector<128x128xbf16>,
    %c0_133 = arith.constant 0 : index
    %c0_134 = arith.constant 0 : index
    %95 = vector.load %arg13[%c0_133, %c0_134] : memref<128x1152xbf16, #tpu.memory_space<vmem>>, vector<128x1152xbf16>
    %c0_135 = arith.constant 0 : index
    %c0_136 = arith.constant 0 : index
    %96 = vector.load %arg2[%c0_135, %c0_136] : memref<1152x128xbf16, #tpu.memory_space<vmem>>, vector<1152x128xbf16>
    %cst_137 = arith.constant dense<0.000000e+00> : vector<128x128xf32>
    %97 = tpu.matmul %95, %96, %cst_137 {dimension_numbers = #tpu.dot_dimension_numbers<[1], [0], [0], [1], [0, 0, 1, 1], [], []>} : vector<128x1152xbf16>, vector<1152x128xbf16>, vector<128x128xf32> -> vector<128x128xf32>
    %cst_138 = arith.constant dense<0.000000e+00> : vector<128xf32>
    %98 = vector.multi_reduction <add>, %97, %cst_138 [0] : vector<128x128xf32> to vector<128xf32>
    %99 = vector.shape_cast %98 : vector<128xf32> to vector<1x128xf32>
    %cst_139 = arith.constant 7.812500e-03 : f32
    %100 = vector.broadcast %cst_139 : f32 to vector<1x128xf32>
    %101 = arith.mulf %99, %100 : vector<1x128xf32>
    %102 = arith.mulf %97, %97 : vector<128x128xf32>
    %cst_140 = arith.constant dense<0.000000e+00> : vector<128xf32>
    %103 = vector.multi_reduction <add>, %102, %cst_140 [0] : vector<128x128xf32> to vector<128xf32>
    %104 = vector.shape_cast %103 : vector<128xf32> to vector<1x128xf32>
    %cst_141 = arith.constant 7.812500e-03 : f32
    %105 = vector.broadcast %cst_141 : f32 to vector<1x128xf32>
    %106 = arith.mulf %104, %105 : vector<1x128xf32>
    %107 = arith.mulf %101, %101 : vector<1x128xf32>
    %108 = arith.subf %106, %107 : vector<1x128xf32>
    %cst_142 = arith.constant 0.000000e+00 : f32
    %109 = vector.broadcast %cst_142 : f32 to vector<1x128xf32>
    %110 = arith.maximumf %108, %109 : vector<1x128xf32>
    %c0_143 = arith.constant 0 : index
    %c0_144 = arith.constant 0 : index
    %111 = vector.load %arg6[%c0_143, %c0_144] : memref<1x128xf32, #tpu.memory_space<vmem>>, vector<1x128xf32>
    %cst_145 = arith.constant 9.99999974E-6 : f32
    %112 = vector.broadcast %cst_145 : f32 to vector<1x128xf32>
    %113 = arith.addf %110, %112 : vector<1x128xf32>
    %114 = math.rsqrt %113 : vector<1x128xf32>
    %115 = arith.mulf %111, %114 : vector<1x128xf32>
    %c0_146 = arith.constant 0 : index
    %c0_147 = arith.constant 0 : index
    %116 = vector.load %arg7[%c0_146, %c0_147] : memref<1x128xf32, #tpu.memory_space<vmem>>, vector<1x128xf32>
    %117 = arith.mulf %101, %115 : vector<1x128xf32>
    %118 = arith.subf %116, %117 : vector<1x128xf32>
    %119 = vector.broadcast %115 : vector<1x128xf32> to vector<128x128xf32>
    %120 = arith.mulf %97, %119 : vector<128x128xf32>
    %121 = vector.broadcast %118 : vector<1x128xf32> to vector<128x128xf32>
    %122 = arith.addf %120, %121 : vector<128x128xf32>
    %c6_148 = arith.constant 6 : index
    %c0_149 = arith.constant 0 : index
    %c0_150 = arith.constant 0 : index
    %c0_151 = arith.constant 0 : index
    %123 = vector.load %arg0[%c6_148, %c0_149, %c0_150, %c0_151] : memref<8x9x9x128xbf16, #tpu.memory_space<vmem>>, vector<2x8x8x128xbf16>
    %124 = vector.shape_cast %123 : vector<2x8x8x128xbf16> to vector<128x128xbf16>
    %c0_152 = arith.constant 0 : index
    %c0_153 = arith.constant 0 : index
    %125 = vector.load %arg3[%c0_152, %c0_153] : memref<128x128xbf16, #tpu.memory_space<vmem>>, vector<128x128xbf16>
    %cst_154 = arith.constant dense<0.000000e+00> : vector<128x128xf32>
    %126 = tpu.matmul %124, %125, %cst_154 {dimension_numbers = #tpu.dot_dimension_numbers<[1], [0], [0], [1], [0, 0, 1, 1], [], []>} : vector<128x128xbf16>, vector<128x128xbf16>, vector<128x128xf32> -> vector<128x128xf32>
    %cst_155 = arith.constant dense<0.000000e+00> : vector<128xf32>
    %127 = vector.multi_reduction <add>, %126, %cst_155 [0] : vector<128x128xf32> to vector<128xf32>
    %128 = vector.shape_cast %127 : vector<128xf32> to vector<1x128xf32>
    %cst_156 = arith.constant 7.812500e-03 : f32
    %129 = vector.broadcast %cst_156 : f32 to vector<1x128xf32>
    %130 = arith.mulf %128, %129 : vector<1x128xf32>
    %131 = arith.mulf %126, %126 : vector<128x128xf32>
    %cst_157 = arith.constant dense<0.000000e+00> : vector<128xf32>
    %132 = vector.multi_reduction <add>, %131, %cst_157 [0] : vector<128x128xf32> to vector<128xf32>
    %133 = vector.shape_cast %132 : vector<128xf32> to vector<1x128xf32>
    %cst_158 = arith.constant 7.812500e-03 : f32
    %134 = vector.broadcast %cst_158 : f32 to vector<1x128xf32>
    %135 = arith.mulf %133, %134 : vector<1x128xf32>
    %136 = arith.mulf %130, %130 : vector<1x128xf32>
    %137 = arith.subf %135, %136 : vector<1x128xf32>
    %cst_159 = arith.constant 0.000000e+00 : f32
    %138 = vector.broadcast %cst_159 : f32 to vector<1x128xf32>
    %139 = arith.maximumf %137, %138 : vector<1x128xf32>
    %c0_160 = arith.constant 0 : index
    %c0_161 = arith.constant 0 : index
    %140 = vector.load %arg8[%c0_160, %c0_161] : memref<1x128xf32, #tpu.memory_space<vmem>>, vector<1x128xf32>
    %cst_162 = arith.constant 9.99999974E-6 : f32
    %141 = vector.broadcast %cst_162 : f32 to vector<1x128xf32>
    %142 = arith.addf %139, %141 : vector<1x128xf32>
    %143 = math.rsqrt %142 : vector<1x128xf32>
    %144 = arith.mulf %140, %143 : vector<1x128xf32>
    %c0_163 = arith.constant 0 : index
    %c0_164 = arith.constant 0 : index
    %145 = vector.load %arg9[%c0_163, %c0_164] : memref<1x128xf32, #tpu.memory_space<vmem>>, vector<1x128xf32>
    %146 = arith.mulf %130, %144 : vector<1x128xf32>
    %147 = arith.subf %145, %146 : vector<1x128xf32>
    %148 = vector.broadcast %144 : vector<1x128xf32> to vector<128x128xf32>
    %149 = arith.mulf %126, %148 : vector<128x128xf32>
    %150 = vector.broadcast %147 : vector<1x128xf32> to vector<128x128xf32>
    %151 = arith.addf %149, %150 : vector<128x128xf32>
    %152 = arith.addf %151, %122 : vector<128x128xf32>
    %cst_165 = arith.constant 0.000000e+00 : f32
    %153 = vector.broadcast %cst_165 : f32 to vector<128x128xf32>
    %154 = arith.maximumf %152, %153 : vector<128x128xf32>
    %155 = vector.shape_cast %154 : vector<128x128xf32> to vector<2x8x8x128xf32>
    %c0_166 = arith.constant 0 : index
    %c0_167 = arith.constant 0 : index
    %c0_168 = arith.constant 0 : index
    %c0_169 = arith.constant 0 : index
    %156 = vector.load %arg10[%c0_166, %c0_167, %c0_168, %c0_169] : memref<2x8x8x128xf32, #tpu.memory_space<vmem>>, vector<2x8x8x128xf32>
    tpu.vector_store %arg10[%c0_166, %c0_167, %c0_168, %c0_169], %155 {strides = array<i32>} : memref<2x8x8x128xf32, #tpu.memory_space<vmem>>, vector<2x8x8x128xf32>,
    return
  }
}

</mosaic_0001>

<llo_original>
// kernel: tpu_custom_call.1
$region0: #{tpu_custom_call.1}
  #allocation0 [shape = 'u32[]', space=smem, size = 0x4, offset = 0x4, fixed_abs, tag = 'smem constant byte address 0x4 - core index']
  #allocation1 [shape = 'u32[144,128]{1,0:T(1,128)}', space=vmem, size = 0x12000, scoped, tag = 'internal scratch']
  #allocation2 [shape = 'bf16[2,10,10,128]{3,2,1,0:T(8,128)(2,1)}', space=vmem, size = 0x14000, scoped, tag = 'scratch operand']
  #allocation3 [shape = 'bf16[128,1152]{1,0:T(16,128)(2,1)}', space=vmem, size = 0x48000, scoped, tag = 'scratch operand']
  #allocation4 [shape = 'bf16[128,1152]{1,0:T(16,128)(2,1)}', space=vmem, size = 0x48000, scoped, tag = 'scratch operand']
  %s0 = inlined_call_operand.vmem [shape: bf16[8,9,9,128], index: 0, kind: input, shape index: {}]
  %s1 = inlined_call_operand.vmem [shape: bf16[1152,128], index: 1, kind: input, shape index: {}]
  %s2 = inlined_call_operand.hbm [shape: bf16[1152,128], index: 2, kind: input, shape index: {}]
  %s3 = inlined_call_operand.vmem [shape: bf16[128,128], index: 3, kind: input, shape index: {}]
  %s4 = inlined_call_operand.vmem [shape: f32[1,128], index: 4, kind: input, shape index: {}]
  %s5 = inlined_call_operand.vmem [shape: f32[1,128], index: 5, kind: input, shape index: {}]
  %s6 = inlined_call_operand.vmem [shape: f32[1,128], index: 6, kind: input, shape index: {}]
  %s7 = inlined_call_operand.vmem [shape: f32[1,128], index: 7, kind: input, shape index: {}]
  %s8 = inlined_call_operand.vmem [shape: f32[1,128], index: 8, kind: input, shape index: {}]
  %s9 = inlined_call_operand.vmem [shape: f32[1,128], index: 9, kind: input, shape index: {}]
  %s10 = inlined_call_operand.hbm [shape: f32[2,8,8,128], index: 10, kind: output, shape index: {}]
  %s11 = sld [smem:[#allocation0]]
  $region54: #{tpu_custom_call.1} parent=0
    _
  %s13 = ssub.s32 1, %s11
  %s14 = scalar_select 0, %s13, %s11
  $region1: #{tpu_custom_call.1} parent=0
    #allocation5 [shape = 'u8[294912]{0}', space=vmem, size = 0x48000, scoped, tag = 'input window, operand 2, single buffered']
    #allocation6 [shape = 's32[1]{0}', space=sflag, size = 0x4, scoped, tag = 'scoped memory for tpu_custom_call.1']
    #allocation7 [shape = 's32[1]{0}', space=sflag, size = 0x4, scoped, tag = 'scoped memory for tpu_custom_call.1']
    #allocation8 [shape = 'u8[65536]{0}', space=vmem, size = 0x10000, scoped, tag = 'output window, operand 0, single buffered']
    %15 = vsyncpa [#allocation6], 0
    %16 = vsyncpa [#allocation7], 0
    // Predicated region
    $region2: #{tpu_custom_call.1} parent=1 // pred_check
      _
    $region3: #{tpu_custom_call.1} parent=1 // pred_check_branch
      %18 = sbr.rel (0) target = $region5
    $region4: #{tpu_custom_call.1} parent=1 // pred_region
      _
    $region5: #{tpu_custom_call.1} parent=1 // pred_fallthru
      _
    // Predicated region
    $region6: #{tpu_custom_call.1} parent=1 // pred_check
      _
    $region7: #{tpu_custom_call.1} parent=1 // pred_check_branch
      %20 = sbr.rel (0) target = $region9
    $region8: #{tpu_custom_call.1} parent=1 // pred_region
      _
    $region9: #{tpu_custom_call.1} parent=1 // pred_fallthru
      _
    // Predicated region
    $region10: #{tpu_custom_call.1} parent=1 // pred_check
      _
    $region11: #{tpu_custom_call.1} parent=1 // pred_check_branch
      %22 = sbr.rel (0) target = $region13
    $region12: #{tpu_custom_call.1} parent=1 // pred_region
      %s24 = ssub.s32 9216, 9216
      %25 = vsyncadd [#allocation6], %s24
      %s26 = sshll.u32 [#allocation5], 4
      %s27 = int_to_ptr.vmem [resolvable:$true] %s26
      %32 = dma.hbm_to_vmem [thread:$0]  %s2, 9216, %s27, [#allocation6], 64, 64, 4
    $region13: #{tpu_custom_call.1} parent=1 // pred_fallthru
      _
    // Predicated region
    $region14: #{tpu_custom_call.1} parent=1 // pred_check
      _
    $region15: #{tpu_custom_call.1} parent=1 // pred_check_branch
      %34 = sbr.rel (0) target = $region17
    $region16: #{tpu_custom_call.1} parent=1 // pred_region
      _
    $region17: #{tpu_custom_call.1} parent=1 // pred_fallthru
      _
    // Predicated region
    $region18: #{tpu_custom_call.1} parent=1 // pred_check
      _
    $region19: #{tpu_custom_call.1} parent=1 // pred_check_branch
      %36 = sbr.rel (0) target = $region21
    $region20: #{tpu_custom_call.1} parent=1 // pred_region
      _
    $region21: #{tpu_custom_call.1} parent=1 // pred_fallthru
      _
    // Predicated region
    $region22: #{tpu_custom_call.1} parent=1 // pred_check
      _
    $region23: #{tpu_custom_call.1} parent=1 // pred_check_branch
      %38 = sbr.rel (0) target = $region25
    $region24: #{tpu_custom_call.1} parent=1 // pred_region
      _
    $region25: #{tpu_custom_call.1} parent=1 // pred_fallthru
      _
    // Predicated region
    $region26: #{tpu_custom_call.1} parent=1 // pred_check
      _
    $region27: #{tpu_custom_call.1} parent=1 // pred_check_branch
      %40 = sbr.rel (0) target = $region29
    $region28: #{tpu_custom_call.1} parent=1 // pred_region
      _
    $region29: #{tpu_custom_call.1} parent=1 // pred_fallthru
      _
    // Predicated region
    $region30: #{tpu_custom_call.1} parent=1 // pred_check
      _
    $region31: #{tpu_custom_call.1} parent=1 // pred_check_branch
      %42 = sbr.rel (0) target = $region33
    $region32: #{tpu_custom_call.1} parent=1 // pred_region
      _
    $region33: #{tpu_custom_call.1} parent=1 // pred_fallthru
      _
    // Predicated region
    $region34: #{tpu_custom_call.1} parent=1 // pred_check
      _
    $region35: #{tpu_custom_call.1} parent=1 // pred_check_branch
      %44 = sbr.rel (0) target = $region37
    $region36: #{tpu_custom_call.1} parent=1 // pred_region
      _
    $region37: #{tpu_custom_call.1} parent=1 // pred_fallthru
      _
    // Predicated region
    $region38: #{tpu_custom_call.1} parent=1 // pred_check
      _
    $region39: #{tpu_custom_call.1} parent=1 // pred_check_branch
      %46 = sbr.rel (0) target = $region41
    $region40: #{tpu_custom_call.1} parent=1 // pred_region
      _
    $region41: #{tpu_custom_call.1} parent=1 // pred_fallthru
      _
    // Predicated region
    $region42: #{tpu_custom_call.1} parent=1 // pred_check
      _
    $region43: #{tpu_custom_call.1} parent=1 // pred_check_branch
      %48 = sbr.rel (0) target = $region45
    $region44: #{tpu_custom_call.1} parent=1 // pred_region
      %49 = dma.done [#allocation6], 9216
    $region45: #{tpu_custom_call.1} parent=1 // pred_fallthru
      _
    %v51 = vld [vmem:[%s0] sm:$0xf]
    %v52 = vld [vmem:[%s0 + $0x8] sm:$0xf]
    %v53 = vld [vmem:[%s0 + $0x10] sm:$0xf]
    %v54 = vld [vmem:[%s0 + $0x18] sm:$0xf]
    %v55 = vld [vmem:[%s0 + $0x20] sm:$0xf]
    %v56 = vld [vmem:[%s0 + $0x28] sm:$0xf]
    %v57 = vld [vmem:[%s0 + $0x30] sm:$0xf]
    %v58 = vld [vmem:[%s0 + $0x38] sm:$0xf]
    %v59 = vld [vmem:[%s0 + $0x48] sm:$0xf]
    %v60 = vld [vmem:[%s0 + $0x50] sm:$0xf]
    %v61 = vld [vmem:[%s0 + $0x58] sm:$0xf]
    %v62 = vld [vmem:[%s0 + $0x60] sm:$0xf]
    %v63 = vld [vmem:[%s0 + $0x68] sm:$0xf]
    %v64 = vld [vmem:[%s0 + $0x70] sm:$0xf]
    %v65 = vld [vmem:[%s0 + $0x78] sm:$0xf]
    %v66 = vld [vmem:[%s0 + $0x80] sm:$0xf]
    %v83 = vunpack.c.l.b16 %v51
    %v84 = vunpack.c.l.b16 %v52
    %v85 = vunpack.c.l.b16 %v53
    %v86 = vunpack.c.l.b16 %v54
    %v87 = vunpack.c.l.b16 %v55
    %v88 = vunpack.c.l.b16 %v56
    %v89 = vunpack.c.l.b16 %v57
    %v90 = vunpack.c.l.b16 %v58
    %v91 = vunpack.c.l.b16 %v59
    %v92 = vunpack.c.l.b16 %v60
    %v93 = vunpack.c.l.b16 %v61
    %v94 = vunpack.c.l.b16 %v62
    %v95 = vunpack.c.l.b16 %v63
    %v96 = vunpack.c.l.b16 %v64
    %v97 = vunpack.c.l.b16 %v65
    %v98 = vunpack.c.l.b16 %v66
    %v99 = vpack.c.b16 %v84, %v83
    %v100 = vpack.c.b16 %v86, %v85
    %v101 = vpack.c.b16 %v88, %v87
    %v102 = vpack.c.b16 %v90, %v89
    %v103 = vpack.c.b16 %v92, %v91
    %v104 = vpack.c.b16 %v94, %v93
    %v105 = vpack.c.b16 %v96, %v95
    %v106 = vpack.c.b16 %v98, %v97
    %115 = vst [vmem:[#allocation3] sm:$0xff] %v99
    %116 = vst [vmem:[#allocation3 + $0x48] sm:$0xff] %v100
    %117 = vst [vmem:[#allocation3 + $0x90] sm:$0xff] %v101
    %118 = vst [vmem:[#allocation3 + $0xd8] sm:$0xff] %v102
    %119 = vst [vmem:[#allocation3 + $0x120] sm:$0xff] %v103
    %120 = vst [vmem:[#allocation3 + $0x168] sm:$0xff] %v104
    %121 = vst [vmem:[#allocation3 + $0x1b0] sm:$0xff] %v105
    %122 = vst [vmem:[#allocation3 + $0x1f8] sm:$0xff] %v106
    %s123 = scalar_lea.vmem %s0, 144
    %v124 = vld [vmem:[%s123] sm:$0xf]
    %v125 = vld [vmem:[%s123 + $0x8] sm:$0xf]
    %v126 = vld [vmem:[%s123 + $0x10] sm:$0xf]
    %v127 = vld [vmem:[%s123 + $0x18] sm:$0xf]
    %v128 = vld [vmem:[%s123 + $0x20] sm:$0xf]
    %v129 = vld [vmem:[%s123 + $0x28] sm:$0xf]
    %v130 = vld [vmem:[%s123 + $0x30] sm:$0xf]
    %v131 = vld [vmem:[%s123 + $0x38] sm:$0xf]
    %v132 = vld [vmem:[%s123 + $0x48] sm:$0xf]
    %v133 = vld [vmem:[%s123 + $0x50] sm:$0xf]
    %v134 = vld [vmem:[%s123 + $0x58] sm:$0xf]
    %v135 = vld [vmem:[%s123 + $0x60] sm:$0xf]
    %v136 = vld [vmem:[%s123 + $0x68] sm:$0xf]
    %v137 = vld [vmem:[%s123 + $0x70] sm:$0xf]
    %v138 = vld [vmem:[%s123 + $0x78] sm:$0xf]
    %v139 = vld [vmem:[%s123 + $0x80] sm:$0xf]
    %v156 = vunpack.c.l.b16 %v124
    %v157 = vunpack.c.l.b16 %v125
    %v158 = vunpack.c.l.b16 %v126
    %v159 = vunpack.c.l.b16 %v127
    %v160 = vunpack.c.l.b16 %v128
    %v161 = vunpack.c.l.b16 %v129
    %v162 = vunpack.c.l.b16 %v130
    %v163 = vunpack.c.l.b16 %v131
    %v164 = vunpack.c.l.b16 %v132
    %v165 = vunpack.c.l.b16 %v133
    %v166 = vunpack.c.l.b16 %v134
    %v167 = vunpack.c.l.b16 %v135
    %v168 = vunpack.c.l.b16 %v136
    %v169 = vunpack.c.l.b16 %v137
    %v170 = vunpack.c.l.b16 %v138
    %v171 = vunpack.c.l.b16 %v139
    %v172 = vpack.c.b16 %v157, %v156
    %v173 = vpack.c.b16 %v159, %v158
    %v174 = vpack.c.b16 %v161, %v160
    %v175 = vpack.c.b16 %v163, %v162
    %v176 = vpack.c.b16 %v165, %v164
    %v177 = vpack.c.b16 %v167, %v166
    %v178 = vpack.c.b16 %v169, %v168
    %v179 = vpack.c.b16 %v171, %v170
    %188 = vst [vmem:[#allocation3 + $0x8] sm:$0xff] %v172
    %189 = vst [vmem:[#allocation3 + $0x50] sm:$0xff] %v173
    %190 = vst [vmem:[#allocation3 + $0x98] sm:$0xff] %v174
    %191 = vst [vmem:[#allocation3 + $0xe0] sm:$0xff] %v175
    %192 = vst [vmem:[#allocation3 + $0x128] sm:$0xff] %v176
    %193 = vst [vmem:[#allocation3 + $0x170] sm:$0xff] %v177
    %194 = vst [vmem:[#allocation3 + $0x1b8] sm:$0xff] %v178
    %195 = vst [vmem:[#allocation3 + $0x200] sm:$0xff] %v179
    %v196 = vld [vmem:[%s0] sm:$0xf]
    %v197 = vld [vmem:[%s0 + $0x4] sm:$0x1]
    %v198 = vld [vmem:[%s0 + $0x8] sm:$0xf]
    %v199 = vld [vmem:[%s0 + $0xc] sm:$0x1]
    %v200 = vld [vmem:[%s0 + $0x10] sm:$0xf]
    %v201 = vld [vmem:[%s0 + $0x14] sm:$0x1]
    %v202 = vld [vmem:[%s0 + $0x18] sm:$0xf]
    %v203 = vld [vmem:[%s0 + $0x1c] sm:$0x1]
    %v204 = vld [vmem:[%s0 + $0x20] sm:$0xf]
    %v205 = vld [vmem:[%s0 + $0x24] sm:$0x1]
    %v206 = vld [vmem:[%s0 + $0x28] sm:$0xf]
    %v207 = vld [vmem:[%s0 + $0x2c] sm:$0x1]
    %v208 = vld [vmem:[%s0 + $0x30] sm:$0xf]
    %v209 = vld [vmem:[%s0 + $0x34] sm:$0x1]
    %v210 = vld [vmem:[%s0 + $0x38] sm:$0xf]
    %v211 = vld [vmem:[%s0 + $0x3c] sm:$0x1]
    %v212 = vld [vmem:[%s0 + $0x48] sm:$0xf]
    %v213 = vld [vmem:[%s0 + $0x4c] sm:$0x1]
    %v214 = vld [vmem:[%s0 + $0x50] sm:$0xf]
    %v215 = vld [vmem:[%s0 + $0x54] sm:$0x1]
    %v216 = vld [vmem:[%s0 + $0x58] sm:$0xf]
    %v217 = vld [vmem:[%s0 + $0x5c] sm:$0x1]
    %v218 = vld [vmem:[%s0 + $0x60] sm:$0xf]
    %v219 = vld [vmem:[%s0 + $0x64] sm:$0x1]
    %v220 = vld [vmem:[%s0 + $0x68] sm:$0xf]
    %v221 = vld [vmem:[%s0 + $0x6c] sm:$0x1]
    %v222 = vld [vmem:[%s0 + $0x70] sm:$0xf]
    %v223 = vld [vmem:[%s0 + $0x74] sm:$0x1]
    %v224 = vld [vmem:[%s0 + $0x78] sm:$0xf]
    %v225 = vld [vmem:[%s0 + $0x7c] sm:$0x1]
    %v226 = vld [vmem:[%s0 + $0x80] sm:$0xf]
    %v227 = vld [vmem:[%s0 + $0x84] sm:$0x1]
    %vm228 = vsmask.f32 3328
    %vm229 = vsmask.f32 7440
    %vm230 = vmor %vm228, %vm229
    %v232 = vshrl.u32 %v196, 16
    %v234 = vrot.slane %v232, 4
    %v235 = vshll.u32 %v196, 16
    %v237 = vrot.slane %v235, 5
    %v238 = vor.u32 %v234, %v237
    %v239 = vrot.slane %v238, 4
    %v241 = vshll.u32 %v197, 16
    %v243 = vrot.slane %v241, 5
    %v244 = vsel %vm230, %v239, %v243
    %v246 = vshrl.u32 %v198, 16
    %v248 = vrot.slane %v246, 4
    %v249 = vshll.u32 %v198, 16
    %v251 = vrot.slane %v249, 5
    %v252 = vor.u32 %v248, %v251
    %v253 = vrot.slane %v252, 4
    %v255 = vshll.u32 %v199, 16
    %v257 = vrot.slane %v255, 5
    %v258 = vsel %vm230, %v253, %v257
    %v260 = vshrl.u32 %v200, 16
    %v262 = vrot.slane %v260, 4
    %v263 = vshll.u32 %v200, 16
    %v265 = vrot.slane %v263, 5
    %v266 = vor.u32 %v262, %v265
    %v267 = vrot.slane %v266, 4
    %v269 = vshll.u32 %v201, 16
    %v271 = vrot.slane %v269, 5
    %v272 = vsel %vm230, %v267, %v271
    %v274 = vshrl.u32 %v202, 16
    %v276 = vrot.slane %v274, 4
    %v277 = vshll.u32 %v202, 16
    %v279 = vrot.slane %v277, 5
    %v280 = vor.u32 %v276, %v279
    %v281 = vrot.slane %v280, 4
    %v283 = vshll.u32 %v203, 16
    %v285 = vrot.slane %v283, 5
    %v286 = vsel %vm230, %v281, %v285
    %v288 = vshrl.u32 %v204, 16
    %v290 = vrot.slane %v288, 4
    %v291 = vshll.u32 %v204, 16
    %v293 = vrot.slane %v291, 5
    %v294 = vor.u32 %v290, %v293
    %v295 = vrot.slane %v294, 4
    %v297 = vshll.u32 %v205, 16
    %v299 = vrot.slane %v297, 5
    %v300 = vsel %vm230, %v295, %v299
    %v302 = vshrl.u32 %v206, 16
    %v304 = vrot.slane %v302, 4
    %v305 = vshll.u32 %v206, 16
    %v307 = vrot.slane %v305, 5
    %v308 = vor.u32 %v304, %v307
    %v309 = vrot.slane %v308, 4
    %v311 = vshll.u32 %v207, 16
    %v313 = vrot.slane %v311, 5
    %v314 = vsel %vm230, %v309, %v313
    %v316 = vshrl.u32 %v208, 16
    %v318 = vrot.slane %v316, 4
    %v319 = vshll.u32 %v208, 16
    %v321 = vrot.slane %v319, 5
    %v322 = vor.u32 %v318, %v321
    %v323 = vrot.slane %v322, 4
    %v325 = vshll.u32 %v209, 16
    %v327 = vrot.slane %v325, 5
    %v328 = vsel %vm230, %v323, %v327
    %v330 = vshrl.u32 %v210, 16
    %v332 = vrot.slane %v330, 4
    %v333 = vshll.u32 %v210, 16
    %v335 = vrot.slane %v333, 5
    %v336 = vor.u32 %v332, %v335
    %v337 = vrot.slane %v336, 4
    %v339 = vshll.u32 %v211, 16
    %v341 = vrot.slane %v339, 5
    %v342 = vsel %vm230, %v337, %v341
    %v344 = vshrl.u32 %v212, 16
    %v346 = vrot.slane %v344, 4
    %v347 = vshll.u32 %v212, 16
    %v349 = vrot.slane %v347, 5
    %v350 = vor.u32 %v346, %v349
    %v351 = vrot.slane %v350, 4
    %v353 = vshll.u32 %v213, 16
    %v355 = vrot.slane %v353, 5
    %v356 = vsel %vm230, %v351, %v355
    %v358 = vshrl.u32 %v214, 16
    %v360 = vrot.slane %v358, 4
    %v361 = vshll.u32 %v214, 16
    %v363 = vrot.slane %v361, 5
    %v364 = vor.u32 %v360, %v363
    %v365 = vrot.slane %v364, 4
    %v367 = vshll.u32 %v215, 16
    %v369 = vrot.slane %v367, 5
    %v370 = vsel %vm230, %v365, %v369
    %v372 = vshrl.u32 %v216, 16
    %v374 = vrot.slane %v372, 4
    %v375 = vshll.u32 %v216, 16
    %v377 = vrot.slane %v375, 5
    %v378 = vor.u32 %v374, %v377
    %v379 = vrot.slane %v378, 4
    %v381 = vshll.u32 %v217, 16
    %v383 = vrot.slane %v381, 5
    %v384 = vsel %vm230, %v379, %v383
    %v386 = vshrl.u32 %v218, 16
    %v388 = vrot.slane %v386, 4
    %v389 = vshll.u32 %v218, 16
    %v391 = vrot.slane %v389, 5
    %v392 = vor.u32 %v388, %v391
    %v393 = vrot.slane %v392, 4
    %v395 = vshll.u32 %v219, 16
    %v397 = vrot.slane %v395, 5
    %v398 = vsel %vm230, %v393, %v397
    %v400 = vshrl.u32 %v220, 16
    %v402 = vrot.slane %v400, 4
    %v403 = vshll.u32 %v220, 16
    %v405 = vrot.slane %v403, 5
    %v406 = vor.u32 %v402, %v405
    %v407 = vrot.slane %v406, 4
    %v409 = vshll.u32 %v221, 16
    %v411 = vrot.slane %v409, 5
    %v412 = vsel %vm230, %v407, %v411
    %v414 = vshrl.u32 %v222, 16
    %v416 = vrot.slane %v414, 4
    %v417 = vshll.u32 %v222, 16
    %v419 = vrot.slane %v417, 5
    %v420 = vor.u32 %v416, %v419
    %v421 = vrot.slane %v420, 4
    %v423 = vshll.u32 %v223, 16
    %v425 = vrot.slane %v423, 5
    %v426 = vsel %vm230, %v421, %v425
    %v428 = vshrl.u32 %v224, 16
    %v430 = vrot.slane %v428, 4
    %v431 = vshll.u32 %v224, 16
    %v433 = vrot.slane %v431, 5
    %v434 = vor.u32 %v430, %v433
    %v435 = vrot.slane %v434, 4
    %v437 = vshll.u32 %v225, 16
    %v439 = vrot.slane %v437, 5
    %v440 = vsel %vm230, %v435, %v439
    %v442 = vshrl.u32 %v226, 16
    %v444 = vrot.slane %v442, 4
    %v445 = vshll.u32 %v226, 16
    %v447 = vrot.slane %v445, 5
    %v448 = vor.u32 %v444, %v447
    %v449 = vrot.slane %v448, 4
    %v451 = vshll.u32 %v227, 16
    %v453 = vrot.slane %v451, 5
    %v454 = vsel %vm230, %v449, %v453
    %v455 = vunpack.c.l.b16 %v244
    %v456 = vunpack.c.l.b16 %v258
    %v457 = vunpack.c.l.b16 %v272
    %v458 = vunpack.c.l.b16 %v286
    %v459 = vunpack.c.l.b16 %v300
    %v460 = vunpack.c.l.b16 %v314
    %v461 = vunpack.c.l.b16 %v328
    %v462 = vunpack.c.l.b16 %v342
    %v463 = vunpack.c.l.b16 %v356
    %v464 = vunpack.c.l.b16 %v370
    %v465 = vunpack.c.l.b16 %v384
    %v466 = vunpack.c.l.b16 %v398
    %v467 = vunpack.c.l.b16 %v412
    %v468 = vunpack.c.l.b16 %v426
    %v469 = vunpack.c.l.b16 %v440
    %v470 = vunpack.c.l.b16 %v454
    %v471 = vpack.c.b16 %v456, %v455
    %v472 = vpack.c.b16 %v458, %v457
    %v473 = vpack.c.b16 %v460, %v459
    %v474 = vpack.c.b16 %v462, %v461
    %v475 = vpack.c.b16 %v464, %v463
    %v476 = vpack.c.b16 %v466, %v465
    %v477 = vpack.c.b16 %v468, %v467
    %v478 = vpack.c.b16 %v470, %v469
    %487 = vst [vmem:[#allocation3 + $0x10] sm:$0xff] %v471
    %488 = vst [vmem:[#allocation3 + $0x58] sm:$0xff] %v472
    %489 = vst [vmem:[#allocation3 + $0xa0] sm:$0xff] %v473
    %490 = vst [vmem:[#allocation3 + $0xe8] sm:$0xff] %v474
    %491 = vst [vmem:[#allocation3 + $0x130] sm:$0xff] %v475
    %492 = vst [vmem:[#allocation3 + $0x178] sm:$0xff] %v476
    %493 = vst [vmem:[#allocation3 + $0x1c0] sm:$0xff] %v477
    %494 = vst [vmem:[#allocation3 + $0x208] sm:$0xff] %v478
    %s495 = scalar_lea.vmem %s0, 288
    %v496 = vld [vmem:[%s495] sm:$0xf]
    %v497 = vld [vmem:[%s495 + $0x8] sm:$0xf]
    %v498 = vld [vmem:[%s495 + $0x10] sm:$0xf]
    %v499 = vld [vmem:[%s495 + $0x18] sm:$0xf]
    %v500 = vld [vmem:[%s495 + $0x20] sm:$0xf]
    %v501 = vld [vmem:[%s495 + $0x28] sm:$0xf]
    %v502 = vld [vmem:[%s495 + $0x30] sm:$0xf]
    %v503 = vld [vmem:[%s495 + $0x38] sm:$0xf]
    %v504 = vld [vmem:[%s495 + $0x48] sm:$0xf]
    %v505 = vld [vmem:[%s495 + $0x50] sm:$0xf]
    %v506 = vld [vmem:[%s495 + $0x58] sm:$0xf]
    %v507 = vld [vmem:[%s495 + $0x60] sm:$0xf]
    %v508 = vld [vmem:[%s495 + $0x68] sm:$0xf]
    %v509 = vld [vmem:[%s495 + $0x70] sm:$0xf]
    %v510 = vld [vmem:[%s495 + $0x78] sm:$0xf]
    %v511 = vld [vmem:[%s495 + $0x80] sm:$0xf]
    %v528 = vunpack.c.l.b16 %v496
    %v529 = vunpack.c.l.b16 %v497
    %v530 = vunpack.c.l.b16 %v498
    %v531 = vunpack.c.l.b16 %v499
    %v532 = vunpack.c.l.b16 %v500
    %v533 = vunpack.c.l.b16 %v501
    %v534 = vunpack.c.l.b16 %v502
    %v535 = vunpack.c.l.b16 %v503
    %v536 = vunpack.c.l.b16 %v504
    %v537 = vunpack.c.l.b16 %v505
    %v538 = vunpack.c.l.b16 %v506
    %v539 = vunpack.c.l.b16 %v507
    %v540 = vunpack.c.l.b16 %v508
    %v541 = vunpack.c.l.b16 %v509
    %v542 = vunpack.c.l.b16 %v510
    %v543 = vunpack.c.l.b16 %v511
    %v544 = vpack.c.b16 %v529, %v528
    %v545 = vpack.c.b16 %v531, %v530
    %v546 = vpack.c.b16 %v533, %v532
    %v547 = vpack.c.b16 %v535, %v534
    %v548 = vpack.c.b16 %v537, %v536
    %v549 = vpack.c.b16 %v539, %v538
    %v550 = vpack.c.b16 %v541, %v540
    %v551 = vpack.c.b16 %v543, %v542
    %560 = vst [vmem:[#allocation3 + $0x18] sm:$0xff] %v544
    %561 = vst [vmem:[#allocation3 + $0x60] sm:$0xff] %v545
    %562 = vst [vmem:[#allocation3 + $0xa8] sm:$0xff] %v546
    %563 = vst [vmem:[#allocation3 + $0xf0] sm:$0xff] %v547
    %564 = vst [vmem:[#allocation3 + $0x138] sm:$0xff] %v548
    %565 = vst [vmem:[#allocation3 + $0x180] sm:$0xff] %v549
    %566 = vst [vmem:[#allocation3 + $0x1c8] sm:$0xff] %v550
    %567 = vst [vmem:[#allocation3 + $0x210] sm:$0xff] %v551
    %s568 = scalar_lea.vmem %s0, 432
    %v569 = vld [vmem:[%s568] sm:$0xf]
    %v570 = vld [vmem:[%s568 + $0x8] sm:$0xf]
    %v571 = vld [vmem:[%s568 + $0x10] sm:$0xf]
    %v572 = vld [vmem:[%s568 + $0x18] sm:$0xf]
    %v573 = vld [vmem:[%s568 + $0x20] sm:$0xf]
    %v574 = vld [vmem:[%s568 + $0x28] sm:$0xf]
    %v575 = vld [vmem:[%s568 + $0x30] sm:$0xf]
    %v576 = vld [vmem:[%s568 + $0x38] sm:$0xf]
    %v577 = vld [vmem:[%s568 + $0x48] sm:$0xf]
    %v578 = vld [vmem:[%s568 + $0x50] sm:$0xf]
    %v579 = vld [vmem:[%s568 + $0x58] sm:$0xf]
    %v580 = vld [vmem:[%s568 + $0x60] sm:$0xf]
    %v581 = vld [vmem:[%s568 + $0x68] sm:$0xf]
    %v582 = vld [vmem:[%s568 + $0x70] sm:$0xf]
    %v583 = vld [vmem:[%s568 + $0x78] sm:$0xf]
    %v584 = vld [vmem:[%s568 + $0x80] sm:$0xf]
    %v601 = vunpack.c.l.b16 %v569
    %v602 = vunpack.c.l.b16 %v570
    %v603 = vunpack.c.l.b16 %v571
    %v604 = vunpack.c.l.b16 %v572
    %v605 = vunpack.c.l.b16 %v573
    %v606 = vunpack.c.l.b16 %v574
    %v607 = vunpack.c.l.b16 %v575
    %v608 = vunpack.c.l.b16 %v576
    %v609 = vunpack.c.l.b16 %v577
    %v610 = vunpack.c.l.b16 %v578
    %v611 = vunpack.c.l.b16 %v579
    %v612 = vunpack.c.l.b16 %v580
    %v613 = vunpack.c.l.b16 %v581
    %v614 = vunpack.c.l.b16 %v582
    %v615 = vunpack.c.l.b16 %v583
    %v616 = vunpack.c.l.b16 %v584
    %v617 = vpack.c.b16 %v602, %v601
    %v618 = vpack.c.b16 %v604, %v603
    %v619 = vpack.c.b16 %v606, %v605
    %v620 = vpack.c.b16 %v608, %v607
    %v621 = vpack.c.b16 %v610, %v609
    %v622 = vpack.c.b16 %v612, %v611
    %v623 = vpack.c.b16 %v614, %v613
    %v624 = vpack.c.b16 %v616, %v615
    %633 = vst [vmem:[#allocation3 + $0x20] sm:$0xff] %v617
    %634 = vst [vmem:[#allocation3 + $0x68] sm:$0xff] %v618
    %635 = vst [vmem:[#allocation3 + $0xb0] sm:$0xff] %v619
    %636 = vst [vmem:[#allocation3 + $0xf8] sm:$0xff] %v620
    %637 = vst [vmem:[#allocation3 + $0x140] sm:$0xff] %v621
    %638 = vst [vmem:[#allocation3 + $0x188] sm:$0xff] %v622
    %639 = vst [vmem:[#allocation3 + $0x1d0] sm:$0xff] %v623
    %640 = vst [vmem:[#allocation3 + $0x218] sm:$0xff] %v624
    %v641 = vld [vmem:[%s495] sm:$0xf]
    %v642 = vld [vmem:[%s495 + $0x4] sm:$0x1]
    %v643 = vld [vmem:[%s495 + $0x8] sm:$0xf]
    %v644 = vld [vmem:[%s495 + $0xc] sm:$0x1]
    %v645 = vld [vmem:[%s495 + $0x10] sm:$0xf]
    %v646 = vld [vmem:[%s495 + $0x14] sm:$0x1]
    %v647 = vld [vmem:[%s495 + $0x18] sm:$0xf]
    %v648 = vld [vmem:[%s495 + $0x1c] sm:$0x1]
    %v649 = vld [vmem:[%s495 + $0x20] sm:$0xf]
    %v650 = vld [vmem:[%s495 + $0x24] sm:$0x1]
    %v651 = vld [vmem:[%s495 + $0x28] sm:$0xf]
    %v652 = vld [vmem:[%s495 + $0x2c] sm:$0x1]
    %v653 = vld [vmem:[%s495 + $0x30] sm:$0xf]
    %v654 = vld [vmem:[%s495 + $0x34] sm:$0x1]
    %v655 = vld [vmem:[%s495 + $0x38] sm:$0xf]
    %v656 = vld [vmem:[%s495 + $0x3c] sm:$0x1]
    %v657 = vld [vmem:[%s495 + $0x48] sm:$0xf]
    %v658 = vld [vmem:[%s495 + $0x4c] sm:$0x1]
    %v659 = vld [vmem:[%s495 + $0x50] sm:$0xf]
    %v660 = vld [vmem:[%s495 + $0x54] sm:$0x1]
    %v661 = vld [vmem:[%s495 + $0x58] sm:$0xf]
    %v662 = vld [vmem:[%s495 + $0x5c] sm:$0x1]
    %v663 = vld [vmem:[%s495 + $0x60] sm:$0xf]
    %v664 = vld [vmem:[%s495 + $0x64] sm:$0x1]
    %v665 = vld [vmem:[%s495 + $0x68] sm:$0xf]
    %v666 = vld [vmem:[%s495 + $0x6c] sm:$0x1]
    %v667 = vld [vmem:[%s495 + $0x70] sm:$0xf]
    %v668 = vld [vmem:[%s495 + $0x74] sm:$0x1]
    %v669 = vld [vmem:[%s495 + $0x78] sm:$0xf]
    %v670 = vld [vmem:[%s495 + $0x7c] sm:$0x1]
    %v671 = vld [vmem:[%s495 + $0x80] sm:$0xf]
    %v672 = vld [vmem:[%s495 + $0x84] sm:$0x1]
    %v674 = vshrl.u32 %v641, 16
    %v676 = vrot.slane %v674, 4
    %v677 = vshll.u32 %v641, 16
    %v679 = vrot.slane %v677, 5
    %v680 = vor.u32 %v676, %v679
    %v681 = vrot.slane %v680, 4
    %v683 = vshll.u32 %v642, 16
    %v685 = vrot.slane %v683, 5
    %v686 = vsel %vm230, %v681, %v685
    %v688 = vshrl.u32 %v643, 16
    %v690 = vrot.slane %v688, 4
    %v691 = vshll.u32 %v643, 16
    %v693 = vrot.slane %v691, 5
    %v694 = vor.u32 %v690, %v693
    %v695 = vrot.slane %v694, 4
    %v697 = vshll.u32 %v644, 16
    %v699 = vrot.slane %v697, 5
    %v700 = vsel %vm230, %v695, %v699
    %v702 = vshrl.u32 %v645, 16
    %v704 = vrot.slane %v702, 4
    %v705 = vshll.u32 %v645, 16
    %v707 = vrot.slane %v705, 5
    %v708 = vor.u32 %v704, %v707
    %v709 = vrot.slane %v708, 4
    %v711 = vshll.u32 %v646, 16
    %v713 = vrot.slane %v711, 5
    %v714 = vsel %vm230, %v709, %v713
    %v716 = vshrl.u32 %v647, 16
    %v718 = vrot.slane %v716, 4
    %v719 = vshll.u32 %v647, 16
    %v721 = vrot.slane %v719, 5
    %v722 = vor.u32 %v718, %v721
    %v723 = vrot.slane %v722, 4
    %v725 = vshll.u32 %v648, 16
    %v727 = vrot.slane %v725, 5
    %v728 = vsel %vm230, %v723, %v727
    %v730 = vshrl.u32 %v649, 16
    %v732 = vrot.slane %v730, 4
    %v733 = vshll.u32 %v649, 16
    %v735 = vrot.slane %v733, 5
    %v736 = vor.u32 %v732, %v735
    %v737 = vrot.slane %v736, 4
    %v739 = vshll.u32 %v650, 16
    %v741 = vrot.slane %v739, 5
    %v742 = vsel %vm230, %v737, %v741
    %v744 = vshrl.u32 %v651, 16
    %v746 = vrot.slane %v744, 4
    %v747 = vshll.u32 %v651, 16
    %v749 = vrot.slane %v747, 5
    %v750 = vor.u32 %v746, %v749
    %v751 = vrot.slane %v750, 4
    %v753 = vshll.u32 %v652, 16
    %v755 = vrot.slane %v753, 5
    %v756 = vsel %vm230, %v751, %v755
    %v758 = vshrl.u32 %v653, 16
    %v760 = vrot.slane %v758, 4
    %v761 = vshll.u32 %v653, 16
    %v763 = vrot.slane %v761, 5
    %v764 = vor.u32 %v760, %v763
    %v765 = vrot.slane %v764, 4
    %v767 = vshll.u32 %v654, 16
    %v769 = vrot.slane %v767, 5
    %v770 = vsel %vm230, %v765, %v769
    %v772 = vshrl.u32 %v655, 16
    %v774 = vrot.slane %v772, 4
    %v775 = vshll.u32 %v655, 16
    %v777 = vrot.slane %v775, 5
    %v778 = vor.u32 %v774, %v777
    %v779 = vrot.slane %v778, 4
    %v781 = vshll.u32 %v656, 16
    %v783 = vrot.slane %v781, 5
    %v784 = vsel %vm230, %v779, %v783
    %v786 = vshrl.u32 %v657, 16
    %v788 = vrot.slane %v786, 4
    %v789 = vshll.u32 %v657, 16
    %v791 = vrot.slane %v789, 5
    %v792 = vor.u32 %v788, %v791
    %v793 = vrot.slane %v792, 4
    %v795 = vshll.u32 %v658, 16
    %v797 = vrot.slane %v795, 5
    %v798 = vsel %vm230, %v793, %v797
    %v800 = vshrl.u32 %v659, 16
    %v802 = vrot.slane %v800, 4
    %v803 = vshll.u32 %v659, 16
    %v805 = vrot.slane %v803, 5
    %v806 = vor.u32 %v802, %v805
    %v807 = vrot.slane %v806, 4
    %v809 = vshll.u32 %v660, 16
    %v811 = vrot.slane %v809, 5
    %v812 = vsel %vm230, %v807, %v811
    %v814 = vshrl.u32 %v661, 16
    %v816 = vrot.slane %v814, 4
    %v817 = vshll.u32 %v661, 16
    %v819 = vrot.slane %v817, 5
    %v820 = vor.u32 %v816, %v819
    %v821 = vrot.slane %v820, 4
    %v823 = vshll.u32 %v662, 16
    %v825 = vrot.slane %v823, 5
    %v826 = vsel %vm230, %v821, %v825
    %v828 = vshrl.u32 %v663, 16
    %v830 = vrot.slane %v828, 4
    %v831 = vshll.u32 %v663, 16
    %v833 = vrot.slane %v831, 5
    %v834 = vor.u32 %v830, %v833
    %v835 = vrot.slane %v834, 4
    %v837 = vshll.u32 %v664, 16
    %v839 = vrot.slane %v837, 5
    %v840 = vsel %vm230, %v835, %v839
    %v842 = vshrl.u32 %v665, 16
    %v844 = vrot.slane %v842, 4
    %v845 = vshll.u32 %v665, 16
    %v847 = vrot.slane %v845, 5
    %v848 = vor.u32 %v844, %v847
    %v849 = vrot.slane %v848, 4
    %v851 = vshll.u32 %v666, 16
    %v853 = vrot.slane %v851, 5
    %v854 = vsel %vm230, %v849, %v853
    %v856 = vshrl.u32 %v667, 16
    %v858 = vrot.slane %v856, 4
    %v859 = vshll.u32 %v667, 16
    %v861 = vrot.slane %v859, 5
    %v862 = vor.u32 %v858, %v861
    %v863 = vrot.slane %v862, 4
    %v865 = vshll.u32 %v668, 16
    %v867 = vrot.slane %v865, 5
    %v868 = vsel %vm230, %v863, %v867
    %v870 = vshrl.u32 %v669, 16
    %v872 = vrot.slane %v870, 4
    %v873 = vshll.u32 %v669, 16
    %v875 = vrot.slane %v873, 5
    %v876 = vor.u32 %v872, %v875
    %v877 = vrot.slane %v876, 4
    %v879 = vshll.u32 %v670, 16
    %v881 = vrot.slane %v879, 5
    %v882 = vsel %vm230, %v877, %v881
    %v884 = vshrl.u32 %v671, 16
    %v886 = vrot.slane %v884, 4
    %v887 = vshll.u32 %v671, 16
    %v889 = vrot.slane %v887, 5
    %v890 = vor.u32 %v886, %v889
    %v891 = vrot.slane %v890, 4
    %v893 = vshll.u32 %v672, 16
    %v895 = vrot.slane %v893, 5
    %v896 = vsel %vm230, %v891, %v895
    %v897 = vunpack.c.l.b16 %v686
    %v898 = vunpack.c.l.b16 %v700
    %v899 = vunpack.c.l.b16 %v714
    %v900 = vunpack.c.l.b16 %v728
    %v901 = vunpack.c.l.b16 %v742
    %v902 = vunpack.c.l.b16 %v756
    %v903 = vunpack.c.l.b16 %v770
    %v904 = vunpack.c.l.b16 %v784
    %v905 = vunpack.c.l.b16 %v798
    %v906 = vunpack.c.l.b16 %v812
    %v907 = vunpack.c.l.b16 %v826
    %v908 = vunpack.c.l.b16 %v840
    %v909 = vunpack.c.l.b16 %v854
    %v910 = vunpack.c.l.b16 %v868
    %v911 = vunpack.c.l.b16 %v882
    %v912 = vunpack.c.l.b16 %v896
    %v913 = vpack.c.b16 %v898, %v897
    %v914 = vpack.c.b16 %v900, %v899
    %v915 = vpack.c.b16 %v902, %v901
    %v916 = vpack.c.b16 %v904, %v903
    %v917 = vpack.c.b16 %v906, %v905
    %v918 = vpack.c.b16 %v908, %v907
    %v919 = vpack.c.b16 %v910, %v909
    %v920 = vpack.c.b16 %v912, %v911
    %929 = vst [vmem:[#allocation3 + $0x28] sm:$0xff] %v913
    %930 = vst [vmem:[#allocation3 + $0x70] sm:$0xff] %v914
    %931 = vst [vmem:[#allocation3 + $0xb8] sm:$0xff] %v915
    %932 = vst [vmem:[#allocation3 + $0x100] sm:$0xff] %v916
    %933 = vst [vmem:[#allocation3 + $0x148] sm:$0xff] %v917
    %934 = vst [vmem:[#allocation3 + $0x190] sm:$0xff] %v918
    %935 = vst [vmem:[#allocation3 + $0x1d8] sm:$0xff] %v919
    %936 = vst [vmem:[#allocation3 + $0x220] sm:$0xff] %v920
    %s937 = scalar_lea.vmem %s0, 8
    %v938 = vld [vmem:[%s937] sm:$0xf]
    %v939 = vld [vmem:[%s937 + $0x8] sm:$0xf]
    %v940 = vld [vmem:[%s937 + $0x10] sm:$0xf]
    %v941 = vld [vmem:[%s937 + $0x18] sm:$0xf]
    %v942 = vld [vmem:[%s937 + $0x20] sm:$0xf]
    %v943 = vld [vmem:[%s937 + $0x28] sm:$0xf]
    %v944 = vld [vmem:[%s937 + $0x30] sm:$0xf]
    %v945 = vld [vmem:[%s937 + $0x38] sm:$0xf]
    %v946 = vld [vmem:[%s937 + $0x48] sm:$0xf]
    %v947 = vld [vmem:[%s937 + $0x50] sm:$0xf]
    %v948 = vld [vmem:[%s937 + $0x58] sm:$0xf]
    %v949 = vld [vmem:[%s937 + $0x60] sm:$0xf]
    %v950 = vld [vmem:[%s937 + $0x68] sm:$0xf]
    %v951 = vld [vmem:[%s937 + $0x70] sm:$0xf]
    %v952 = vld [vmem:[%s937 + $0x78] sm:$0xf]
    %v953 = vld [vmem:[%s937 + $0x80] sm:$0xf]
    %v970 = vunpack.c.l.b16 %v938
    %v971 = vunpack.c.l.b16 %v939
    %v972 = vunpack.c.l.b16 %v940
    %v973 = vunpack.c.l.b16 %v941
    %v974 = vunpack.c.l.b16 %v942
    %v975 = vunpack.c.l.b16 %v943
    %v976 = vunpack.c.l.b16 %v944
    %v977 = vunpack.c.l.b16 %v945
    %v978 = vunpack.c.l.b16 %v946
    %v979 = vunpack.c.l.b16 %v947
    %v980 = vunpack.c.l.b16 %v948
    %v981 = vunpack.c.l.b16 %v949
    %v982 = vunpack.c.l.b16 %v950
    %v983 = vunpack.c.l.b16 %v951
    %v984 = vunpack.c.l.b16 %v952
    %v985 = vunpack.c.l.b16 %v953
    %v986 = vpack.c.b16 %v971, %v970
    %v987 = vpack.c.b16 %v973, %v972
    %v988 = vpack.c.b16 %v975, %v974
    %v989 = vpack.c.b16 %v977, %v976
    %v990 = vpack.c.b16 %v979, %v978
    %v991 = vpack.c.b16 %v981, %v980
    %v992 = vpack.c.b16 %v983, %v982
    %v993 = vpack.c.b16 %v985, %v984
    %1002 = vst [vmem:[#allocation3 + $0x30] sm:$0xff] %v986
    %1003 = vst [vmem:[#allocation3 + $0x78] sm:$0xff] %v987
    %1004 = vst [vmem:[#allocation3 + $0xc0] sm:$0xff] %v988
    %1005 = vst [vmem:[#allocation3 + $0x108] sm:$0xff] %v989
    %1006 = vst [vmem:[#allocation3 + $0x150] sm:$0xff] %v990
    %1007 = vst [vmem:[#allocation3 + $0x198] sm:$0xff] %v991
    %1008 = vst [vmem:[#allocation3 + $0x1e0] sm:$0xff] %v992
    %1009 = vst [vmem:[#allocation3 + $0x228] sm:$0xff] %v993
    %s1010 = scalar_lea.vmem %s0, 152
    %v1011 = vld [vmem:[%s1010] sm:$0xf]
    %v1012 = vld [vmem:[%s1010 + $0x8] sm:$0xf]
    %v1013 = vld [vmem:[%s1010 + $0x10] sm:$0xf]
    %v1014 = vld [vmem:[%s1010 + $0x18] sm:$0xf]
    %v1015 = vld [vmem:[%s1010 + $0x20] sm:$0xf]
    %v1016 = vld [vmem:[%s1010 + $0x28] sm:$0xf]
    %v1017 = vld [vmem:[%s1010 + $0x30] sm:$0xf]
    %v1018 = vld [vmem:[%s1010 + $0x38] sm:$0xf]
    %v1019 = vld [vmem:[%s1010 + $0x48] sm:$0xf]
    %v1020 = vld [vmem:[%s1010 + $0x50] sm:$0xf]
    %v1021 = vld [vmem:[%s1010 + $0x58] sm:$0xf]
    %v1022 = vld [vmem:[%s1010 + $0x60] sm:$0xf]
    %v1023 = vld [vmem:[%s1010 + $0x68] sm:$0xf]
    %v1024 = vld [vmem:[%s1010 + $0x70] sm:$0xf]
    %v1025 = vld [vmem:[%s1010 + $0x78] sm:$0xf]
    %v1026 = vld [vmem:[%s1010 + $0x80] sm:$0xf]
    %v1043 = vunpack.c.l.b16 %v1011
    %v1044 = vunpack.c.l.b16 %v1012
    %v1045 = vunpack.c.l.b16 %v1013
    %v1046 = vunpack.c.l.b16 %v1014
    %v1047 = vunpack.c.l.b16 %v1015
    %v1048 = vunpack.c.l.b16 %v1016
    %v1049 = vunpack.c.l.b16 %v1017
    %v1050 = vunpack.c.l.b16 %v1018
    %v1051 = vunpack.c.l.b16 %v1019
    %v1052 = vunpack.c.l.b16 %v1020
    %v1053 = vunpack.c.l.b16 %v1021
    %v1054 = vunpack.c.l.b16 %v1022
    %v1055 = vunpack.c.l.b16 %v1023
    %v1056 = vunpack.c.l.b16 %v1024
    %v1057 = vunpack.c.l.b16 %v1025
    %v1058 = vunpack.c.l.b16 %v1026
    %v1059 = vpack.c.b16 %v1044, %v1043
    %v1060 = vpack.c.b16 %v1046, %v1045
    %v1061 = vpack.c.b16 %v1048, %v1047
    %v1062 = vpack.c.b16 %v1050, %v1049
    %v1063 = vpack.c.b16 %v1052, %v1051
    %v1064 = vpack.c.b16 %v1054, %v1053
    %v1065 = vpack.c.b16 %v1056, %v1055
    %v1066 = vpack.c.b16 %v1058, %v1057
    %1075 = vst [vmem:[#allocation3 + $0x38] sm:$0xff] %v1059
    %1076 = vst [vmem:[#allocation3 + $0x80] sm:$0xff] %v1060
    %1077 = vst [vmem:[#allocation3 + $0xc8] sm:$0xff] %v1061
    %1078 = vst [vmem:[#allocation3 + $0x110] sm:$0xff] %v1062
    %1079 = vst [vmem:[#allocation3 + $0x158] sm:$0xff] %v1063
    %1080 = vst [vmem:[#allocation3 + $0x1a0] sm:$0xff] %v1064
    %1081 = vst [vmem:[#allocation3 + $0x1e8] sm:$0xff] %v1065
    %1082 = vst [vmem:[#allocation3 + $0x230] sm:$0xff] %v1066
    %v1083 = vld [vmem:[%s937] sm:$0xf]
    %v1084 = vld [vmem:[%s937 + $0x4] sm:$0x1]
    %v1085 = vld [vmem:[%s937 + $0x8] sm:$0xf]
    %v1086 = vld [vmem:[%s937 + $0xc] sm:$0x1]
    %v1087 = vld [vmem:[%s937 + $0x10] sm:$0xf]
    %v1088 = vld [vmem:[%s937 + $0x14] sm:$0x1]
    %v1089 = vld [vmem:[%s937 + $0x18] sm:$0xf]
    %v1090 = vld [vmem:[%s937 + $0x1c] sm:$0x1]
    %v1091 = vld [vmem:[%s937 + $0x20] sm:$0xf]
    %v1092 = vld [vmem:[%s937 + $0x24] sm:$0x1]
    %v1093 = vld [vmem:[%s937 + $0x28] sm:$0xf]
    %v1094 = vld [vmem:[%s937 + $0x2c] sm:$0x1]
    %v1095 = vld [vmem:[%s937 + $0x30] sm:$0xf]
    %v1096 = vld [vmem:[%s937 + $0x34] sm:$0x1]
    %v1097 = vld [vmem:[%s937 + $0x38] sm:$0xf]
    %v1098 = vld [vmem:[%s937 + $0x3c] sm:$0x1]
    %v1099 = vld [vmem:[%s937 + $0x48] sm:$0xf]
    %v1100 = vld [vmem:[%s937 + $0x4c] sm:$0x1]
    %v1101 = vld [vmem:[%s937 + $0x50] sm:$0xf]
    %v1102 = vld [vmem:[%s937 + $0x54] sm:$0x1]
    %v1103 = vld [vmem:[%s937 + $0x58] sm:$0xf]
    %v1104 = vld [vmem:[%s937 + $0x5c] sm:$0x1]
    %v1105 = vld [vmem:[%s937 + $0x60] sm:$0xf]
    %v1106 = vld [vmem:[%s937 + $0x64] sm:$0x1]
    %v1107 = vld [vmem:[%s937 + $0x68] sm:$0xf]
    %v1108 = vld [vmem:[%s937 + $0x6c] sm:$0x1]
    %v1109 = vld [vmem:[%s937 + $0x70] sm:$0xf]
    %v1110 = vld [vmem:[%s937 + $0x74] sm:$0x1]
    %v1111 = vld [vmem:[%s937 + $0x78] sm:$0xf]
    %v1112 = vld [vmem:[%s937 + $0x7c] sm:$0x1]
    %v1113 = vld [vmem:[%s937 + $0x80] sm:$0xf]
    %v1114 = vld [vmem:[%s937 + $0x84] sm:$0x1]
    %v1116 = vshrl.u32 %v1083, 16
    %v1118 = vrot.slane %v1116, 4
    %v1119 = vshll.u32 %v1083, 16
    %v1121 = vrot.slane %v1119, 5
    %v1122 = vor.u32 %v1118, %v1121
    %v1123 = vrot.slane %v1122, 4
    %v1125 = vshll.u32 %v1084, 16
    %v1127 = vrot.slane %v1125, 5
    %v1128 = vsel %vm230, %v1123, %v1127
    %v1130 = vshrl.u32 %v1085, 16
    %v1132 = vrot.slane %v1130, 4
    %v1133 = vshll.u32 %v1085, 16
    %v1135 = vrot.slane %v1133, 5
    %v1136 = vor.u32 %v1132, %v1135
    %v1137 = vrot.slane %v1136, 4
    %v1139 = vshll.u32 %v1086, 16
    %v1141 = vrot.slane %v1139, 5
    %v1142 = vsel %vm230, %v1137, %v1141
    %v1144 = vshrl.u32 %v1087, 16
    %v1146 = vrot.slane %v1144, 4
    %v1147 = vshll.u32 %v1087, 16
    %v1149 = vrot.slane %v1147, 5
    %v1150 = vor.u32 %v1146, %v1149
    %v1151 = vrot.slane %v1150, 4
    %v1153 = vshll.u32 %v1088, 16
    %v1155 = vrot.slane %v1153, 5
    %v1156 = vsel %vm230, %v1151, %v1155
    %v1158 = vshrl.u32 %v1089, 16
    %v1160 = vrot.slane %v1158, 4
    %v1161 = vshll.u32 %v1089, 16
    %v1163 = vrot.slane %v1161, 5
    %v1164 = vor.u32 %v1160, %v1163
    %v1165 = vrot.slane %v1164, 4
    %v1167 = vshll.u32 %v1090, 16
    %v1169 = vrot.slane %v1167, 5
    %v1170 = vsel %vm230, %v1165, %v1169
    %v1172 = vshrl.u32 %v1091, 16
    %v1174 = vrot.slane %v1172, 4
    %v1175 = vshll.u32 %v1091, 16
    %v1177 = vrot.slane %v1175, 5
    %v1178 = vor.u32 %v1174, %v1177
    %v1179 = vrot.slane %v1178, 4
    %v1181 = vshll.u32 %v1092, 16
    %v1183 = vrot.slane %v1181, 5
    %v1184 = vsel %vm230, %v1179, %v1183
    %v1186 = vshrl.u32 %v1093, 16
    %v1188 = vrot.slane %v1186, 4
    %v1189 = vshll.u32 %v1093, 16
    %v1191 = vrot.slane %v1189, 5
    %v1192 = vor.u32 %v1188, %v1191
    %v1193 = vrot.slane %v1192, 4
    %v1195 = vshll.u32 %v1094, 16
    %v1197 = vrot.slane %v1195, 5
    %v1198 = vsel %vm230, %v1193, %v1197
    %v1200 = vshrl.u32 %v1095, 16
    %v1202 = vrot.slane %v1200, 4
    %v1203 = vshll.u32 %v1095, 16
    %v1205 = vrot.slane %v1203, 5
    %v1206 = vor.u32 %v1202, %v1205
    %v1207 = vrot.slane %v1206, 4
    %v1209 = vshll.u32 %v1096, 16
    %v1211 = vrot.slane %v1209, 5
    %v1212 = vsel %vm230, %v1207, %v1211
    %v1214 = vshrl.u32 %v1097, 16
    %v1216 = vrot.slane %v1214, 4
    %v1217 = vshll.u32 %v1097, 16
    %v1219 = vrot.slane %v1217, 5
    %v1220 = vor.u32 %v1216, %v1219
    %v1221 = vrot.slane %v1220, 4
    %v1223 = vshll.u32 %v1098, 16
    %v1225 = vrot.slane %v1223, 5
    %v1226 = vsel %vm230, %v1221, %v1225
    %v1228 = vshrl.u32 %v1099, 16
    %v1230 = vrot.slane %v1228, 4
    %v1231 = vshll.u32 %v1099, 16
    %v1233 = vrot.slane %v1231, 5
    %v1234 = vor.u32 %v1230, %v1233
    %v1235 = vrot.slane %v1234, 4
    %v1237 = vshll.u32 %v1100, 16
    %v1239 = vrot.slane %v1237, 5
    %v1240 = vsel %vm230, %v1235, %v1239
    %v1242 = vshrl.u32 %v1101, 16
    %v1244 = vrot.slane %v1242, 4
    %v1245 = vshll.u32 %v1101, 16
    %v1247 = vrot.slane %v1245, 5
    %v1248 = vor.u32 %v1244, %v1247
    %v1249 = vrot.slane %v1248, 4
    %v1251 = vshll.u32 %v1102, 16
    %v1253 = vrot.slane %v1251, 5
    %v1254 = vsel %vm230, %v1249, %v1253
    %v1256 = vshrl.u32 %v1103, 16
    %v1258 = vrot.slane %v1256, 4
    %v1259 = vshll.u32 %v1103, 16
    %v1261 = vrot.slane %v1259, 5
    %v1262 = vor.u32 %v1258, %v1261
    %v1263 = vrot.slane %v1262, 4
    %v1265 = vshll.u32 %v1104, 16
    %v1267 = vrot.slane %v1265, 5
    %v1268 = vsel %vm230, %v1263, %v1267
    %v1270 = vshrl.u32 %v1105, 16
    %v1272 = vrot.slane %v1270, 4
    %v1273 = vshll.u32 %v1105, 16
    %v1275 = vrot.slane %v1273, 5
    %v1276 = vor.u32 %v1272, %v1275
    %v1277 = vrot.slane %v1276, 4
    %v1279 = vshll.u32 %v1106, 16
    %v1281 = vrot.slane %v1279, 5
    %v1282 = vsel %vm230, %v1277, %v1281
    %v1284 = vshrl.u32 %v1107, 16
    %v1286 = vrot.slane %v1284, 4
    %v1287 = vshll.u32 %v1107, 16
    %v1289 = vrot.slane %v1287, 5
    %v1290 = vor.u32 %v1286, %v1289
    %v1291 = vrot.slane %v1290, 4
    %v1293 = vshll.u32 %v1108, 16
    %v1295 = vrot.slane %v1293, 5
    %v1296 = vsel %vm230, %v1291, %v1295
    %v1298 = vshrl.u32 %v1109, 16
    %v1300 = vrot.slane %v1298, 4
    %v1301 = vshll.u32 %v1109, 16
    %v1303 = vrot.slane %v1301, 5
    %v1304 = vor.u32 %v1300, %v1303
    %v1305 = vrot.slane %v1304, 4
    %v1307 = vshll.u32 %v1110, 16
    %v1309 = vrot.slane %v1307, 5
    %v1310 = vsel %vm230, %v1305, %v1309
    %v1312 = vshrl.u32 %v1111, 16
    %v1314 = vrot.slane %v1312, 4
    %v1315 = vshll.u32 %v1111, 16
    %v1317 = vrot.slane %v1315, 5
    %v1318 = vor.u32 %v1314, %v1317
    %v1319 = vrot.slane %v1318, 4
    %v1321 = vshll.u32 %v1112, 16
    %v1323 = vrot.slane %v1321, 5
    %v1324 = vsel %vm230, %v1319, %v1323
    %v1326 = vshrl.u32 %v1113, 16
    %v1328 = vrot.slane %v1326, 4
    %v1329 = vshll.u32 %v1113, 16
    %v1331 = vrot.slane %v1329, 5
    %v1332 = vor.u32 %v1328, %v1331
    %v1333 = vrot.slane %v1332, 4
    %v1335 = vshll.u32 %v1114, 16
    %v1337 = vrot.slane %v1335, 5
    %v1338 = vsel %vm230, %v1333, %v1337
    %v1339 = vunpack.c.l.b16 %v1128
    %v1340 = vunpack.c.l.b16 %v1142
    %v1341 = vunpack.c.l.b16 %v1156
    %v1342 = vunpack.c.l.b16 %v1170
    %v1343 = vunpack.c.l.b16 %v1184
    %v1344 = vunpack.c.l.b16 %v1198
    %v1345 = vunpack.c.l.b16 %v1212
    %v1346 = vunpack.c.l.b16 %v1226
    %v1347 = vunpack.c.l.b16 %v1240
    %v1348 = vunpack.c.l.b16 %v1254
    %v1349 = vunpack.c.l.b16 %v1268
    %v1350 = vunpack.c.l.b16 %v1282
    %v1351 = vunpack.c.l.b16 %v1296
    %v1352 = vunpack.c.l.b16 %v1310
    %v1353 = vunpack.c.l.b16 %v1324
    %v1354 = vunpack.c.l.b16 %v1338
    %v1355 = vpack.c.b16 %v1340, %v1339
    %v1356 = vpack.c.b16 %v1342, %v1341
    %v1357 = vpack.c.b16 %v1344, %v1343
    %v1358 = vpack.c.b16 %v1346, %v1345
    %v1359 = vpack.c.b16 %v1348, %v1347
    %v1360 = vpack.c.b16 %v1350, %v1349
    %v1361 = vpack.c.b16 %v1352, %v1351
    %v1362 = vpack.c.b16 %v1354, %v1353
    %1371 = vst [vmem:[#allocation3 + $0x40] sm:$0xff] %v1355
    %1372 = vst [vmem:[#allocation3 + $0x88] sm:$0xff] %v1356
    %1373 = vst [vmem:[#allocation3 + $0xd0] sm:$0xff] %v1357
    %1374 = vst [vmem:[#allocation3 + $0x118] sm:$0xff] %v1358
    %1375 = vst [vmem:[#allocation3 + $0x160] sm:$0xff] %v1359
    %1376 = vst [vmem:[#allocation3 + $0x1a8] sm:$0xff] %v1360
    %1377 = vst [vmem:[#allocation3 + $0x1f0] sm:$0xff] %v1361
    %1378 = vst [vmem:[#allocation3 + $0x238] sm:$0xff] %v1362
    %v1379 = vld [vmem:[#allocation3] sm:$0xff]
    %v1380 = vld [vmem:[#allocation3 + $0x8] sm:$0xff]
    %v1381 = vld [vmem:[#allocation3 + $0x10] sm:$0xff]
    %v1382 = vld [vmem:[#allocation3 + $0x18] sm:$0xff]
    %v1383 = vld [vmem:[#allocation3 + $0x20] sm:$0xff]
    %v1384 = vld [vmem:[#allocation3 + $0x28] sm:$0xff]
    %v1385 = vld [vmem:[#allocation3 + $0x30] sm:$0xff]
    %v1386 = vld [vmem:[#allocation3 + $0x38] sm:$0xff]
    %v1387 = vld [vmem:[#allocation3 + $0x40] sm:$0xff]
    %v1388 = vld [vmem:[#allocation3 + $0x48] sm:$0xff]
    %v1389 = vld [vmem:[#allocation3 + $0x50] sm:$0xff]
    %v1390 = vld [vmem:[#allocation3 + $0x58] sm:$0xff]
    %v1391 = vld [vmem:[#allocation3 + $0x60] sm:$0xff]
    %v1392 = vld [vmem:[#allocation3 + $0x68] sm:$0xff]
    %v1393 = vld [vmem:[#allocation3 + $0x70] sm:$0xff]
    %v1394 = vld [vmem:[#allocation3 + $0x78] sm:$0xff]
    %v1395 = vld [vmem:[#allocation3 + $0x80] sm:$0xff]
    %v1396 = vld [vmem:[#allocation3 + $0x88] sm:$0xff]
    %v1397 = vld [vmem:[#allocation3 + $0x90] sm:$0xff]
    %v1398 = vld [vmem:[#allocation3 + $0x98] sm:$0xff]
    %v1399 = vld [vmem:[#allocation3 + $0xa0] sm:$0xff]
    %v1400 = vld [vmem:[#allocation3 + $0xa8] sm:$0xff]
    %v1401 = vld [vmem:[#allocation3 + $0xb0] sm:$0xff]
    %v1402 = vld [vmem:[#allocation3 + $0xb8] sm:$0xff]
    %v1403 = vld [vmem:[#allocation3 + $0xc0] sm:$0xff]
    %v1404 = vld [vmem:[#allocation3 + $0xc8] sm:$0xff]
    %v1405 = vld [vmem:[#allocation3 + $0xd0] sm:$0xff]
    %v1406 = vld [vmem:[#allocation3 + $0xd8] sm:$0xff]
    %v1407 = vld [vmem:[#allocation3 + $0xe0] sm:$0xff]
    %v1408 = vld [vmem:[#allocation3 + $0xe8] sm:$0xff]
    %v1409 = vld [vmem:[#allocation3 + $0xf0] sm:$0xff]
    %v1410 = vld [vmem:[#allocation3 + $0xf8] sm:$0xff]
    %v1411 = vld [vmem:[#allocation3 + $0x100] sm:$0xff]
    %v1412 = vld [vmem:[#allocation3 + $0x108] sm:$0xff]
    %v1413 = vld [vmem:[#allocation3 + $0x110] sm:$0xff]
    %v1414 = vld [vmem:[#allocation3 + $0x118] sm:$0xff]
    %v1415 = vld [vmem:[#allocation3 + $0x120] sm:$0xff]
    %v1416 = vld [vmem:[#allocation3 + $0x128] sm:$0xff]
    %v1417 = vld [vmem:[#allocation3 + $0x130] sm:$0xff]
    %v1418 = vld [vmem:[#allocation3 + $0x138] sm:$0xff]
    %v1419 = vld [vmem:[#allocation3 + $0x140] sm:$0xff]
    %v1420 = vld [vmem:[#allocation3 + $0x148] sm:$0xff]
    %v1421 = vld [vmem:[#allocation3 + $0x150] sm:$0xff]
    %v1422 = vld [vmem:[#allocation3 + $0x158] sm:$0xff]
    %v1423 = vld [vmem:[#allocation3 + $0x160] sm:$0xff]
    %v1424 = vld [vmem:[#allocation3 + $0x168] sm:$0xff]
    %v1425 = vld [vmem:[#allocation3 + $0x170] sm:$0xff]
    %v1426 = vld [vmem:[#allocation3 + $0x178] sm:$0xff]
    %v1427 = vld [vmem:[#allocation3 + $0x180] sm:$0xff]
    %v1428 = vld [vmem:[#allocation3 + $0x188] sm:$0xff]
    %v1429 = vld [vmem:[#allocation3 + $0x190] sm:$0xff]
    %v1430 = vld [vmem:[#allocation3 + $0x198] sm:$0xff]
    %v1431 = vld [vmem:[#allocation3 + $0x1a0] sm:$0xff]
    %v1432 = vld [vmem:[#allocation3 + $0x1a8] sm:$0xff]
    %v1433 = vld [vmem:[#allocation3 + $0x1b0] sm:$0xff]
    %v1434 = vld [vmem:[#allocation3 + $0x1b8] sm:$0xff]
    %v1435 = vld [vmem:[#allocation3 + $0x1c0] sm:$0xff]
    %v1436 = vld [vmem:[#allocation3 + $0x1c8] sm:$0xff]
    %v1437 = vld [vmem:[#allocation3 + $0x1d0] sm:$0xff]
    %v1438 = vld [vmem:[#allocation3 + $0x1d8] sm:$0xff]
    %v1439 = vld [vmem:[#allocation3 + $0x1e0] sm:$0xff]
    %v1440 = vld [vmem:[#allocation3 + $0x1e8] sm:$0xff]
    %v1441 = vld [vmem:[#allocation3 + $0x1f0] sm:$0xff]
    %v1442 = vld [vmem:[#allocation3 + $0x1f8] sm:$0xff]
    %v1443 = vld [vmem:[#allocation3 + $0x200] sm:$0xff]
    %v1444 = vld [vmem:[#allocation3 + $0x208] sm:$0xff]
    %v1445 = vld [vmem:[#allocation3 + $0x210] sm:$0xff]
    %v1446 = vld [vmem:[#allocation3 + $0x218] sm:$0xff]
    %v1447 = vld [vmem:[#allocation3 + $0x220] sm:$0xff]
    %v1448 = vld [vmem:[#allocation3 + $0x228] sm:$0xff]
    %v1449 = vld [vmem:[#allocation3 + $0x230] sm:$0xff]
    %v1450 = vld [vmem:[#allocation3 + $0x238] sm:$0xff]
    %v1451 = vld [vmem:[%s1] sm:$0xf]
    %v1452 = vld [vmem:[%s1 + $0x4] sm:$0xf]
    %v1453 = vld [vmem:[%s1 + $0x8] sm:$0xf]
    %v1454 = vld [vmem:[%s1 + $0xc] sm:$0xf]
    %v1455 = vld [vmem:[%s1 + $0x10] sm:$0xf]
    %v1456 = vld [vmem:[%s1 + $0x14] sm:$0xf]
    %v1457 = vld [vmem:[%s1 + $0x18] sm:$0xf]
    %v1458 = vld [vmem:[%s1 + $0x1c] sm:$0xf]
    %v1459 = vld [vmem:[%s1 + $0x20] sm:$0xf]
    %v1460 = vld [vmem:[%s1 + $0x24] sm:$0xf]
    %v1461 = vld [vmem:[%s1 + $0x28] sm:$0xf]
    %v1462 = vld [vmem:[%s1 + $0x2c] sm:$0xf]
    %v1463 = vld [vmem:[%s1 + $0x30] sm:$0xf]
    %v1464 = vld [vmem:[%s1 + $0x34] sm:$0xf]
    %v1465 = vld [vmem:[%s1 + $0x38] sm:$0xf]
    %v1466 = vld [vmem:[%s1 + $0x3c] sm:$0xf]
    %v1467 = vld [vmem:[%s1 + $0x40] sm:$0xf]
    %v1468 = vld [vmem:[%s1 + $0x44] sm:$0xf]
    %v1469 = vld [vmem:[%s1 + $0x48] sm:$0xf]
    %v1470 = vld [vmem:[%s1 + $0x4c] sm:$0xf]
    %v1471 = vld [vmem:[%s1 + $0x50] sm:$0xf]
    %v1472 = vld [vmem:[%s1 + $0x54] sm:$0xf]
    %v1473 = vld [vmem:[%s1 + $0x58] sm:$0xf]
    %v1474 = vld [vmem:[%s1 + $0x5c] sm:$0xf]
    %v1475 = vld [vmem:[%s1 + $0x60] sm:$0xf]
    %v1476 = vld [vmem:[%s1 + $0x64] sm:$0xf]
    %v1477 = vld [vmem:[%s1 + $0x68] sm:$0xf]
    %v1478 = vld [vmem:[%s1 + $0x6c] sm:$0xf]
    %v1479 = vld [vmem:[%s1 + $0x70] sm:$0xf]
    %v1480 = vld [vmem:[%s1 + $0x74] sm:$0xf]
    %v1481 = vld [vmem:[%s1 + $0x78] sm:$0xf]
    %v1482 = vld [vmem:[%s1 + $0x7c] sm:$0xf]
    %v1483 = vld [vmem:[%s1 + $0x80] sm:$0xf]
    %v1484 = vld [vmem:[%s1 + $0x84] sm:$0xf]
    %v1485 = vld [vmem:[%s1 + $0x88] sm:$0xf]
    %v1486 = vld [vmem:[%s1 + $0x8c] sm:$0xf]
    %v1487 = vld [vmem:[%s1 + $0x90] sm:$0xf]
    %v1488 = vld [vmem:[%s1 + $0x94] sm:$0xf]
    %v1489 = vld [vmem:[%s1 + $0x98] sm:$0xf]
    %v1490 = vld [vmem:[%s1 + $0x9c] sm:$0xf]
    %v1491 = vld [vmem:[%s1 + $0xa0] sm:$0xf]
    %v1492 = vld [vmem:[%s1 + $0xa4] sm:$0xf]
    %v1493 = vld [vmem:[%s1 + $0xa8] sm:$0xf]
    %v1494 = vld [vmem:[%s1 + $0xac] sm:$0xf]
    %v1495 = vld [vmem:[%s1 + $0xb0] sm:$0xf]
    %v1496 = vld [vmem:[%s1 + $0xb4] sm:$0xf]
    %v1497 = vld [vmem:[%s1 + $0xb8] sm:$0xf]
    %v1498 = vld [vmem:[%s1 + $0xbc] sm:$0xf]
    %v1499 = vld [vmem:[%s1 + $0xc0] sm:$0xf]
    %v1500 = vld [vmem:[%s1 + $0xc4] sm:$0xf]
    %v1501 = vld [vmem:[%s1 + $0xc8] sm:$0xf]
    %v1502 = vld [vmem:[%s1 + $0xcc] sm:$0xf]
    %v1503 = vld [vmem:[%s1 + $0xd0] sm:$0xf]
    %v1504 = vld [vmem:[%s1 + $0xd4] sm:$0xf]
    %v1505 = vld [vmem:[%s1 + $0xd8] sm:$0xf]
    %v1506 = vld [vmem:[%s1 + $0xdc] sm:$0xf]
    %v1507 = vld [vmem:[%s1 + $0xe0] sm:$0xf]
    %v1508 = vld [vmem:[%s1 + $0xe4] sm:$0xf]
    %v1509 = vld [vmem:[%s1 + $0xe8] sm:$0xf]
    %v1510 = vld [vmem:[%s1 + $0xec] sm:$0xf]
    %v1511 = vld [vmem:[%s1 + $0xf0] sm:$0xf]
    %v1512 = vld [vmem:[%s1 + $0xf4] sm:$0xf]
    %v1513 = vld [vmem:[%s1 + $0xf8] sm:$0xf]
    %v1514 = vld [vmem:[%s1 + $0xfc] sm:$0xf]
    %v1515 = vld [vmem:[%s1 + $0x100] sm:$0xf]
    %v1516 = vld [vmem:[%s1 + $0x104] sm:$0xf]
    %v1517 = vld [vmem:[%s1 + $0x108] sm:$0xf]
    %v1518 = vld [vmem:[%s1 + $0x10c] sm:$0xf]
    %v1519 = vld [vmem:[%s1 + $0x110] sm:$0xf]
    %v1520 = vld [vmem:[%s1 + $0x114] sm:$0xf]
    %v1521 = vld [vmem:[%s1 + $0x118] sm:$0xf]
    %v1522 = vld [vmem:[%s1 + $0x11c] sm:$0xf]
    %v1523 = vld [vmem:[%s1 + $0x120] sm:$0xf]
    %v1524 = vld [vmem:[%s1 + $0x124] sm:$0xf]
    %v1525 = vld [vmem:[%s1 + $0x128] sm:$0xf]
    %v1526 = vld [vmem:[%s1 + $0x12c] sm:$0xf]
    %v1527 = vld [vmem:[%s1 + $0x130] sm:$0xf]
    %v1528 = vld [vmem:[%s1 + $0x134] sm:$0xf]
    %v1529 = vld [vmem:[%s1 + $0x138] sm:$0xf]
    %v1530 = vld [vmem:[%s1 + $0x13c] sm:$0xf]
    %v1531 = vld [vmem:[%s1 + $0x140] sm:$0xf]
    %v1532 = vld [vmem:[%s1 + $0x144] sm:$0xf]
    %v1533 = vld [vmem:[%s1 + $0x148] sm:$0xf]
    %v1534 = vld [vmem:[%s1 + $0x14c] sm:$0xf]
    %v1535 = vld [vmem:[%s1 + $0x150] sm:$0xf]
    %v1536 = vld [vmem:[%s1 + $0x154] sm:$0xf]
    %v1537 = vld [vmem:[%s1 + $0x158] sm:$0xf]
    %v1538 = vld [vmem:[%s1 + $0x15c] sm:$0xf]
    %v1539 = vld [vmem:[%s1 + $0x160] sm:$0xf]
    %v1540 = vld [vmem:[%s1 + $0x164] sm:$0xf]
    %v1541 = vld [vmem:[%s1 + $0x168] sm:$0xf]
    %v1542 = vld [vmem:[%s1 + $0x16c] sm:$0xf]
    %v1543 = vld [vmem:[%s1 + $0x170] sm:$0xf]
    %v1544 = vld [vmem:[%s1 + $0x174] sm:$0xf]
    %v1545 = vld [vmem:[%s1 + $0x178] sm:$0xf]
    %v1546 = vld [vmem:[%s1 + $0x17c] sm:$0xf]
    %v1547 = vld [vmem:[%s1 + $0x180] sm:$0xf]
    %v1548 = vld [vmem:[%s1 + $0x184] sm:$0xf]
    %v1549 = vld [vmem:[%s1 + $0x188] sm:$0xf]
    %v1550 = vld [vmem:[%s1 + $0x18c] sm:$0xf]
    %v1551 = vld [vmem:[%s1 + $0x190] sm:$0xf]
    %v1552 = vld [vmem:[%s1 + $0x194] sm:$0xf]
    %v1553 = vld [vmem:[%s1 + $0x198] sm:$0xf]
    %v1554 = vld [vmem:[%s1 + $0x19c] sm:$0xf]
    %v1555 = vld [vmem:[%s1 + $0x1a0] sm:$0xf]
    %v1556 = vld [vmem:[%s1 + $0x1a4] sm:$0xf]
    %v1557 = vld [vmem:[%s1 + $0x1a8] sm:$0xf]
    %v1558 = vld [vmem:[%s1 + $0x1ac] sm:$0xf]
    %v1559 = vld [vmem:[%s1 + $0x1b0] sm:$0xf]
    %v1560 = vld [vmem:[%s1 + $0x1b4] sm:$0xf]
    %v1561 = vld [vmem:[%s1 + $0x1b8] sm:$0xf]
    %v1562 = vld [vmem:[%s1 + $0x1bc] sm:$0xf]
    %v1563 = vld [vmem:[%s1 + $0x1c0] sm:$0xf]
    %v1564 = vld [vmem:[%s1 + $0x1c4] sm:$0xf]
    %v1565 = vld [vmem:[%s1 + $0x1c8] sm:$0xf]
    %v1566 = vld [vmem:[%s1 + $0x1cc] sm:$0xf]
    %v1567 = vld [vmem:[%s1 + $0x1d0] sm:$0xf]
    %v1568 = vld [vmem:[%s1 + $0x1d4] sm:$0xf]
    %v1569 = vld [vmem:[%s1 + $0x1d8] sm:$0xf]
    %v1570 = vld [vmem:[%s1 + $0x1dc] sm:$0xf]
    %v1571 = vld [vmem:[%s1 + $0x1e0] sm:$0xf]
    %v1572 = vld [vmem:[%s1 + $0x1e4] sm:$0xf]
    %v1573 = vld [vmem:[%s1 + $0x1e8] sm:$0xf]
    %v1574 = vld [vmem:[%s1 + $0x1ec] sm:$0xf]
    %v1575 = vld [vmem:[%s1 + $0x1f0] sm:$0xf]
    %v1576 = vld [vmem:[%s1 + $0x1f4] sm:$0xf]
    %v1577 = vld [vmem:[%s1 + $0x1f8] sm:$0xf]
    %v1578 = vld [vmem:[%s1 + $0x1fc] sm:$0xf]
    %v1579 = vld [vmem:[%s1 + $0x200] sm:$0xf]
    %v1580 = vld [vmem:[%s1 + $0x204] sm:$0xf]
    %v1581 = vld [vmem:[%s1 + $0x208] sm:$0xf]
    %v1582 = vld [vmem:[%s1 + $0x20c] sm:$0xf]
    %v1583 = vld [vmem:[%s1 + $0x210] sm:$0xf]
    %v1584 = vld [vmem:[%s1 + $0x214] sm:$0xf]
    %v1585 = vld [vmem:[%s1 + $0x218] sm:$0xf]
    %v1586 = vld [vmem:[%s1 + $0x21c] sm:$0xf]
    %v1587 = vld [vmem:[%s1 + $0x220] sm:$0xf]
    %v1588 = vld [vmem:[%s1 + $0x224] sm:$0xf]
    %v1589 = vld [vmem:[%s1 + $0x228] sm:$0xf]
    %v1590 = vld [vmem:[%s1 + $0x22c] sm:$0xf]
    %v1591 = vld [vmem:[%s1 + $0x230] sm:$0xf]
    %v1592 = vld [vmem:[%s1 + $0x234] sm:$0xf]
    %v1593 = vld [vmem:[%s1 + $0x238] sm:$0xf]
    %v1594 = vld [vmem:[%s1 + $0x23c] sm:$0xf]
    %v1739 = vunpack.c.l.b16 %v1451
    %v1740 = vunpack.c.l.b16 %v1452
    %v1741 = vunpack.c.l.b16 %v1453
    %v1742 = vunpack.c.l.b16 %v1454
    %v1743 = vunpack.c.l.b16 %v1455
    %v1744 = vunpack.c.l.b16 %v1456
    %v1745 = vunpack.c.l.b16 %v1457
    %v1746 = vunpack.c.l.b16 %v1458
    %v1747 = vunpack.c.l.b16 %v1459
    %v1748 = vunpack.c.l.b16 %v1460
    %v1749 = vunpack.c.l.b16 %v1461
    %v1750 = vunpack.c.l.b16 %v1462
    %v1751 = vunpack.c.l.b16 %v1463
    %v1752 = vunpack.c.l.b16 %v1464
    %v1753 = vunpack.c.l.b16 %v1465
    %v1754 = vunpack.c.l.b16 %v1466
    %v1755 = vunpack.c.l.b16 %v1467
    %v1756 = vunpack.c.l.b16 %v1468
    %v1757 = vunpack.c.l.b16 %v1469
    %v1758 = vunpack.c.l.b16 %v1470
    %v1759 = vunpack.c.l.b16 %v1471
    %v1760 = vunpack.c.l.b16 %v1472
    %v1761 = vunpack.c.l.b16 %v1473
    %v1762 = vunpack.c.l.b16 %v1474
    %v1763 = vunpack.c.l.b16 %v1475
    %v1764 = vunpack.c.l.b16 %v1476
    %v1765 = vunpack.c.l.b16 %v1477
    %v1766 = vunpack.c.l.b16 %v1478
    %v1767 = vunpack.c.l.b16 %v1479
    %v1768 = vunpack.c.l.b16 %v1480
    %v1769 = vunpack.c.l.b16 %v1481
    %v1770 = vunpack.c.l.b16 %v1482
    %v1771 = vunpack.c.l.b16 %v1483
    %v1772 = vunpack.c.l.b16 %v1484
    %v1773 = vunpack.c.l.b16 %v1485
    %v1774 = vunpack.c.l.b16 %v1486
    %v1775 = vunpack.c.l.b16 %v1487
    %v1776 = vunpack.c.l.b16 %v1488
    %v1777 = vunpack.c.l.b16 %v1489
    %v1778 = vunpack.c.l.b16 %v1490
    %v1779 = vunpack.c.l.b16 %v1491
    %v1780 = vunpack.c.l.b16 %v1492
    %v1781 = vunpack.c.l.b16 %v1493
    %v1782 = vunpack.c.l.b16 %v1494
    %v1783 = vunpack.c.l.b16 %v1495
    %v1784 = vunpack.c.l.b16 %v1496
    %v1785 = vunpack.c.l.b16 %v1497
    %v1786 = vunpack.c.l.b16 %v1498
    %v1787 = vunpack.c.l.b16 %v1499
    %v1788 = vunpack.c.l.b16 %v1500
    %v1789 = vunpack.c.l.b16 %v1501
    %v1790 = vunpack.c.l.b16 %v1502
    %v1791 = vunpack.c.l.b16 %v1503
    %v1792 = vunpack.c.l.b16 %v1504
    %v1793 = vunpack.c.l.b16 %v1505
    %v1794 = vunpack.c.l.b16 %v1506
    %v1795 = vunpack.c.l.b16 %v1507
    %v1796 = vunpack.c.l.b16 %v1508
    %v1797 = vunpack.c.l.b16 %v1509
    %v1798 = vunpack.c.l.b16 %v1510
    %v1799 = vunpack.c.l.b16 %v1511
    %v1800 = vunpack.c.l.b16 %v1512
    %v1801 = vunpack.c.l.b16 %v1513
    %v1802 = vunpack.c.l.b16 %v1514
    %v1803 = vunpack.c.l.b16 %v1515
    %v1804 = vunpack.c.l.b16 %v1516
    %v1805 = vunpack.c.l.b16 %v1517
    %v1806 = vunpack.c.l.b16 %v1518
    %v1807 = vunpack.c.l.b16 %v1519
    %v1808 = vunpack.c.l.b16 %v1520
    %v1809 = vunpack.c.l.b16 %v1521
    %v1810 = vunpack.c.l.b16 %v1522
    %v1811 = vunpack.c.l.b16 %v1523
    %v1812 = vunpack.c.l.b16 %v1524
    %v1813 = vunpack.c.l.b16 %v1525
    %v1814 = vunpack.c.l.b16 %v1526
    %v1815 = vunpack.c.l.b16 %v1527
    %v1816 = vunpack.c.l.b16 %v1528
    %v1817 = vunpack.c.l.b16 %v1529
    %v1818 = vunpack.c.l.b16 %v1530
    %v1819 = vunpack.c.l.b16 %v1531
    %v1820 = vunpack.c.l.b16 %v1532
    %v1821 = vunpack.c.l.b16 %v1533
    %v1822 = vunpack.c.l.b16 %v1534
    %v1823 = vunpack.c.l.b16 %v1535
    %v1824 = vunpack.c.l.b16 %v1536
    %v1825 = vunpack.c.l.b16 %v1537
    %v1826 = vunpack.c.l.b16 %v1538
    %v1827 = vunpack.c.l.b16 %v1539
    %v1828 = vunpack.c.l.b16 %v1540
    %v1829 = vunpack.c.l.b16 %v1541
    %v1830 = vunpack.c.l.b16 %v1542
    %v1831 = vunpack.c.l.b16 %v1543
    %v1832 = vunpack.c.l.b16 %v1544
    %v1833 = vunpack.c.l.b16 %v1545
    %v1834 = vunpack.c.l.b16 %v1546
    %v1835 = vunpack.c.l.b16 %v1547
    %v1836 = vunpack.c.l.b16 %v1548
    %v1837 = vunpack.c.l.b16 %v1549
    %v1838 = vunpack.c.l.b16 %v1550
    %v1839 = vunpack.c.l.b16 %v1551
    %v1840 = vunpack.c.l.b16 %v1552
    %v1841 = vunpack.c.l.b16 %v1553
    %v1842 = vunpack.c.l.b16 %v1554
    %v1843 = vunpack.c.l.b16 %v1555
    %v1844 = vunpack.c.l.b16 %v1556
    %v1845 = vunpack.c.l.b16 %v1557
    %v1846 = vunpack.c.l.b16 %v1558
    %v1847 = vunpack.c.l.b16 %v1559
    %v1848 = vunpack.c.l.b16 %v1560
    %v1849 = vunpack.c.l.b16 %v1561
    %v1850 = vunpack.c.l.b16 %v1562
    %v1851 = vunpack.c.l.b16 %v1563
    %v1852 = vunpack.c.l.b16 %v1564
    %v1853 = vunpack.c.l.b16 %v1565
    %v1854 = vunpack.c.l.b16 %v1566
    %v1855 = vunpack.c.l.b16 %v1567
    %v1856 = vunpack.c.l.b16 %v1568
    %v1857 = vunpack.c.l.b16 %v1569
    %v1858 = vunpack.c.l.b16 %v1570
    %v1859 = vunpack.c.l.b16 %v1571
    %v1860 = vunpack.c.l.b16 %v1572
    %v1861 = vunpack.c.l.b16 %v1573
    %v1862 = vunpack.c.l.b16 %v1574
    %v1863 = vunpack.c.l.b16 %v1575
    %v1864 = vunpack.c.l.b16 %v1576
    %v1865 = vunpack.c.l.b16 %v1577
    %v1866 = vunpack.c.l.b16 %v1578
    %v1867 = vunpack.c.l.b16 %v1579
    %v1868 = vunpack.c.l.b16 %v1580
    %v1869 = vunpack.c.l.b16 %v1581
    %v1870 = vunpack.c.l.b16 %v1582
    %v1871 = vunpack.c.l.b16 %v1583
    %v1872 = vunpack.c.l.b16 %v1584
    %v1873 = vunpack.c.l.b16 %v1585
    %v1874 = vunpack.c.l.b16 %v1586
    %v1875 = vunpack.c.l.b16 %v1587
    %v1876 = vunpack.c.l.b16 %v1588
    %v1877 = vunpack.c.l.b16 %v1589
    %v1878 = vunpack.c.l.b16 %v1590
    %v1879 = vunpack.c.l.b16 %v1591
    %v1880 = vunpack.c.l.b16 %v1592
    %v1881 = vunpack.c.l.b16 %v1593
    %v1882 = vunpack.c.l.b16 %v1594
    %v1883 = vpack.c.b16 %v1740, %v1739
    %v1884 = vpack.c.b16 %v1742, %v1741
    %v1885 = vpack.c.b16 %v1744, %v1743
    %v1886 = vpack.c.b16 %v1746, %v1745
    %v1887 = vpack.c.b16 %v1748, %v1747
    %v1888 = vpack.c.b16 %v1750, %v1749
    %v1889 = vpack.c.b16 %v1752, %v1751
    %v1890 = vpack.c.b16 %v1754, %v1753
    %v1891 = vpack.c.b16 %v1756, %v1755
    %v1892 = vpack.c.b16 %v1758, %v1757
    %v1893 = vpack.c.b16 %v1760, %v1759
    %v1894 = vpack.c.b16 %v1762, %v1761
    %v1895 = vpack.c.b16 %v1764, %v1763
    %v1896 = vpack.c.b16 %v1766, %v1765
    %v1897 = vpack.c.b16 %v1768, %v1767
    %v1898 = vpack.c.b16 %v1770, %v1769
    %v1899 = vpack.c.b16 %v1772, %v1771
    %v1900 = vpack.c.b16 %v1774, %v1773
    %v1901 = vpack.c.b16 %v1776, %v1775
    %v1902 = vpack.c.b16 %v1778, %v1777
    %v1903 = vpack.c.b16 %v1780, %v1779
    %v1904 = vpack.c.b16 %v1782, %v1781
    %v1905 = vpack.c.b16 %v1784, %v1783
    %v1906 = vpack.c.b16 %v1786, %v1785
    %v1907 = vpack.c.b16 %v1788, %v1787
    %v1908 = vpack.c.b16 %v1790, %v1789
    %v1909 = vpack.c.b16 %v1792, %v1791
    %v1910 = vpack.c.b16 %v1794, %v1793
    %v1911 = vpack.c.b16 %v1796, %v1795
    %v1912 = vpack.c.b16 %v1798, %v1797
    %v1913 = vpack.c.b16 %v1800, %v1799
    %v1914 = vpack.c.b16 %v1802, %v1801
    %v1915 = vpack.c.b16 %v1804, %v1803
    %v1916 = vpack.c.b16 %v1806, %v1805
    %v1917 = vpack.c.b16 %v1808, %v1807
    %v1918 = vpack.c.b16 %v1810, %v1809
    %v1919 = vpack.c.b16 %v1812, %v1811
    %v1920 = vpack.c.b16 %v1814, %v1813
    %v1921 = vpack.c.b16 %v1816, %v1815
    %v1922 = vpack.c.b16 %v1818, %v1817
    %v1923 = vpack.c.b16 %v1820, %v1819
    %v1924 = vpack.c.b16 %v1822, %v1821
    %v1925 = vpack.c.b16 %v1824, %v1823
    %v1926 = vpack.c.b16 %v1826, %v1825
    %v1927 = vpack.c.b16 %v1828, %v1827
    %v1928 = vpack.c.b16 %v1830, %v1829
    %v1929 = vpack.c.b16 %v1832, %v1831
    %v1930 = vpack.c.b16 %v1834, %v1833
    %v1931 = vpack.c.b16 %v1836, %v1835
    %v1932 = vpack.c.b16 %v1838, %v1837
    %v1933 = vpack.c.b16 %v1840, %v1839
    %v1934 = vpack.c.b16 %v1842, %v1841
    %v1935 = vpack.c.b16 %v1844, %v1843
    %v1936 = vpack.c.b16 %v1846, %v1845
    %v1937 = vpack.c.b16 %v1848, %v1847
    %v1938 = vpack.c.b16 %v1850, %v1849
    %v1939 = vpack.c.b16 %v1852, %v1851
    %v1940 = vpack.c.b16 %v1854, %v1853
    %v1941 = vpack.c.b16 %v1856, %v1855
    %v1942 = vpack.c.b16 %v1858, %v1857
    %v1943 = vpack.c.b16 %v1860, %v1859
    %v1944 = vpack.c.b16 %v1862, %v1861
    %v1945 = vpack.c.b16 %v1864, %v1863
    %v1946 = vpack.c.b16 %v1866, %v1865
    %v1947 = vpack.c.b16 %v1868, %v1867
    %v1948 = vpack.c.b16 %v1870, %v1869
    %v1949 = vpack.c.b16 %v1872, %v1871
    %v1950 = vpack.c.b16 %v1874, %v1873
    %v1951 = vpack.c.b16 %v1876, %v1875
    %v1952 = vpack.c.b16 %v1878, %v1877
    %v1953 = vpack.c.b16 %v1880, %v1879
    %v1954 = vpack.c.b16 %v1882, %v1881
    %2027 = vmatprep.subr.bf16.mxu0 0
    %2028 = vmatpush1.bf16.msra.mxu0 %v1883
    %2029 = vmatprep.subr.bf16.mxu0 0
    %2030 = vmatpush1.bf16.msra.mxu0 %v1884
    %2031 = vmatprep.subr.bf16.mxu0 0
    %2032 = vmatpush1.bf16.msra.mxu0 %v1885
    %2033 = vmatprep.subr.bf16.mxu0 0
    %2034 = vmatpush1.bf16.msra.mxu0 %v1886
    %2035 = vmatprep.subr.bf16.mxu0 0
    %2036 = vmatpush1.bf16.msra.mxu0 %v1887
    %2037 = vmatprep.subr.bf16.mxu0 0
    %2038 = vmatpush1.bf16.msra.mxu0 %v1888
    %2039 = vmatprep.subr.bf16.mxu0 0
    %2040 = vmatpush1.bf16.msra.mxu0 %v1889
    %2041 = vmatprep.subr.bf16.mxu0 0
    %2042 = vmatpush1.bf16.msra.mxu0 %v1890
    %2043 = vmatprep.subr.bf16.mxu0 0
    %2044 = vmatpush1.bf16.msra.mxu0 %v1891
    %2045 = vmatprep.subr.bf16.mxu0 0
    %2046 = vmatpush1.bf16.msra.mxu0 %v1892
    %2047 = vmatprep.subr.bf16.mxu0 0
    %2048 = vmatpush1.bf16.msra.mxu0 %v1893
    %2049 = vmatprep.subr.bf16.mxu0 0
    %2050 = vmatpush1.bf16.msra.mxu0 %v1894
    %2051 = vmatprep.subr.bf16.mxu0 0
    %2052 = vmatpush1.bf16.msra.mxu0 %v1895
    %2053 = vmatprep.subr.bf16.mxu0 0
    %2054 = vmatpush1.bf16.msra.mxu0 %v1896
    %2055 = vmatprep.subr.bf16.mxu0 0
    %2056 = vmatpush1.bf16.msra.mxu0 %v1897
    %2057 = vmatprep.subr.bf16.mxu0 0
    %2058 = vmatpush1.bf16.msra.mxu0 %v1898
    %2059 = vmatprep.mubr.bf16.mxu0 %v1380
    %2060 = vmatmul.mubr.bf16.gmra.mrb[0].mxu0 %v1379
    %v2061 = vpop.f32.mrb[0].mxu0
    %v2062 = vadd.f32 0.0, %v2061
    %v2063 = vpop.f32.mrb[0].mxu0
    %v2064 = vpop.f32.mrb[0].mxu0
    %v2065 = vadd.f32 0.0, %v2064
    %v2066 = vpop.f32.mrb[0].mxu0
    %2067 = vmatprep.mubr.bf16.mxu0 %v1389
    %2068 = vmatmul.mubr.bf16.gmra.mrb[0].mxu0 %v1388
    %v2069 = vpop.f32.mrb[0].mxu0
    %v2070 = vadd.f32 0.0, %v2069
    %v2071 = vpop.f32.mrb[0].mxu0
    %v2072 = vpop.f32.mrb[0].mxu0
    %v2073 = vadd.f32 0.0, %v2072
    %v2074 = vpop.f32.mrb[0].mxu0
    %2075 = vmatprep.mubr.bf16.mxu0 %v1398
    %2076 = vmatmul.mubr.bf16.gmra.mrb[0].mxu0 %v1397
    %v2077 = vpop.f32.mrb[0].mxu0
    %v2078 = vadd.f32 0.0, %v2077
    %v2079 = vpop.f32.mrb[0].mxu0
    %v2080 = vpop.f32.mrb[0].mxu0
    %v2081 = vadd.f32 0.0, %v2080
    %v2082 = vpop.f32.mrb[0].mxu0
    %2083 = vmatprep.mubr.bf16.mxu0 %v1407
    %2084 = vmatmul.mubr.bf16.gmra.mrb[0].mxu0 %v1406
    %v2085 = vpop.f32.mrb[0].mxu0
    %v2086 = vadd.f32 0.0, %v2085
    %v2087 = vpop.f32.mrb[0].mxu0
    %v2088 = vpop.f32.mrb[0].mxu0
    %v2089 = vadd.f32 0.0, %v2088
    %v2090 = vpop.f32.mrb[0].mxu0
    %2091 = vmatprep.mubr.bf16.mxu0 %v1416
    %2092 = vmatmul.mubr.bf16.gmra.mrb[0].mxu0 %v1415
    %v2093 = vpop.f32.mrb[0].mxu0
    %v2094 = vadd.f32 0.0, %v2093
    %v2095 = vpop.f32.mrb[0].mxu0
    %v2096 = vpop.f32.mrb[0].mxu0
    %v2097 = vadd.f32 0.0, %v2096
    %v2098 = vpop.f32.mrb[0].mxu0
    %2099 = vmatprep.mubr.bf16.mxu0 %v1425
    %2100 = vmatmul.mubr.bf16.gmra.mrb[0].mxu0 %v1424
    %v2101 = vpop.f32.mrb[0].mxu0
    %v2102 = vadd.f32 0.0, %v2101
    %v2103 = vpop.f32.mrb[0].mxu0
    %v2104 = vpop.f32.mrb[0].mxu0
    %v2105 = vadd.f32 0.0, %v2104
    %v2106 = vpop.f32.mrb[0].mxu0
    %2107 = vmatprep.mubr.bf16.mxu0 %v1434
    %2108 = vmatmul.mubr.bf16.gmra.mrb[0].mxu0 %v1433
    %v2109 = vpop.f32.mrb[0].mxu0
    %v2110 = vadd.f32 0.0, %v2109
    %v2111 = vpop.f32.mrb[0].mxu0
    %v2112 = vpop.f32.mrb[0].mxu0
    %v2113 = vadd.f32 0.0, %v2112
    %v2114 = vpop.f32.mrb[0].mxu0
    %2115 = vmatprep.mubr.bf16.mxu0 %v1443
    %2116 = vmatmul.mubr.bf16.gmra.mrb[0].mxu0 %v1442
    %v2117 = vpop.f32.mrb[0].mxu0
    %v2118 = vadd.f32 0.0, %v2117
    %v2119 = vpop.f32.mrb[0].mxu0
    %v2120 = vpop.f32.mrb[0].mxu0
    %v2121 = vadd.f32 0.0, %v2120
    %v2122 = vpop.f32.mrb[0].mxu0
    %2123 = vdwg.mxu0
    %2124 = vmatprep.subr.bf16.mxu0 0
    %2125 = vmatpush1.bf16.msra.mxu0 %v1899
    %2126 = vmatprep.subr.bf16.mxu0 0
    %2127 = vmatpush1.bf16.msra.mxu0 %v1900
    %2128 = vmatprep.subr.bf16.mxu0 0
    %2129 = vmatpush1.bf16.msra.mxu0 %v1901
    %2130 = vmatprep.subr.bf16.mxu0 0
    %2131 = vmatpush1.bf16.msra.mxu0 %v1902
    %2132 = vmatprep.subr.bf16.mxu0 0
    %2133 = vmatpush1.bf16.msra.mxu0 %v1903
    %2134 = vmatprep.subr.bf16.mxu0 0
    %2135 = vmatpush1.bf16.msra.mxu0 %v1904
    %2136 = vmatprep.subr.bf16.mxu0 0
    %2137 = vmatpush1.bf16.msra.mxu0 %v1905
    %2138 = vmatprep.subr.bf16.mxu0 0
    %2139 = vmatpush1.bf16.msra.mxu0 %v1906
    %2140 = vmatprep.subr.bf16.mxu0 0
    %2141 = vmatpush1.bf16.msra.mxu0 %v1907
    %2142 = vmatprep.subr.bf16.mxu0 0
    %2143 = vmatpush1.bf16.msra.mxu0 %v1908
    %2144 = vmatprep.subr.bf16.mxu0 0
    %2145 = vmatpush1.bf16.msra.mxu0 %v1909
    %2146 = vmatprep.subr.bf16.mxu0 0
    %2147 = vmatpush1.bf16.msra.mxu0 %v1910
    %2148 = vmatprep.subr.bf16.mxu0 0
    %2149 = vmatpush1.bf16.msra.mxu0 %v1911
    %2150 = vmatprep.subr.bf16.mxu0 0
    %2151 = vmatpush1.bf16.msra.mxu0 %v1912
    %2152 = vmatprep.subr.bf16.mxu0 0
    %2153 = vmatpush1.bf16.msra.mxu0 %v1913
    %2154 = vmatprep.subr.bf16.mxu0 0
    %2155 = vmatpush1.bf16.msra.mxu0 %v1914
    %2156 = vmatprep.mubr.bf16.mxu0 %v1382
    %2157 = vmatmul.mubr.bf16.gmra.mrb[0].mxu0 %v1381
    %v2158 = vpop.f32.mrb[0].mxu0
    %v2159 = vadd.f32 %v2062, %v2158
    %v2160 = vpop.f32.mrb[0].mxu0
    %v2161 = vpop.f32.mrb[0].mxu0
    %v2162 = vadd.f32 %v2065, %v2161
    %v2163 = vpop.f32.mrb[0].mxu0
    %2164 = vmatprep.mubr.bf16.mxu0 %v1391
    %2165 = vmatmul.mubr.bf16.gmra.mrb[0].mxu0 %v1390
    %v2166 = vpop.f32.mrb[0].mxu0
    %v2167 = vadd.f32 %v2070, %v2166
    %v2168 = vpop.f32.mrb[0].mxu0
    %v2169 = vpop.f32.mrb[0].mxu0
    %v2170 = vadd.f32 %v2073, %v2169
    %v2171 = vpop.f32.mrb[0].mxu0
    %2172 = vmatprep.mubr.bf16.mxu0 %v1400
    %2173 = vmatmul.mubr.bf16.gmra.mrb[0].mxu0 %v1399
    %v2174 = vpop.f32.mrb[0].mxu0
    %v2175 = vadd.f32 %v2078, %v2174
    %v2176 = vpop.f32.mrb[0].mxu0
    %v2177 = vpop.f32.mrb[0].mxu0
    %v2178 = vadd.f32 %v2081, %v2177
    %v2179 = vpop.f32.mrb[0].mxu0
    %2180 = vmatprep.mubr.bf16.mxu0 %v1409
    %2181 = vmatmul.mubr.bf16.gmra.mrb[0].mxu0 %v1408
    %v2182 = vpop.f32.mrb[0].mxu0
    %v2183 = vadd.f32 %v2086, %v2182
    %v2184 = vpop.f32.mrb[0].mxu0
    %v2185 = vpop.f32.mrb[0].mxu0
    %v2186 = vadd.f32 %v2089, %v2185
    %v2187 = vpop.f32.mrb[0].mxu0
    %2188 = vmatprep.mubr.bf16.mxu0 %v1418
    %2189 = vmatmul.mubr.bf16.gmra.mrb[0].mxu0 %v1417
    %v2190 = vpop.f32.mrb[0].mxu0
    %v2191 = vadd.f32 %v2094, %v2190
    %v2192 = vpop.f32.mrb[0].mxu0
    %v2193 = vpop.f32.mrb[0].mxu0
    %v2194 = vadd.f32 %v2097, %v2193
    %v2195 = vpop.f32.mrb[0].mxu0
    %2196 = vmatprep.mubr.bf16.mxu0 %v1427
    %2197 = vmatmul.mubr.bf16.gmra.mrb[0].mxu0 %v1426
    %v2198 = vpop.f32.mrb[0].mxu0
    %v2199 = vadd.f32 %v2102, %v2198
    %v2200 = vpop.f32.mrb[0].mxu0
    %v2201 = vpop.f32.mrb[0].mxu0
    %v2202 = vadd.f32 %v2105, %v2201
    %v2203 = vpop.f32.mrb[0].mxu0
    %2204 = vmatprep.mubr.bf16.mxu0 %v1436
    %2205 = vmatmul.mubr.bf16.gmra.mrb[0].mxu0 %v1435
    %v2206 = vpop.f32.mrb[0].mxu0
    %v2207 = vadd.f32 %v2110, %v2206
    %v2208 = vpop.f32.mrb[0].mxu0
    %v2209 = vpop.f32.mrb[0].mxu0
    %v2210 = vadd.f32 %v2113, %v2209
    %v2211 = vpop.f32.mrb[0].mxu0
    %2212 = vmatprep.mubr.bf16.mxu0 %v1445
    %2213 = vmatmul.mubr.bf16.gmra.mrb[0].mxu0 %v1444
    %v2214 = vpop.f32.mrb[0].mxu0
    %v2215 = vadd.f32 %v2118, %v2214
    %v2216 = vpop.f32.mrb[0].mxu0
    %v2217 = vpop.f32.mrb[0].mxu0
    %v2218 = vadd.f32 %v2121, %v2217
    %v2219 = vpop.f32.mrb[0].mxu0
    %2220 = vdwg.mxu0
    %2221 = vmatprep.subr.bf16.mxu0 0
    %2222 = vmatpush1.bf16.msra.mxu0 %v1915
    %2223 = vmatprep.subr.bf16.mxu0 0
    %2224 = vmatpush1.bf16.msra.mxu0 %v1916
    %2225 = vmatprep.subr.bf16.mxu0 0
    %2226 = vmatpush1.bf16.msra.mxu0 %v1917
    %2227 = vmatprep.subr.bf16.mxu0 0
    %2228 = vmatpush1.bf16.msra.mxu0 %v1918
    %2229 = vmatprep.subr.bf16.mxu0 0
    %2230 = vmatpush1.bf16.msra.mxu0 %v1919
    %2231 = vmatprep.subr.bf16.mxu0 0
    %2232 = vmatpush1.bf16.msra.mxu0 %v1920
    %2233 = vmatprep.subr.bf16.mxu0 0
    %2234 = vmatpush1.bf16.msra.mxu0 %v1921
    %2235 = vmatprep.subr.bf16.mxu0 0
    %2236 = vmatpush1.bf16.msra.mxu0 %v1922
    %2237 = vmatprep.subr.bf16.mxu0 0
    %2238 = vmatpush1.bf16.msra.mxu0 %v1923
    %2239 = vmatprep.subr.bf16.mxu0 0
    %2240 = vmatpush1.bf16.msra.mxu0 %v1924
    %2241 = vmatprep.subr.bf16.mxu0 0
    %2242 = vmatpush1.bf16.msra.mxu0 %v1925
    %2243 = vmatprep.subr.bf16.mxu0 0
    %2244 = vmatpush1.bf16.msra.mxu0 %v1926
    %2245 = vmatprep.subr.bf16.mxu0 0
    %2246 = vmatpush1.bf16.msra.mxu0 %v1927
    %2247 = vmatprep.subr.bf16.mxu0 0
    %2248 = vmatpush1.bf16.msra.mxu0 %v1928
    %2249 = vmatprep.subr.bf16.mxu0 0
    %2250 = vmatpush1.bf16.msra.mxu0 %v1929
    %2251 = vmatprep.subr.bf16.mxu0 0
    %2252 = vmatpush1.bf16.msra.mxu0 %v1930
    %2253 = vmatprep.mubr.bf16.mxu0 %v1384
    %2254 = vmatmul.mubr.bf16.gmra.mrb[0].mxu0 %v1383
    %v2255 = vpop.f32.mrb[0].mxu0
    %v2256 = vadd.f32 %v2159, %v2255
    %v2257 = vpop.f32.mrb[0].mxu0
    %v2258 = vpop.f32.mrb[0].mxu0
    %v2259 = vadd.f32 %v2162, %v2258
    %v2260 = vpop.f32.mrb[0].mxu0
    %2261 = vmatprep.mubr.bf16.mxu0 %v1393
    %2262 = vmatmul.mubr.bf16.gmra.mrb[0].mxu0 %v1392
    %v2263 = vpop.f32.mrb[0].mxu0
    %v2264 = vadd.f32 %v2167, %v2263
    %v2265 = vpop.f32.mrb[0].mxu0
    %v2266 = vpop.f32.mrb[0].mxu0
    %v2267 = vadd.f32 %v2170, %v2266
    %v2268 = vpop.f32.mrb[0].mxu0
    %2269 = vmatprep.mubr.bf16.mxu0 %v1402
    %2270 = vmatmul.mubr.bf16.gmra.mrb[0].mxu0 %v1401
    %v2271 = vpop.f32.mrb[0].mxu0
    %v2272 = vadd.f32 %v2175, %v2271
    %v2273 = vpop.f32.mrb[0].mxu0
    %v2274 = vpop.f32.mrb[0].mxu0
    %v2275 = vadd.f32 %v2178, %v2274
    %v2276 = vpop.f32.mrb[0].mxu0
    %2277 = vmatprep.mubr.bf16.mxu0 %v1411
    %2278 = vmatmul.mubr.bf16.gmra.mrb[0].mxu0 %v1410
    %v2279 = vpop.f32.mrb[0].mxu0
    %v2280 = vadd.f32 %v2183, %v2279
    %v2281 = vpop.f32.mrb[0].mxu0
    %v2282 = vpop.f32.mrb[0].mxu0
    %v2283 = vadd.f32 %v2186, %v2282
    %v2284 = vpop.f32.mrb[0].mxu0
    %2285 = vmatprep.mubr.bf16.mxu0 %v1420
    %2286 = vmatmul.mubr.bf16.gmra.mrb[0].mxu0 %v1419
    %v2287 = vpop.f32.mrb[0].mxu0
    %v2288 = vadd.f32 %v2191, %v2287
    %v2289 = vpop.f32.mrb[0].mxu0
    %v2290 = vpop.f32.mrb[0].mxu0
    %v2291 = vadd.f32 %v2194, %v2290
    %v2292 = vpop.f32.mrb[0].mxu0
    %2293 = vmatprep.mubr.bf16.mxu0 %v1429
    %2294 = vmatmul.mubr.bf16.gmra.mrb[0].mxu0 %v1428
    %v2295 = vpop.f32.mrb[0].mxu0
    %v2296 = vadd.f32 %v2199, %v2295
    %v2297 = vpop.f32.mrb[0].mxu0
    %v2298 = vpop.f32.mrb[0].mxu0
    %v2299 = vadd.f32 %v2202, %v2298
    %v2300 = vpop.f32.mrb[0].mxu0
    %2301 = vmatprep.mubr.bf16.mxu0 %v1438
    %2302 = vmatmul.mubr.bf16.gmra.mrb[0].mxu0 %v1437
    %v2303 = vpop.f32.mrb[0].mxu0
    %v2304 = vadd.f32 %v2207, %v2303
    %v2305 = vpop.f32.mrb[0].mxu0
    %v2306 = vpop.f32.mrb[0].mxu0
    %v2307 = vadd.f32 %v2210, %v2306
    %v2308 = vpop.f32.mrb[0].mxu0
    %2309 = vmatprep.mubr.bf16.mxu0 %v1447
    %2310 = vmatmul.mubr.bf16.gmra.mrb[0].mxu0 %v1446
    %v2311 = vpop.f32.mrb[0].mxu0
    %v2312 = vadd.f32 %v2215, %v2311
    %v2313 = vpop.f32.mrb[0].mxu0
    %v2314 = vpop.f32.mrb[0].mxu0
    %v2315 = vadd.f32 %v2218, %v2314
    %v2316 = vpop.f32.mrb[0].mxu0
    %2317 = vdwg.mxu0
    %2318 = vmatprep.subr.bf16.mxu0 0
    %2319 = vmatpush1.bf16.msra.mxu0 %v1931
    %2320 = vmatprep.subr.bf16.mxu0 0
    %2321 = vmatpush1.bf16.msra.mxu0 %v1932
    %2322 = vmatprep.subr.bf16.mxu0 0
    %2323 = vmatpush1.bf16.msra.mxu0 %v1933
    %2324 = vmatprep.subr.bf16.mxu0 0
    %2325 = vmatpush1.bf16.msra.mxu0 %v1934
    %2326 = vmatprep.subr.bf16.mxu0 0
    %2327 = vmatpush1.bf16.msra.mxu0 %v1935
    %2328 = vmatprep.subr.bf16.mxu0 0
    %2329 = vmatpush1.bf16.msra.mxu0 %v1936
    %2330 = vmatprep.subr.bf16.mxu0 0
    %2331 = vmatpush1.bf16.msra.mxu0 %v1937
    %2332 = vmatprep.subr.bf16.mxu0 0
    %2333 = vmatpush1.bf16.msra.mxu0 %v1938
    %2334 = vmatprep.subr.bf16.mxu0 0
    %2335 = vmatpush1.bf16.msra.mxu0 %v1939
    %2336 = vmatprep.subr.bf16.mxu0 0
    %2337 = vmatpush1.bf16.msra.mxu0 %v1940
    %2338 = vmatprep.subr.bf16.mxu0 0
    %2339 = vmatpush1.bf16.msra.mxu0 %v1941
    %2340 = vmatprep.subr.bf16.mxu0 0
    %2341 = vmatpush1.bf16.msra.mxu0 %v1942
    %2342 = vmatprep.subr.bf16.mxu0 0
    %2343 = vmatpush1.bf16.msra.mxu0 %v1943
    %2344 = vmatprep.subr.bf16.mxu0 0
    %2345 = vmatpush1.bf16.msra.mxu0 %v1944
    %2346 = vmatprep.subr.bf16.mxu0 0
    %2347 = vmatpush1.bf16.msra.mxu0 %v1945
    %2348 = vmatprep.subr.bf16.mxu0 0
    %2349 = vmatpush1.bf16.msra.mxu0 %v1946
    %2350 = vmatprep.mubr.bf16.mxu0 %v1386
    %2351 = vmatmul.mubr.bf16.gmra.mrb[0].mxu0 %v1385
    %v2352 = vpop.f32.mrb[0].mxu0
    %v2353 = vadd.f32 %v2256, %v2352
    %v2354 = vpop.f32.mrb[0].mxu0
    %v2355 = vpop.f32.mrb[0].mxu0
    %v2356 = vadd.f32 %v2259, %v2355
    %v2357 = vpop.f32.mrb[0].mxu0
    %2358 = vmatprep.mubr.bf16.mxu0 %v1395
    %2359 = vmatmul.mubr.bf16.gmra.mrb[0].mxu0 %v1394
    %v2360 = vpop.f32.mrb[0].mxu0
    %v2361 = vadd.f32 %v2264, %v2360
    %v2362 = vpop.f32.mrb[0].mxu0
    %v2363 = vpop.f32.mrb[0].mxu0
    %v2364 = vadd.f32 %v2267, %v2363
    %v2365 = vpop.f32.mrb[0].mxu0
    %2366 = vmatprep.mubr.bf16.mxu0 %v1404
    %2367 = vmatmul.mubr.bf16.gmra.mrb[0].mxu0 %v1403
    %v2368 = vpop.f32.mrb[0].mxu0
    %v2369 = vadd.f32 %v2272, %v2368
    %v2370 = vpop.f32.mrb[0].mxu0
    %v2371 = vpop.f32.mrb[0].mxu0
    %v2372 = vadd.f32 %v2275, %v2371
    %v2373 = vpop.f32.mrb[0].mxu0
    %2374 = vmatprep.mubr.bf16.mxu0 %v1413
    %2375 = vmatmul.mubr.bf16.gmra.mrb[0].mxu0 %v1412
    %v2376 = vpop.f32.mrb[0].mxu0
    %v2377 = vadd.f32 %v2280, %v2376
    %v2378 = vpop.f32.mrb[0].mxu0
    %v2379 = vpop.f32.mrb[0].mxu0
    %v2380 = vadd.f32 %v2283, %v2379
    %v2381 = vpop.f32.mrb[0].mxu0
    %2382 = vmatprep.mubr.bf16.mxu0 %v1422
    %2383 = vmatmul.mubr.bf16.gmra.mrb[0].mxu0 %v1421
    %v2384 = vpop.f32.mrb[0].mxu0
    %v2385 = vadd.f32 %v2288, %v2384
    %v2386 = vpop.f32.mrb[0].mxu0
    %v2387 = vpop.f32.mrb[0].mxu0
    %v2388 = vadd.f32 %v2291, %v2387
    %v2389 = vpop.f32.mrb[0].mxu0
    %2390 = vmatprep.mubr.bf16.mxu0 %v1431
    %2391 = vmatmul.mubr.bf16.gmra.mrb[0].mxu0 %v1430
    %v2392 = vpop.f32.mrb[0].mxu0
    %v2393 = vadd.f32 %v2296, %v2392
    %v2394 = vpop.f32.mrb[0].mxu0
    %v2395 = vpop.f32.mrb[0].mxu0
    %v2396 = vadd.f32 %v2299, %v2395
    %v2397 = vpop.f32.mrb[0].mxu0
    %2398 = vmatprep.mubr.bf16.mxu0 %v1440
    %2399 = vmatmul.mubr.bf16.gmra.mrb[0].mxu0 %v1439
    %v2400 = vpop.f32.mrb[0].mxu0
    %v2401 = vadd.f32 %v2304, %v2400
    %v2402 = vpop.f32.mrb[0].mxu0
    %v2403 = vpop.f32.mrb[0].mxu0
    %v2404 = vadd.f32 %v2307, %v2403
    %v2405 = vpop.f32.mrb[0].mxu0
    %2406 = vmatprep.mubr.bf16.mxu0 %v1449
    %2407 = vmatmul.mubr.bf16.gmra.mrb[0].mxu0 %v1448
    %v2408 = vpop.f32.mrb[0].mxu0
    %v2409 = vadd.f32 %v2312, %v2408
    %v2410 = vpop.f32.mrb[0].mxu0
    %v2411 = vpop.f32.mrb[0].mxu0
    %v2412 = vadd.f32 %v2315, %v2411
    %v2413 = vpop.f32.mrb[0].mxu0
    %2414 = vdwg.mxu0
    %2415 = vmatprep.subr.bf16.mxu0 0
    %2416 = vmatpush1.bf16.msra.mxu0 %v1947
    %2417 = vmatprep.subr.bf16.mxu0 0
    %2418 = vmatpush1.bf16.msra.mxu0 %v1948
    %2419 = vmatprep.subr.bf16.mxu0 0
    %2420 = vmatpush1.bf16.msra.mxu0 %v1949
    %2421 = vmatprep.subr.bf16.mxu0 0
    %2422 = vmatpush1.bf16.msra.mxu0 %v1950
    %2423 = vmatprep.subr.bf16.mxu0 0
    %2424 = vmatpush1.bf16.msra.mxu0 %v1951
    %2425 = vmatprep.subr.bf16.mxu0 0
    %2426 = vmatpush1.bf16.msra.mxu0 %v1952
    %2427 = vmatprep.subr.bf16.mxu0 0
    %2428 = vmatpush1.bf16.msra.mxu0 %v1953
    %2429 = vmatprep.subr.bf16.mxu0 0
    %2430 = vmatpush1.bf16.msra.mxu0 %v1954
    %2431 = vmatprep.subr.bf16.mxu0 0
    %2432 = vmatpush1.bf16.msra.mxu0 0
    %2433 = vmatprep.subr.bf16.mxu0 0
    %2434 = vmatpush1.bf16.msra.mxu0 0
    %2435 = vmatprep.subr.bf16.mxu0 0
    %2436 = vmatpush1.bf16.msra.mxu0 0
    %2437 = vmatprep.subr.bf16.mxu0 0
    %2438 = vmatpush1.bf16.msra.mxu0 0
    %2439 = vmatprep.subr.bf16.mxu0 0
    %2440 = vmatpush1.bf16.msra.mxu0 0
    %2441 = vmatprep.subr.bf16.mxu0 0
    %2442 = vmatpush1.bf16.msra.mxu0 0
    %2443 = vmatprep.subr.bf16.mxu0 0
    %2444 = vmatpush1.bf16.msra.mxu0 0
    %2445 = vmatprep.subr.bf16.mxu0 0
    %2446 = vmatpush1.bf16.msra.mxu0 0
    %2447 = vmatprep.mubr.bf16.mxu0 0
    %2448 = vmatmul.mubr.bf16.gmra.mrb[0].mxu0 %v1387
    %v2449 = vpop.f32.mrb[0].mxu0
    %v2450 = vadd.f32 %v2353, %v2449
    %v2451 = vpop.f32.mrb[0].mxu0
    %v2452 = vpop.f32.mrb[0].mxu0
    %v2453 = vadd.f32 %v2356, %v2452
    %v2454 = vpop.f32.mrb[0].mxu0
    %2455 = vmatprep.mubr.bf16.mxu0 0
    %2456 = vmatmul.mubr.bf16.gmra.mrb[0].mxu0 %v1396
    %v2457 = vpop.f32.mrb[0].mxu0
    %v2458 = vadd.f32 %v2361, %v2457
    %v2459 = vpop.f32.mrb[0].mxu0
    %v2460 = vpop.f32.mrb[0].mxu0
    %v2461 = vadd.f32 %v2364, %v2460
    %v2462 = vpop.f32.mrb[0].mxu0
    %2463 = vmatprep.mubr.bf16.mxu0 0
    %2464 = vmatmul.mubr.bf16.gmra.mrb[0].mxu0 %v1405
    %v2465 = vpop.f32.mrb[0].mxu0
    %v2466 = vadd.f32 %v2369, %v2465
    %v2467 = vpop.f32.mrb[0].mxu0
    %v2468 = vpop.f32.mrb[0].mxu0
    %v2469 = vadd.f32 %v2372, %v2468
    %v2470 = vpop.f32.mrb[0].mxu0
    %2471 = vmatprep.mubr.bf16.mxu0 0
    %2472 = vmatmul.mubr.bf16.gmra.mrb[0].mxu0 %v1414
    %v2473 = vpop.f32.mrb[0].mxu0
    %v2474 = vadd.f32 %v2377, %v2473
    %v2475 = vpop.f32.mrb[0].mxu0
    %v2476 = vpop.f32.mrb[0].mxu0
    %v2477 = vadd.f32 %v2380, %v2476
    %v2478 = vpop.f32.mrb[0].mxu0
    %2479 = vmatprep.mubr.bf16.mxu0 0
    %2480 = vmatmul.mubr.bf16.gmra.mrb[0].mxu0 %v1423
    %v2481 = vpop.f32.mrb[0].mxu0
    %v2482 = vadd.f32 %v2385, %v2481
    %v2483 = vpop.f32.mrb[0].mxu0
    %v2484 = vpop.f32.mrb[0].mxu0
    %v2485 = vadd.f32 %v2388, %v2484
    %v2486 = vpop.f32.mrb[0].mxu0
    %2487 = vmatprep.mubr.bf16.mxu0 0
    %2488 = vmatmul.mubr.bf16.gmra.mrb[0].mxu0 %v1432
    %v2489 = vpop.f32.mrb[0].mxu0
    %v2490 = vadd.f32 %v2393, %v2489
    %v2491 = vpop.f32.mrb[0].mxu0
    %v2492 = vpop.f32.mrb[0].mxu0
    %v2493 = vadd.f32 %v2396, %v2492
    %v2494 = vpop.f32.mrb[0].mxu0
    %2495 = vmatprep.mubr.bf16.mxu0 0
    %2496 = vmatmul.mubr.bf16.gmra.mrb[0].mxu0 %v1441
    %v2497 = vpop.f32.mrb[0].mxu0
    %v2498 = vadd.f32 %v2401, %v2497
    %v2499 = vpop.f32.mrb[0].mxu0
    %v2500 = vpop.f32.mrb[0].mxu0
    %v2501 = vadd.f32 %v2404, %v2500
    %v2502 = vpop.f32.mrb[0].mxu0
    %2503 = vmatprep.mubr.bf16.mxu0 0
    %2504 = vmatmul.mubr.bf16.gmra.mrb[0].mxu0 %v1450
    %v2505 = vpop.f32.mrb[0].mxu0
    %v2506 = vadd.f32 %v2409, %v2505
    %v2507 = vpop.f32.mrb[0].mxu0
    %v2508 = vpop.f32.mrb[0].mxu0
    %v2509 = vadd.f32 %v2412, %v2508
    %v2510 = vpop.f32.mrb[0].mxu0
    %2511 = vdwg.mxu0
    %v2512 = vadd.f32 %v2450, %v2453
    %v2513 = vadd.f32 %v2512, %v2458
    %v2514 = vadd.f32 %v2513, %v2461
    %v2515 = vadd.f32 %v2514, %v2466
    %v2516 = vadd.f32 %v2515, %v2469
    %v2517 = vadd.f32 %v2516, %v2474
    %v2518 = vadd.f32 %v2517, %v2477
    %v2519 = vadd.f32 %v2518, %v2482
    %v2520 = vadd.f32 %v2519, %v2485
    %v2521 = vadd.f32 %v2520, %v2490
    %v2522 = vadd.f32 %v2521, %v2493
    %v2523 = vadd.f32 %v2522, %v2498
    %v2524 = vadd.f32 %v2523, %v2501
    %v2525 = vadd.f32 %v2524, %v2506
    %v2526 = vadd.f32 %v2525, %v2509
    %v2527 = vrot.slane %v2526, 4
    %v2528 = vadd.f32 %v2526, %v2527
    %v2529 = vrot.slane %v2528, 2
    %v2530 = vadd.f32 %v2528, %v2529
    %v2531 = vrot.slane %v2530, 1
    %v2532 = vadd.f32 %v2530, %v2531
    %v2533 = vmul.f32 %v2532, 0.0078125
    %v2534 = vmul.f32 %v2450, %v2450
    %v2535 = vmul.f32 %v2453, %v2453
    %v2536 = vmul.f32 %v2458, %v2458
    %v2537 = vmul.f32 %v2461, %v2461
    %v2538 = vmul.f32 %v2466, %v2466
    %v2539 = vmul.f32 %v2469, %v2469
    %v2540 = vmul.f32 %v2474, %v2474
    %v2541 = vmul.f32 %v2477, %v2477
    %v2542 = vmul.f32 %v2482, %v2482
    %v2543 = vmul.f32 %v2485, %v2485
    %v2544 = vmul.f32 %v2490, %v2490
    %v2545 = vmul.f32 %v2493, %v2493
    %v2546 = vmul.f32 %v2498, %v2498
    %v2547 = vmul.f32 %v2501, %v2501
    %v2548 = vmul.f32 %v2506, %v2506
    %v2549 = vmul.f32 %v2509, %v2509
    %v2550 = vadd.f32 %v2534, %v2535
    %v2551 = vadd.f32 %v2550, %v2536
    %v2552 = vadd.f32 %v2551, %v2537
    %v2553 = vadd.f32 %v2552, %v2538
    %v2554 = vadd.f32 %v2553, %v2539
    %v2555 = vadd.f32 %v2554, %v2540
    %v2556 = vadd.f32 %v2555, %v2541
    %v2557 = vadd.f32 %v2556, %v2542
    %v2558 = vadd.f32 %v2557, %v2543
    %v2559 = vadd.f32 %v2558, %v2544
    %v2560 = vadd.f32 %v2559, %v2545
    %v2561 = vadd.f32 %v2560, %v2546
    %v2562 = vadd.f32 %v2561, %v2547
    %v2563 = vadd.f32 %v2562, %v2548
    %v2564 = vadd.f32 %v2563, %v2549
    %v2565 = vrot.slane %v2564, 4
    %v2566 = vadd.f32 %v2564, %v2565
    %v2567 = vrot.slane %v2566, 2
    %v2568 = vadd.f32 %v2566, %v2567
    %v2569 = vrot.slane %v2568, 1
    %v2570 = vadd.f32 %v2568, %v2569
    %v2571 = vmul.f32 %v2570, 0.0078125
    %v2572 = vmul.f32 %v2533, %v2533
    %v2573 = vsub.f32 %v2571, %v2572
    %v2574 = vmax.f32 %v2573, 0.0
    %v2575 = vld [vmem:[%s4] sm:$0x1]
    %v2576 = vadd.f32 %v2574, 1e-05
    %v2577 = vrsqrt.pop %v2576
    %v2578 = vmul.f32 %v2575, %v2577
    %v2579 = vld [vmem:[%s5] sm:$0x1]
    %v2580 = vmul.f32 %v2533, %v2578
    %v2581 = vsub.f32 %v2579, %v2580
    %v2583 = vlaneseq
    %v2584 = vshrl.u32 %v2583, 7
    %v2585 = vsub.s32 0, %v2584
    %v2586 = vrot.slane %v2578, %v2585
    %v2588 = vmul.f32 %v2450, %v2586
    %v2589 = vmul.f32 %v2453, %v2586
    %v2590 = vmul.f32 %v2458, %v2586
    %v2591 = vmul.f32 %v2461, %v2586
    %v2592 = vmul.f32 %v2466, %v2586
    %v2593 = vmul.f32 %v2469, %v2586
    %v2594 = vmul.f32 %v2474, %v2586
    %v2595 = vmul.f32 %v2477, %v2586
    %v2596 = vmul.f32 %v2482, %v2586
    %v2597 = vmul.f32 %v2485, %v2586
    %v2598 = vmul.f32 %v2490, %v2586
    %v2599 = vmul.f32 %v2493, %v2586
    %v2600 = vmul.f32 %v2498, %v2586
    %v2601 = vmul.f32 %v2501, %v2586
    %v2602 = vmul.f32 %v2506, %v2586
    %v2603 = vmul.f32 %v2509, %v2586
    %v2605 = vlaneseq
    %v2606 = vshrl.u32 %v2605, 7
    %v2607 = vsub.s32 0, %v2606
    %v2608 = vrot.slane %v2581, %v2607
    %v2610 = vadd.f32 %v2588, %v2608
    %v2611 = vadd.f32 %v2589, %v2608
    %v2612 = vadd.f32 %v2590, %v2608
    %v2613 = vadd.f32 %v2591, %v2608
    %v2614 = vadd.f32 %v2592, %v2608
    %v2615 = vadd.f32 %v2593, %v2608
    %v2616 = vadd.f32 %v2594, %v2608
    %v2617 = vadd.f32 %v2595, %v2608
    %v2618 = vadd.f32 %v2596, %v2608
    %v2619 = vadd.f32 %v2597, %v2608
    %v2620 = vadd.f32 %v2598, %v2608
    %v2621 = vadd.f32 %v2599, %v2608
    %v2622 = vadd.f32 %v2600, %v2608
    %v2623 = vadd.f32 %v2601, %v2608
    %v2624 = vadd.f32 %v2602, %v2608
    %v2625 = vadd.f32 %v2603, %v2608
    %v2626 = vmax.f32 %v2610, 0.0
    %v2627 = vmax.f32 %v2611, 0.0
    %v2628 = vmax.f32 %v2612, 0.0
    %v2629 = vmax.f32 %v2613, 0.0
    %v2630 = vmax.f32 %v2614, 0.0
    %v2631 = vmax.f32 %v2615, 0.0
    %v2632 = vmax.f32 %v2616, 0.0
    %v2633 = vmax.f32 %v2617, 0.0
    %v2634 = vmax.f32 %v2618, 0.0
    %v2635 = vmax.f32 %v2619, 0.0
    %v2636 = vmax.f32 %v2620, 0.0
    %v2637 = vmax.f32 %v2621, 0.0
    %v2638 = vmax.f32 %v2622, 0.0
    %v2639 = vmax.f32 %v2623, 0.0
    %v2640 = vmax.f32 %v2624, 0.0
    %v2641 = vmax.f32 %v2625, 0.0
    %2642 = vst [vmem:[#allocation2] sm:$0xf] 0
    %2643 = vst [vmem:[#allocation2 + $0x4] sm:$0x1] 0
    %2644 = vst [vmem:[#allocation2 + $0x50] sm:$0xf] 0
    %2645 = vst [vmem:[#allocation2 + $0x54] sm:$0x1] 0
    %s2646 = scalar_lea.vmem [#allocation2], 72
    %2647 = vst [vmem:[%s2646] sm:$0xf] 0
    %2648 = vst [vmem:[%s2646 + $0x4] sm:$0x1] 0
    %2649 = vst [vmem:[%s2646 + $0x50] sm:$0xf] 0
    %2650 = vst [vmem:[%s2646 + $0x54] sm:$0x1] 0
    %vm2651 = vcmask 1040384
    %vm2652 = vsmask.f32 256
    %vm2653 = vmand %vm2651, %vm2652
    %v2654 = vld [vmem:[#allocation2] sm:$0x1]
    %v2655 = vsel %vm2653, 0, %v2654
    %2656 = vst [vmem:[#allocation2] sm:$0x1] %v2655
    %v2657 = vld [vmem:[#allocation2 + $0x8] sm:$0x1]
    %v2658 = vsel %vm2653, 0, %v2657
    %2659 = vst [vmem:[#allocation2 + $0x8] sm:$0x1] %v2658
    %v2660 = vld [vmem:[#allocation2 + $0x10] sm:$0x1]
    %v2661 = vsel %vm2653, 0, %v2660
    %2662 = vst [vmem:[#allocation2 + $0x10] sm:$0x1] %v2661
    %v2663 = vld [vmem:[#allocation2 + $0x18] sm:$0x1]
    %v2664 = vsel %vm2653, 0, %v2663
    %2665 = vst [vmem:[#allocation2 + $0x18] sm:$0x1] %v2664
    %v2666 = vld [vmem:[#allocation2 + $0x20] sm:$0x1]
    %v2667 = vsel %vm2653, 0, %v2666
    %2668 = vst [vmem:[#allocation2 + $0x20] sm:$0x1] %v2667
    %v2669 = vld [vmem:[#allocation2 + $0x28] sm:$0x1]
    %v2670 = vsel %vm2653, 0, %v2669
    %2671 = vst [vmem:[#allocation2 + $0x28] sm:$0x1] %v2670
    %v2672 = vld [vmem:[#allocation2 + $0x30] sm:$0x1]
    %v2673 = vsel %vm2653, 0, %v2672
    %2674 = vst [vmem:[#allocation2 + $0x30] sm:$0x1] %v2673
    %v2675 = vld [vmem:[#allocation2 + $0x38] sm:$0x1]
    %v2676 = vsel %vm2653, 0, %v2675
    %2677 = vst [vmem:[#allocation2 + $0x38] sm:$0x1] %v2676
    %v2678 = vld [vmem:[#allocation2 + $0x40] sm:$0x1]
    %v2679 = vsel %vm2653, 0, %v2678
    %2680 = vst [vmem:[#allocation2 + $0x40] sm:$0x1] %v2679
    %v2681 = vld [vmem:[#allocation2 + $0x48] sm:$0x1]
    %v2682 = vsel %vm2653, 0, %v2681
    %2683 = vst [vmem:[#allocation2 + $0x48] sm:$0x1] %v2682
    %v2684 = vld [vmem:[#allocation2 + $0x50] sm:$0x1]
    %v2685 = vsel %vm2653, 0, %v2684
    %2686 = vst [vmem:[#allocation2 + $0x50] sm:$0x1] %v2685
    %v2687 = vld [vmem:[#allocation2 + $0x58] sm:$0x1]
    %v2688 = vsel %vm2653, 0, %v2687
    %2689 = vst [vmem:[#allocation2 + $0x58] sm:$0x1] %v2688
    %v2690 = vld [vmem:[#allocation2 + $0x60] sm:$0x1]
    %v2691 = vsel %vm2653, 0, %v2690
    %2692 = vst [vmem:[#allocation2 + $0x60] sm:$0x1] %v2691
    %v2693 = vld [vmem:[#allocation2 + $0x68] sm:$0x1]
    %v2694 = vsel %vm2653, 0, %v2693
    %2695 = vst [vmem:[#allocation2 + $0x68] sm:$0x1] %v2694
    %v2696 = vld [vmem:[#allocation2 + $0x70] sm:$0x1]
    %v2697 = vsel %vm2653, 0, %v2696
    %2698 = vst [vmem:[#allocation2 + $0x70] sm:$0x1] %v2697
    %v2699 = vld [vmem:[#allocation2 + $0x78] sm:$0x1]
    %v2700 = vsel %vm2653, 0, %v2699
    %2701 = vst [vmem:[#allocation2 + $0x78] sm:$0x1] %v2700
    %v2702 = vld [vmem:[#allocation2 + $0x80] sm:$0x1]
    %v2703 = vsel %vm2653, 0, %v2702
    %2704 = vst [vmem:[#allocation2 + $0x80] sm:$0x1] %v2703
    %v2705 = vld [vmem:[#allocation2 + $0x88] sm:$0x1]
    %v2706 = vsel %vm2653, 0, %v2705
    %2707 = vst [vmem:[#allocation2 + $0x88] sm:$0x1] %v2706
    %v2708 = vld [vmem:[#allocation2 + $0x90] sm:$0x1]
    %v2709 = vsel %vm2653, 0, %v2708
    %2710 = vst [vmem:[#allocation2 + $0x90] sm:$0x1] %v2709
    %v2711 = vld [vmem:[#allocation2 + $0x98] sm:$0x1]
    %v2712 = vsel %vm2653, 0, %v2711
    %2713 = vst [vmem:[#allocation2 + $0x98] sm:$0x1] %v2712
    %vm2714 = vsmask.f32 7938
    %vm2715 = vmand %vm2651, %vm2714
    %v2716 = vld [vmem:[#allocation2 + $0x4] sm:$0x1]
    %v2717 = vsel %vm2715, 0, %v2716
    %2718 = vst [vmem:[#allocation2 + $0x4] sm:$0x1] %v2717
    %v2719 = vld [vmem:[#allocation2 + $0xc] sm:$0x1]
    %v2720 = vsel %vm2715, 0, %v2719
    %2721 = vst [vmem:[#allocation2 + $0xc] sm:$0x1] %v2720
    %v2722 = vld [vmem:[#allocation2 + $0x14] sm:$0x1]
    %v2723 = vsel %vm2715, 0, %v2722
    %2724 = vst [vmem:[#allocation2 + $0x14] sm:$0x1] %v2723
    %v2725 = vld [vmem:[#allocation2 + $0x1c] sm:$0x1]
    %v2726 = vsel %vm2715, 0, %v2725
    %2727 = vst [vmem:[#allocation2 + $0x1c] sm:$0x1] %v2726
    %v2728 = vld [vmem:[#allocation2 + $0x24] sm:$0x1]
    %v2729 = vsel %vm2715, 0, %v2728
    %2730 = vst [vmem:[#allocation2 + $0x24] sm:$0x1] %v2729
    %v2731 = vld [vmem:[#allocation2 + $0x2c] sm:$0x1]
    %v2732 = vsel %vm2715, 0, %v2731
    %2733 = vst [vmem:[#allocation2 + $0x2c] sm:$0x1] %v2732
    %v2734 = vld [vmem:[#allocation2 + $0x34] sm:$0x1]
    %v2735 = vsel %vm2715, 0, %v2734
    %2736 = vst [vmem:[#allocation2 + $0x34] sm:$0x1] %v2735
    %v2737 = vld [vmem:[#allocation2 + $0x3c] sm:$0x1]
    %v2738 = vsel %vm2715, 0, %v2737
    %2739 = vst [vmem:[#allocation2 + $0x3c] sm:$0x1] %v2738
    %v2740 = vld [vmem:[#allocation2 + $0x44] sm:$0x1]
    %v2741 = vsel %vm2715, 0, %v2740
    %2742 = vst [vmem:[#allocation2 + $0x44] sm:$0x1] %v2741
    %v2743 = vld [vmem:[#allocation2 + $0x4c] sm:$0x1]
    %v2744 = vsel %vm2715, 0, %v2743
    %2745 = vst [vmem:[#allocation2 + $0x4c] sm:$0x1] %v2744
    %v2746 = vld [vmem:[#allocation2 + $0x54] sm:$0x1]
    %v2747 = vsel %vm2715, 0, %v2746
    %2748 = vst [vmem:[#allocation2 + $0x54] sm:$0x1] %v2747
    %v2749 = vld [vmem:[#allocation2 + $0x5c] sm:$0x1]
    %v2750 = vsel %vm2715, 0, %v2749
    %2751 = vst [vmem:[#allocation2 + $0x5c] sm:$0x1] %v2750
    %v2752 = vld [vmem:[#allocation2 + $0x64] sm:$0x1]
    %v2753 = vsel %vm2715, 0, %v2752
    %2754 = vst [vmem:[#allocation2 + $0x64] sm:$0x1] %v2753
    %v2755 = vld [vmem:[#allocation2 + $0x6c] sm:$0x1]
    %v2756 = vsel %vm2715, 0, %v2755
    %2757 = vst [vmem:[#allocation2 + $0x6c] sm:$0x1] %v2756
    %v2758 = vld [vmem:[#allocation2 + $0x74] sm:$0x1]
    %v2759 = vsel %vm2715, 0, %v2758
    %2760 = vst [vmem:[#allocation2 + $0x74] sm:$0x1] %v2759
    %v2761 = vld [vmem:[#allocation2 + $0x7c] sm:$0x1]
    %v2762 = vsel %vm2715, 0, %v2761
    %2763 = vst [vmem:[#allocation2 + $0x7c] sm:$0x1] %v2762
    %v2764 = vld [vmem:[#allocation2 + $0x84] sm:$0x1]
    %v2765 = vsel %vm2715, 0, %v2764
    %2766 = vst [vmem:[#allocation2 + $0x84] sm:$0x1] %v2765
    %v2767 = vld [vmem:[#allocation2 + $0x8c] sm:$0x1]
    %v2768 = vsel %vm2715, 0, %v2767
    %2769 = vst [vmem:[#allocation2 + $0x8c] sm:$0x1] %v2768
    %v2770 = vld [vmem:[#allocation2 + $0x94] sm:$0x1]
    %v2771 = vsel %vm2715, 0, %v2770
    %2772 = vst [vmem:[#allocation2 + $0x94] sm:$0x1] %v2771
    %v2773 = vld [vmem:[#allocation2 + $0x9c] sm:$0x1]
    %v2774 = vsel %vm2715, 0, %v2773
    %2775 = vst [vmem:[#allocation2 + $0x9c] sm:$0x1] %v2774
    %v2776 = vpack.c.bf16 %v2626, %v2626
    %v2777 = vpack.c.bf16 %v2627, %v2627
    %v2778 = vpack.c.bf16 %v2628, %v2628
    %v2779 = vpack.c.bf16 %v2629, %v2629
    %v2780 = vpack.c.bf16 %v2630, %v2630
    %v2781 = vpack.c.bf16 %v2631, %v2631
    %v2782 = vpack.c.bf16 %v2632, %v2632
    %v2783 = vpack.c.bf16 %v2633, %v2633
    %v2784 = vpack.c.bf16 %v2634, %v2634
    %v2785 = vpack.c.bf16 %v2635, %v2635
    %v2786 = vpack.c.bf16 %v2636, %v2636
    %v2787 = vpack.c.bf16 %v2637, %v2637
    %v2788 = vpack.c.bf16 %v2638, %v2638
    %v2789 = vpack.c.bf16 %v2639, %v2639
    %v2790 = vpack.c.bf16 %v2640, %v2640
    %v2791 = vpack.c.bf16 %v2641, %v2641
    %v2808 = vunpack.c.l.b16 %v2776
    %v2809 = vunpack.c.l.b16 %v2777
    %v2810 = vunpack.c.l.b16 %v2778
    %v2811 = vunpack.c.l.b16 %v2779
    %v2812 = vunpack.c.l.b16 %v2780
    %v2813 = vunpack.c.l.b16 %v2781
    %v2814 = vunpack.c.l.b16 %v2782
    %v2815 = vunpack.c.l.b16 %v2783
    %v2816 = vunpack.c.l.b16 %v2784
    %v2817 = vunpack.c.l.b16 %v2785
    %v2818 = vunpack.c.l.b16 %v2786
    %v2819 = vunpack.c.l.b16 %v2787
    %v2820 = vunpack.c.l.b16 %v2788
    %v2821 = vunpack.c.l.b16 %v2789
    %v2822 = vunpack.c.l.b16 %v2790
    %v2823 = vunpack.c.l.b16 %v2791
    %v2824 = vpack.c.b16 %v2808, %v2808
    %v2825 = vpack.c.b16 %v2809, %v2809
    %v2826 = vpack.c.b16 %v2810, %v2810
    %v2827 = vpack.c.b16 %v2811, %v2811
    %v2828 = vpack.c.b16 %v2812, %v2812
    %v2829 = vpack.c.b16 %v2813, %v2813
    %v2830 = vpack.c.b16 %v2814, %v2814
    %v2831 = vpack.c.b16 %v2815, %v2815
    %v2832 = vpack.c.b16 %v2816, %v2816
    %v2833 = vpack.c.b16 %v2817, %v2817
    %v2834 = vpack.c.b16 %v2818, %v2818
    %v2835 = vpack.c.b16 %v2819, %v2819
    %v2836 = vpack.c.b16 %v2820, %v2820
    %v2837 = vpack.c.b16 %v2821, %v2821
    %v2838 = vpack.c.b16 %v2822, %v2822
    %v2839 = vpack.c.b16 %v2823, %v2823
    %v2841 = vshrl.u32 %v2824, 16
    %v2843 = vrot.slane %v2841, 7
    %v2844 = vshll.u32 %v2824, 16
    %v2846 = vor.u32 %v2843, %v2844
    %v2847 = vrot.slane %v2843, 4
    %v2849 = vshrl.u32 %v2825, 16
    %v2851 = vrot.slane %v2849, 7
    %v2852 = vshll.u32 %v2825, 16
    %v2854 = vor.u32 %v2851, %v2852
    %v2855 = vrot.slane %v2851, 4
    %v2857 = vshrl.u32 %v2826, 16
    %v2859 = vrot.slane %v2857, 7
    %v2860 = vshll.u32 %v2826, 16
    %v2862 = vor.u32 %v2859, %v2860
    %v2863 = vrot.slane %v2859, 4
    %v2865 = vshrl.u32 %v2827, 16
    %v2867 = vrot.slane %v2865, 7
    %v2868 = vshll.u32 %v2827, 16
    %v2870 = vor.u32 %v2867, %v2868
    %v2871 = vrot.slane %v2867, 4
    %v2873 = vshrl.u32 %v2828, 16
    %v2875 = vrot.slane %v2873, 7
    %v2876 = vshll.u32 %v2828, 16
    %v2878 = vor.u32 %v2875, %v2876
    %v2879 = vrot.slane %v2875, 4
    %v2881 = vshrl.u32 %v2829, 16
    %v2883 = vrot.slane %v2881, 7
    %v2884 = vshll.u32 %v2829, 16
    %v2886 = vor.u32 %v2883, %v2884
    %v2887 = vrot.slane %v2883, 4
    %v2889 = vshrl.u32 %v2830, 16
    %v2891 = vrot.slane %v2889, 7
    %v2892 = vshll.u32 %v2830, 16
    %v2894 = vor.u32 %v2891, %v2892
    %v2895 = vrot.slane %v2891, 4
    %v2897 = vshrl.u32 %v2831, 16
    %v2899 = vrot.slane %v2897, 7
    %v2900 = vshll.u32 %v2831, 16
    %v2902 = vor.u32 %v2899, %v2900
    %v2903 = vrot.slane %v2899, 4
    %v2905 = vshrl.u32 %v2832, 16
    %v2907 = vrot.slane %v2905, 7
    %v2908 = vshll.u32 %v2832, 16
    %v2910 = vor.u32 %v2907, %v2908
    %v2911 = vrot.slane %v2907, 4
    %v2913 = vshrl.u32 %v2833, 16
    %v2915 = vrot.slane %v2913, 7
    %v2916 = vshll.u32 %v2833, 16
    %v2918 = vor.u32 %v2915, %v2916
    %v2919 = vrot.slane %v2915, 4
    %v2921 = vshrl.u32 %v2834, 16
    %v2923 = vrot.slane %v2921, 7
    %v2924 = vshll.u32 %v2834, 16
    %v2926 = vor.u32 %v2923, %v2924
    %v2927 = vrot.slane %v2923, 4
    %v2929 = vshrl.u32 %v2835, 16
    %v2931 = vrot.slane %v2929, 7
    %v2932 = vshll.u32 %v2835, 16
    %v2934 = vor.u32 %v2931, %v2932
    %v2935 = vrot.slane %v2931, 4
    %v2937 = vshrl.u32 %v2836, 16
    %v2939 = vrot.slane %v2937, 7
    %v2940 = vshll.u32 %v2836, 16
    %v2942 = vor.u32 %v2939, %v2940
    %v2943 = vrot.slane %v2939, 4
    %v2945 = vshrl.u32 %v2837, 16
    %v2947 = vrot.slane %v2945, 7
    %v2948 = vshll.u32 %v2837, 16
    %v2950 = vor.u32 %v2947, %v2948
    %v2951 = vrot.slane %v2947, 4
    %v2953 = vshrl.u32 %v2838, 16
    %v2955 = vrot.slane %v2953, 7
    %v2956 = vshll.u32 %v2838, 16
    %v2958 = vor.u32 %v2955, %v2956
    %v2959 = vrot.slane %v2955, 4
    %v2961 = vshrl.u32 %v2839, 16
    %v2963 = vrot.slane %v2961, 7
    %v2964 = vshll.u32 %v2839, 16
    %v2966 = vor.u32 %v2963, %v2964
    %v2967 = vrot.slane %v2963, 4
    %s3000 = scalar_lea.vmem [#allocation2], 8
    %vm3001 = vcmask 1043456
    %vm3002 = vmand %vm3001, %vm2714
    %v3003 = vld [vmem:[%s3000] sm:$0xf]
    %v3004 = vsel %vm3002, %v2846, %v3003
    %3005 = vst [vmem:[%s3000] sm:$0xf] %v3004
    %v3006 = vld [vmem:[%s3000 + $0x4] sm:$0x1]
    %v3007 = vsel %vm2653, %v2847, %v3006
    %3008 = vst [vmem:[%s3000 + $0x4] sm:$0x1] %v3007
    %v3009 = vld [vmem:[%s3000 + $0x8] sm:$0xf]
    %v3010 = vsel %vm3002, %v2854, %v3009
    %3011 = vst [vmem:[%s3000 + $0x8] sm:$0xf] %v3010
    %v3012 = vld [vmem:[%s3000 + $0xc] sm:$0x1]
    %v3013 = vsel %vm2653, %v2855, %v3012
    %3014 = vst [vmem:[%s3000 + $0xc] sm:$0x1] %v3013
    %v3015 = vld [vmem:[%s3000 + $0x10] sm:$0xf]
    %v3016 = vsel %vm3002, %v2862, %v3015
    %3017 = vst [vmem:[%s3000 + $0x10] sm:$0xf] %v3016
    %v3018 = vld [vmem:[%s3000 + $0x14] sm:$0x1]
    %v3019 = vsel %vm2653, %v2863, %v3018
    %3020 = vst [vmem:[%s3000 + $0x14] sm:$0x1] %v3019
    %v3021 = vld [vmem:[%s3000 + $0x18] sm:$0xf]
    %v3022 = vsel %vm3002, %v2870, %v3021
    %3023 = vst [vmem:[%s3000 + $0x18] sm:$0xf] %v3022
    %v3024 = vld [vmem:[%s3000 + $0x1c] sm:$0x1]
    %v3025 = vsel %vm2653, %v2871, %v3024
    %3026 = vst [vmem:[%s3000 + $0x1c] sm:$0x1] %v3025
    %v3027 = vld [vmem:[%s3000 + $0x20] sm:$0xf]
    %v3028 = vsel %vm3002, %v2878, %v3027
    %3029 = vst [vmem:[%s3000 + $0x20] sm:$0xf] %v3028
    %v3030 = vld [vmem:[%s3000 + $0x24] sm:$0x1]
    %v3031 = vsel %vm2653, %v2879, %v3030
    %3032 = vst [vmem:[%s3000 + $0x24] sm:$0x1] %v3031
    %v3033 = vld [vmem:[%s3000 + $0x28] sm:$0xf]
    %v3034 = vsel %vm3002, %v2886, %v3033
    %3035 = vst [vmem:[%s3000 + $0x28] sm:$0xf] %v3034
    %v3036 = vld [vmem:[%s3000 + $0x2c] sm:$0x1]
    %v3037 = vsel %vm2653, %v2887, %v3036
    %3038 = vst [vmem:[%s3000 + $0x2c] sm:$0x1] %v3037
    %v3039 = vld [vmem:[%s3000 + $0x30] sm:$0xf]
    %v3040 = vsel %vm3002, %v2894, %v3039
    %3041 = vst [vmem:[%s3000 + $0x30] sm:$0xf] %v3040
    %v3042 = vld [vmem:[%s3000 + $0x34] sm:$0x1]
    %v3043 = vsel %vm2653, %v2895, %v3042
    %3044 = vst [vmem:[%s3000 + $0x34] sm:$0x1] %v3043
    %v3045 = vld [vmem:[%s3000 + $0x38] sm:$0xf]
    %v3046 = vsel %vm3002, %v2902, %v3045
    %3047 = vst [vmem:[%s3000 + $0x38] sm:$0xf] %v3046
    %v3048 = vld [vmem:[%s3000 + $0x3c] sm:$0x1]
    %v3049 = vsel %vm2653, %v2903, %v3048
    %3050 = vst [vmem:[%s3000 + $0x3c] sm:$0x1] %v3049
    %v3051 = vld [vmem:[%s3000 + $0x50] sm:$0xf]
    %v3052 = vsel %vm3002, %v2910, %v3051
    %3053 = vst [vmem:[%s3000 + $0x50] sm:$0xf] %v3052
    %v3054 = vld [vmem:[%s3000 + $0x54] sm:$0x1]
    %v3055 = vsel %vm2653, %v2911, %v3054
    %3056 = vst [vmem:[%s3000 + $0x54] sm:$0x1] %v3055
    %v3057 = vld [vmem:[%s3000 + $0x58] sm:$0xf]
    %v3058 = vsel %vm3002, %v2918, %v3057
    %3059 = vst [vmem:[%s3000 + $0x58] sm:$0xf] %v3058
    %v3060 = vld [vmem:[%s3000 + $0x5c] sm:$0x1]
    %v3061 = vsel %vm2653, %v2919, %v3060
    %3062 = vst [vmem:[%s3000 + $0x5c] sm:$0x1] %v3061
    %v3063 = vld [vmem:[%s3000 + $0x60] sm:$0xf]
    %v3064 = vsel %vm3002, %v2926, %v3063
    %3065 = vst [vmem:[%s3000 + $0x60] sm:$0xf] %v3064
    %v3066 = vld [vmem:[%s3000 + $0x64] sm:$0x1]
    %v3067 = vsel %vm2653, %v2927, %v3066
    %3068 = vst [vmem:[%s3000 + $0x64] sm:$0x1] %v3067
    %v3069 = vld [vmem:[%s3000 + $0x68] sm:$0xf]
    %v3070 = vsel %vm3002, %v2934, %v3069
    %3071 = vst [vmem:[%s3000 + $0x68] sm:$0xf] %v3070
    %v3072 = vld [vmem:[%s3000 + $0x6c] sm:$0x1]
    %v3073 = vsel %vm2653, %v2935, %v3072
    %3074 = vst [vmem:[%s3000 + $0x6c] sm:$0x1] %v3073
    %v3075 = vld [vmem:[%s3000 + $0x70] sm:$0xf]
    %v3076 = vsel %vm3002, %v2942, %v3075
    %3077 = vst [vmem:[%s3000 + $0x70] sm:$0xf] %v3076
    %v3078 = vld [vmem:[%s3000 + $0x74] sm:$0x1]
    %v3079 = vsel %vm2653, %v2943, %v3078
    %3080 = vst [vmem:[%s3000 + $0x74] sm:$0x1] %v3079
    %v3081 = vld [vmem:[%s3000 + $0x78] sm:$0xf]
    %v3082 = vsel %vm3002, %v2950, %v3081
    %3083 = vst [vmem:[%s3000 + $0x78] sm:$0xf] %v3082
    %v3084 = vld [vmem:[%s3000 + $0x7c] sm:$0x1]
    %v3085 = vsel %vm2653, %v2951, %v3084
    %3086 = vst [vmem:[%s3000 + $0x7c] sm:$0x1] %v3085
    %v3087 = vld [vmem:[%s3000 + $0x80] sm:$0xf]
    %v3088 = vsel %vm3002, %v2958, %v3087
    %3089 = vst [vmem:[%s3000 + $0x80] sm:$0xf] %v3088
    %v3090 = vld [vmem:[%s3000 + $0x84] sm:$0x1]
    %v3091 = vsel %vm2653, %v2959, %v3090
    %3092 = vst [vmem:[%s3000 + $0x84] sm:$0x1] %v3091
    %v3093 = vld [vmem:[%s3000 + $0x88] sm:$0xf]
    %v3094 = vsel %vm3002, %v2966, %v3093
    %3095 = vst [vmem:[%s3000 + $0x88] sm:$0xf] %v3094
    %v3096 = vld [vmem:[%s3000 + $0x8c] sm:$0x1]
    %v3097 = vsel %vm2653, %v2967, %v3096
    %3098 = vst [vmem:[%s3000 + $0x8c] sm:$0x1] %v3097
    %v3099 = vld [vmem:[#allocation2] sm:$0xf]
    %v3100 = vld [vmem:[#allocation2 + $0x8] sm:$0xf]
    %v3101 = vld [vmem:[#allocation2 + $0x10] sm:$0xf]
    %v3102 = vld [vmem:[#allocation2 + $0x18] sm:$0xf]
    %v3103 = vld [vmem:[#allocation2 + $0x20] sm:$0xf]
    %v3104 = vld [vmem:[#allocation2 + $0x28] sm:$0xf]
    %v3105 = vld [vmem:[#allocation2 + $0x30] sm:$0xf]
    %v3106 = vld [vmem:[#allocation2 + $0x38] sm:$0xf]
    %v3107 = vld [vmem:[#allocation2 + $0x50] sm:$0xf]
    %v3108 = vld [vmem:[#allocation2 + $0x58] sm:$0xf]
    %v3109 = vld [vmem:[#allocation2 + $0x60] sm:$0xf]
    %v3110 = vld [vmem:[#allocation2 + $0x68] sm:$0xf]
    %v3111 = vld [vmem:[#allocation2 + $0x70] sm:$0xf]
    %v3112 = vld [vmem:[#allocation2 + $0x78] sm:$0xf]
    %v3113 = vld [vmem:[#allocation2 + $0x80] sm:$0xf]
    %v3114 = vld [vmem:[#allocation2 + $0x88] sm:$0xf]
    %v3131 = vunpack.c.l.b16 %v3099
    %v3132 = vunpack.c.l.b16 %v3100
    %v3133 = vunpack.c.l.b16 %v3101
    %v3134 = vunpack.c.l.b16 %v3102
    %v3135 = vunpack.c.l.b16 %v3103
    %v3136 = vunpack.c.l.b16 %v3104
    %v3137 = vunpack.c.l.b16 %v3105
    %v3138 = vunpack.c.l.b16 %v3106
    %v3139 = vunpack.c.l.b16 %v3107
    %v3140 = vunpack.c.l.b16 %v3108
    %v3141 = vunpack.c.l.b16 %v3109
    %v3142 = vunpack.c.l.b16 %v3110
    %v3143 = vunpack.c.l.b16 %v3111
    %v3144 = vunpack.c.l.b16 %v3112
    %v3145 = vunpack.c.l.b16 %v3113
    %v3146 = vunpack.c.l.b16 %v3114
    %v3147 = vpack.c.b16 %v3132, %v3131
    %v3148 = vpack.c.b16 %v3134, %v3133
    %v3149 = vpack.c.b16 %v3136, %v3135
    %v3150 = vpack.c.b16 %v3138, %v3137
    %v3151 = vpack.c.b16 %v3140, %v3139
    %v3152 = vpack.c.b16 %v3142, %v3141
    %v3153 = vpack.c.b16 %v3144, %v3143
    %v3154 = vpack.c.b16 %v3146, %v3145
    %3163 = vst [vmem:[#allocation4] sm:$0xff] %v3147
    %3164 = vst [vmem:[#allocation4 + $0x48] sm:$0xff] %v3148
    %3165 = vst [vmem:[#allocation4 + $0x90] sm:$0xff] %v3149
    %3166 = vst [vmem:[#allocation4 + $0xd8] sm:$0xff] %v3150
    %3167 = vst [vmem:[#allocation4 + $0x120] sm:$0xff] %v3151
    %3168 = vst [vmem:[#allocation4 + $0x168] sm:$0xff] %v3152
    %3169 = vst [vmem:[#allocation4 + $0x1b0] sm:$0xff] %v3153
    %3170 = vst [vmem:[#allocation4 + $0x1f8] sm:$0xff] %v3154
    %v3171 = vld [vmem:[#allocation2] sm:$0xf]
    %v3172 = vld [vmem:[#allocation2 + $0x4] sm:$0x1]
    %v3173 = vld [vmem:[#allocation2 + $0x8] sm:$0xf]
    %v3174 = vld [vmem:[#allocation2 + $0xc] sm:$0x1]
    %v3175 = vld [vmem:[#allocation2 + $0x10] sm:$0xf]
    %v3176 = vld [vmem:[#allocation2 + $0x14] sm:$0x1]
    %v3177 = vld [vmem:[#allocation2 + $0x18] sm:$0xf]
    %v3178 = vld [vmem:[#allocation2 + $0x1c] sm:$0x1]
    %v3179 = vld [vmem:[#allocation2 + $0x20] sm:$0xf]
    %v3180 = vld [vmem:[#allocation2 + $0x24] sm:$0x1]
    %v3181 = vld [vmem:[#allocation2 + $0x28] sm:$0xf]
    %v3182 = vld [vmem:[#allocation2 + $0x2c] sm:$0x1]
    %v3183 = vld [vmem:[#allocation2 + $0x30] sm:$0xf]
    %v3184 = vld [vmem:[#allocation2 + $0x34] sm:$0x1]
    %v3185 = vld [vmem:[#allocation2 + $0x38] sm:$0xf]
    %v3186 = vld [vmem:[#allocation2 + $0x3c] sm:$0x1]
    %v3187 = vld [vmem:[#allocation2 + $0x50] sm:$0xf]
    %v3188 = vld [vmem:[#allocation2 + $0x54] sm:$0x1]
    %v3189 = vld [vmem:[#allocation2 + $0x58] sm:$0xf]
    %v3190 = vld [vmem:[#allocation2 + $0x5c] sm:$0x1]
    %v3191 = vld [vmem:[#allocation2 + $0x60] sm:$0xf]
    %v3192 = vld [vmem:[#allocation2 + $0x64] sm:$0x1]
    %v3193 = vld [vmem:[#allocation2 + $0x68] sm:$0xf]
    %v3194 = vld [vmem:[#allocation2 + $0x6c] sm:$0x1]
    %v3195 = vld [vmem:[#allocation2 + $0x70] sm:$0xf]
    %v3196 = vld [vmem:[#allocation2 + $0x74] sm:$0x1]
    %v3197 = vld [vmem:[#allocation2 + $0x78] sm:$0xf]
    %v3198 = vld [vmem:[#allocation2 + $0x7c] sm:$0x1]
    %v3199 = vld [vmem:[#allocation2 + $0x80] sm:$0xf]
    %v3200 = vld [vmem:[#allocation2 + $0x84] sm:$0x1]
    %v3201 = vld [vmem:[#allocation2 + $0x88] sm:$0xf]
    %v3202 = vld [vmem:[#allocation2 + $0x8c] sm:$0x1]
    %v3204 = vshrl.u32 %v3171, 16
    %v3206 = vrot.slane %v3204, 4
    %v3207 = vshll.u32 %v3171, 16
    %v3209 = vrot.slane %v3207, 5
    %v3210 = vor.u32 %v3206, %v3209
    %v3211 = vrot.slane %v3210, 4
    %v3213 = vshll.u32 %v3172, 16
    %v3215 = vrot.slane %v3213, 5
    %v3216 = vsel %vm230, %v3211, %v3215
    %v3218 = vshrl.u32 %v3173, 16
    %v3220 = vrot.slane %v3218, 4
    %v3221 = vshll.u32 %v3173, 16
    %v3223 = vrot.slane %v3221, 5
    %v3224 = vor.u32 %v3220, %v3223
    %v3225 = vrot.slane %v3224, 4
    %v3227 = vshll.u32 %v3174, 16
    %v3229 = vrot.slane %v3227, 5
    %v3230 = vsel %vm230, %v3225, %v3229
    %v3232 = vshrl.u32 %v3175, 16
    %v3234 = vrot.slane %v3232, 4
    %v3235 = vshll.u32 %v3175, 16
    %v3237 = vrot.slane %v3235, 5
    %v3238 = vor.u32 %v3234, %v3237
    %v3239 = vrot.slane %v3238, 4
    %v3241 = vshll.u32 %v3176, 16
    %v3243 = vrot.slane %v3241, 5
    %v3244 = vsel %vm230, %v3239, %v3243
    %v3246 = vshrl.u32 %v3177, 16
    %v3248 = vrot.slane %v3246, 4
    %v3249 = vshll.u32 %v3177, 16
    %v3251 = vrot.slane %v3249, 5
    %v3252 = vor.u32 %v3248, %v3251
    %v3253 = vrot.slane %v3252, 4
    %v3255 = vshll.u32 %v3178, 16
    %v3257 = vrot.slane %v3255, 5
    %v3258 = vsel %vm230, %v3253, %v3257
    %v3260 = vshrl.u32 %v3179, 16
    %v3262 = vrot.slane %v3260, 4
    %v3263 = vshll.u32 %v3179, 16
    %v3265 = vrot.slane %v3263, 5
    %v3266 = vor.u32 %v3262, %v3265
    %v3267 = vrot.slane %v3266, 4
    %v3269 = vshll.u32 %v3180, 16
    %v3271 = vrot.slane %v3269, 5
    %v3272 = vsel %vm230, %v3267, %v3271
    %v3274 = vshrl.u32 %v3181, 16
    %v3276 = vrot.slane %v3274, 4
    %v3277 = vshll.u32 %v3181, 16
    %v3279 = vrot.slane %v3277, 5
    %v3280 = vor.u32 %v3276, %v3279
    %v3281 = vrot.slane %v3280, 4
    %v3283 = vshll.u32 %v3182, 16
    %v3285 = vrot.slane %v3283, 5
    %v3286 = vsel %vm230, %v3281, %v3285
    %v3288 = vshrl.u32 %v3183, 16
    %v3290 = vrot.slane %v3288, 4
    %v3291 = vshll.u32 %v3183, 16
    %v3293 = vrot.slane %v3291, 5
    %v3294 = vor.u32 %v3290, %v3293
    %v3295 = vrot.slane %v3294, 4
    %v3297 = vshll.u32 %v3184, 16
    %v3299 = vrot.slane %v3297, 5
    %v3300 = vsel %vm230, %v3295, %v3299
    %v3302 = vshrl.u32 %v3185, 16
    %v3304 = vrot.slane %v3302, 4
    %v3305 = vshll.u32 %v3185, 16
    %v3307 = vrot.slane %v3305, 5
    %v3308 = vor.u32 %v3304, %v3307
    %v3309 = vrot.slane %v3308, 4
    %v3311 = vshll.u32 %v3186, 16
    %v3313 = vrot.slane %v3311, 5
    %v3314 = vsel %vm230, %v3309, %v3313
    %v3316 = vshrl.u32 %v3187, 16
    %v3318 = vrot.slane %v3316, 4
    %v3319 = vshll.u32 %v3187, 16
    %v3321 = vrot.slane %v3319, 5
    %v3322 = vor.u32 %v3318, %v3321
    %v3323 = vrot.slane %v3322, 4
    %v3325 = vshll.u32 %v3188, 16
    %v3327 = vrot.slane %v3325, 5
    %v3328 = vsel %vm230, %v3323, %v3327
    %v3330 = vshrl.u32 %v3189, 16
    %v3332 = vrot.slane %v3330, 4
    %v3333 = vshll.u32 %v3189, 16
    %v3335 = vrot.slane %v3333, 5
    %v3336 = vor.u32 %v3332, %v3335
    %v3337 = vrot.slane %v3336, 4
    %v3339 = vshll.u32 %v3190, 16
    %v3341 = vrot.slane %v3339, 5
    %v3342 = vsel %vm230, %v3337, %v3341
    %v3344 = vshrl.u32 %v3191, 16
    %v3346 = vrot.slane %v3344, 4
    %v3347 = vshll.u32 %v3191, 16
    %v3349 = vrot.slane %v3347, 5
    %v3350 = vor.u32 %v3346, %v3349
    %v3351 = vrot.slane %v3350, 4
    %v3353 = vshll.u32 %v3192, 16
    %v3355 = vrot.slane %v3353, 5
    %v3356 = vsel %vm230, %v3351, %v3355
    %v3358 = vshrl.u32 %v3193, 16
    %v3360 = vrot.slane %v3358, 4
    %v3361 = vshll.u32 %v3193, 16
    %v3363 = vrot.slane %v3361, 5
    %v3364 = vor.u32 %v3360, %v3363
    %v3365 = vrot.slane %v3364, 4
    %v3367 = vshll.u32 %v3194, 16
    %v3369 = vrot.slane %v3367, 5
    %v3370 = vsel %vm230, %v3365, %v3369
    %v3372 = vshrl.u32 %v3195, 16
    %v3374 = vrot.slane %v3372, 4
    %v3375 = vshll.u32 %v3195, 16
    %v3377 = vrot.slane %v3375, 5
    %v3378 = vor.u32 %v3374, %v3377
    %v3379 = vrot.slane %v3378, 4
    %v3381 = vshll.u32 %v3196, 16
    %v3383 = vrot.slane %v3381, 5
    %v3384 = vsel %vm230, %v3379, %v3383
    %v3386 = vshrl.u32 %v3197, 16
    %v3388 = vrot.slane %v3386, 4
    %v3389 = vshll.u32 %v3197, 16
    %v3391 = vrot.slane %v3389, 5
    %v3392 = vor.u32 %v3388, %v3391
    %v3393 = vrot.slane %v3392, 4
    %v3395 = vshll.u32 %v3198, 16
    %v3397 = vrot.slane %v3395, 5
    %v3398 = vsel %vm230, %v3393, %v3397
    %v3400 = vshrl.u32 %v3199, 16
    %v3402 = vrot.slane %v3400, 4
    %v3403 = vshll.u32 %v3199, 16
    %v3405 = vrot.slane %v3403, 5
    %v3406 = vor.u32 %v3402, %v3405
    %v3407 = vrot.slane %v3406, 4
    %v3409 = vshll.u32 %v3200, 16
    %v3411 = vrot.slane %v3409, 5
    %v3412 = vsel %vm230, %v3407, %v3411
    %v3414 = vshrl.u32 %v3201, 16
    %v3416 = vrot.slane %v3414, 4
    %v3417 = vshll.u32 %v3201, 16
    %v3419 = vrot.slane %v3417, 5
    %v3420 = vor.u32 %v3416, %v3419
    %v3421 = vrot.slane %v3420, 4
    %v3423 = vshll.u32 %v3202, 16
    %v3425 = vrot.slane %v3423, 5
    %v3426 = vsel %vm230, %v3421, %v3425
    %v3427 = vunpack.c.l.b16 %v3216
    %v3428 = vunpack.c.l.b16 %v3230
    %v3429 = vunpack.c.l.b16 %v3244
    %v3430 = vunpack.c.l.b16 %v3258
    %v3431 = vunpack.c.l.b16 %v3272
    %v3432 = vunpack.c.l.b16 %v3286
    %v3433 = vunpack.c.l.b16 %v3300
    %v3434 = vunpack.c.l.b16 %v3314
    %v3435 = vunpack.c.l.b16 %v3328
    %v3436 = vunpack.c.l.b16 %v3342
    %v3437 = vunpack.c.l.b16 %v3356
    %v3438 = vunpack.c.l.b16 %v3370
    %v3439 = vunpack.c.l.b16 %v3384
    %v3440 = vunpack.c.l.b16 %v3398
    %v3441 = vunpack.c.l.b16 %v3412
    %v3442 = vunpack.c.l.b16 %v3426
    %v3443 = vpack.c.b16 %v3428, %v3427
    %v3444 = vpack.c.b16 %v3430, %v3429
    %v3445 = vpack.c.b16 %v3432, %v3431
    %v3446 = vpack.c.b16 %v3434, %v3433
    %v3447 = vpack.c.b16 %v3436, %v3435
    %v3448 = vpack.c.b16 %v3438, %v3437
    %v3449 = vpack.c.b16 %v3440, %v3439
    %v3450 = vpack.c.b16 %v3442, %v3441
    %3459 = vst [vmem:[#allocation4 + $0x8] sm:$0xff] %v3443
    %3460 = vst [vmem:[#allocation4 + $0x50] sm:$0xff] %v3444
    %3461 = vst [vmem:[#allocation4 + $0x98] sm:$0xff] %v3445
    %3462 = vst [vmem:[#allocation4 + $0xe0] sm:$0xff] %v3446
    %3463 = vst [vmem:[#allocation4 + $0x128] sm:$0xff] %v3447
    %3464 = vst [vmem:[#allocation4 + $0x170] sm:$0xff] %v3448
    %3465 = vst [vmem:[#allocation4 + $0x1b8] sm:$0xff] %v3449
    %3466 = vst [vmem:[#allocation4 + $0x200] sm:$0xff] %v3450
    %v3467 = vld [vmem:[#allocation2] sm:$0xe]
    %v3468 = vld [vmem:[#allocation2 + $0x4] sm:$0x1]
    %v3469 = vld [vmem:[#allocation2 + $0x8] sm:$0xe]
    %v3470 = vld [vmem:[#allocation2 + $0xc] sm:$0x1]
    %v3471 = vld [vmem:[#allocation2 + $0x10] sm:$0xe]
    %v3472 = vld [vmem:[#allocation2 + $0x14] sm:$0x1]
    %v3473 = vld [vmem:[#allocation2 + $0x18] sm:$0xe]
    %v3474 = vld [vmem:[#allocation2 + $0x1c] sm:$0x1]
    %v3475 = vld [vmem:[#allocation2 + $0x20] sm:$0xe]
    %v3476 = vld [vmem:[#allocation2 + $0x24] sm:$0x1]
    %v3477 = vld [vmem:[#allocation2 + $0x28] sm:$0xe]
    %v3478 = vld [vmem:[#allocation2 + $0x2c] sm:$0x1]
    %v3479 = vld [vmem:[#allocation2 + $0x30] sm:$0xe]
    %v3480 = vld [vmem:[#allocation2 + $0x34] sm:$0x1]
    %v3481 = vld [vmem:[#allocation2 + $0x38] sm:$0xe]
    %v3482 = vld [vmem:[#allocation2 + $0x3c] sm:$0x1]
    %v3483 = vld [vmem:[#allocation2 + $0x50] sm:$0xe]
    %v3484 = vld [vmem:[#allocation2 + $0x54] sm:$0x1]
    %v3485 = vld [vmem:[#allocation2 + $0x58] sm:$0xe]
    %v3486 = vld [vmem:[#allocation2 + $0x5c] sm:$0x1]
    %v3487 = vld [vmem:[#allocation2 + $0x60] sm:$0xe]
    %v3488 = vld [vmem:[#allocation2 + $0x64] sm:$0x1]
    %v3489 = vld [vmem:[#allocation2 + $0x68] sm:$0xe]
    %v3490 = vld [vmem:[#allocation2 + $0x6c] sm:$0x1]
    %v3491 = vld [vmem:[#allocation2 + $0x70] sm:$0xe]
    %v3492 = vld [vmem:[#allocation2 + $0x74] sm:$0x1]
    %v3493 = vld [vmem:[#allocation2 + $0x78] sm:$0xe]
    %v3494 = vld [vmem:[#allocation2 + $0x7c] sm:$0x1]
    %v3495 = vld [vmem:[#allocation2 + $0x80] sm:$0xe]
    %v3496 = vld [vmem:[#allocation2 + $0x84] sm:$0x1]
    %v3497 = vld [vmem:[#allocation2 + $0x88] sm:$0xe]
    %v3498 = vld [vmem:[#allocation2 + $0x8c] sm:$0x1]
    %vm3531 = vcmask 1042432
    %vm3532 = vcmask 1046532
    %vm3533 = vmor %vm3531, %vm3532
    %v3534 = vrot.slane %v3467, 5
    %v3535 = vrot.slane %v3534, 4
    %v3536 = vrot.slane %v3468, 5
    %v3537 = vsel %vm3533, %v3535, %v3536
    %v3538 = vrot.slane %v3469, 5
    %v3539 = vrot.slane %v3538, 4
    %v3540 = vrot.slane %v3470, 5
    %v3541 = vsel %vm3533, %v3539, %v3540
    %v3542 = vrot.slane %v3471, 5
    %v3543 = vrot.slane %v3542, 4
    %v3544 = vrot.slane %v3472, 5
    %v3545 = vsel %vm3533, %v3543, %v3544
    %v3546 = vrot.slane %v3473, 5
    %v3547 = vrot.slane %v3546, 4
    %v3548 = vrot.slane %v3474, 5
    %v3549 = vsel %vm3533, %v3547, %v3548
    %v3550 = vrot.slane %v3475, 5
    %v3551 = vrot.slane %v3550, 4
    %v3552 = vrot.slane %v3476, 5
    %v3553 = vsel %vm3533, %v3551, %v3552
    %v3554 = vrot.slane %v3477, 5
    %v3555 = vrot.slane %v3554, 4
    %v3556 = vrot.slane %v3478, 5
    %v3557 = vsel %vm3533, %v3555, %v3556
    %v3558 = vrot.slane %v3479, 5
    %v3559 = vrot.slane %v3558, 4
    %v3560 = vrot.slane %v3480, 5
    %v3561 = vsel %vm3533, %v3559, %v3560
    %v3562 = vrot.slane %v3481, 5
    %v3563 = vrot.slane %v3562, 4
    %v3564 = vrot.slane %v3482, 5
    %v3565 = vsel %vm3533, %v3563, %v3564
    %v3566 = vrot.slane %v3483, 5
    %v3567 = vrot.slane %v3566, 4
    %v3568 = vrot.slane %v3484, 5
    %v3569 = vsel %vm3533, %v3567, %v3568
    %v3570 = vrot.slane %v3485, 5
    %v3571 = vrot.slane %v3570, 4
    %v3572 = vrot.slane %v3486, 5
    %v3573 = vsel %vm3533, %v3571, %v3572
    %v3574 = vrot.slane %v3487, 5
    %v3575 = vrot.slane %v3574, 4
    %v3576 = vrot.slane %v3488, 5
    %v3577 = vsel %vm3533, %v3575, %v3576
    %v3578 = vrot.slane %v3489, 5
    %v3579 = vrot.slane %v3578, 4
    %v3580 = vrot.slane %v3490, 5
    %v3581 = vsel %vm3533, %v3579, %v3580
    %v3582 = vrot.slane %v3491, 5
    %v3583 = vrot.slane %v3582, 4
    %v3584 = vrot.slane %v3492, 5
    %v3585 = vsel %vm3533, %v3583, %v3584
    %v3586 = vrot.slane %v3493, 5
    %v3587 = vrot.slane %v3586, 4
    %v3588 = vrot.slane %v3494, 5
    %v3589 = vsel %vm3533, %v3587, %v3588
    %v3590 = vrot.slane %v3495, 5
    %v3591 = vrot.slane %v3590, 4
    %v3592 = vrot.slane %v3496, 5
    %v3593 = vsel %vm3533, %v3591, %v3592
    %v3594 = vrot.slane %v3497, 5
    %v3595 = vrot.slane %v3594, 4
    %v3596 = vrot.slane %v3498, 5
    %v3597 = vsel %vm3533, %v3595, %v3596
    %v3598 = vunpack.c.l.b16 %v3537
    %v3599 = vunpack.c.l.b16 %v3541
    %v3600 = vunpack.c.l.b16 %v3545
    %v3601 = vunpack.c.l.b16 %v3549
    %v3602 = vunpack.c.l.b16 %v3553
    %v3603 = vunpack.c.l.b16 %v3557
    %v3604 = vunpack.c.l.b16 %v3561
    %v3605 = vunpack.c.l.b16 %v3565
    %v3606 = vunpack.c.l.b16 %v3569
    %v3607 = vunpack.c.l.b16 %v3573
    %v3608 = vunpack.c.l.b16 %v3577
    %v3609 = vunpack.c.l.b16 %v3581
    %v3610 = vunpack.c.l.b16 %v3585
    %v3611 = vunpack.c.l.b16 %v3589
    %v3612 = vunpack.c.l.b16 %v3593
    %v3613 = vunpack.c.l.b16 %v3597
    %v3614 = vpack.c.b16 %v3599, %v3598
    %v3615 = vpack.c.b16 %v3601, %v3600
    %v3616 = vpack.c.b16 %v3603, %v3602
    %v3617 = vpack.c.b16 %v3605, %v3604
    %v3618 = vpack.c.b16 %v3607, %v3606
    %v3619 = vpack.c.b16 %v3609, %v3608
    %v3620 = vpack.c.b16 %v3611, %v3610
    %v3621 = vpack.c.b16 %v3613, %v3612
    %3630 = vst [vmem:[#allocation4 + $0x10] sm:$0xff] %v3614
    %3631 = vst [vmem:[#allocation4 + $0x58] sm:$0xff] %v3615
    %3632 = vst [vmem:[#allocation4 + $0xa0] sm:$0xff] %v3616
    %3633 = vst [vmem:[#allocation4 + $0xe8] sm:$0xff] %v3617
    %3634 = vst [vmem:[#allocation4 + $0x130] sm:$0xff] %v3618
    %3635 = vst [vmem:[#allocation4 + $0x178] sm:$0xff] %v3619
    %3636 = vst [vmem:[#allocation4 + $0x1c0] sm:$0xff] %v3620
    %3637 = vst [vmem:[#allocation4 + $0x208] sm:$0xff] %v3621
    %v3638 = vld [vmem:[%s3000] sm:$0xf]
    %v3639 = vld [vmem:[%s3000 + $0x8] sm:$0xf]
    %v3640 = vld [vmem:[%s3000 + $0x10] sm:$0xf]
    %v3641 = vld [vmem:[%s3000 + $0x18] sm:$0xf]
    %v3642 = vld [vmem:[%s3000 + $0x20] sm:$0xf]
    %v3643 = vld [vmem:[%s3000 + $0x28] sm:$0xf]
    %v3644 = vld [vmem:[%s3000 + $0x30] sm:$0xf]
    %v3645 = vld [vmem:[%s3000 + $0x38] sm:$0xf]
    %v3646 = vld [vmem:[%s3000 + $0x50] sm:$0xf]
    %v3647 = vld [vmem:[%s3000 + $0x58] sm:$0xf]
    %v3648 = vld [vmem:[%s3000 + $0x60] sm:$0xf]
    %v3649 = vld [vmem:[%s3000 + $0x68] sm:$0xf]
    %v3650 = vld [vmem:[%s3000 + $0x70] sm:$0xf]
    %v3651 = vld [vmem:[%s3000 + $0x78] sm:$0xf]
    %v3652 = vld [vmem:[%s3000 + $0x80] sm:$0xf]
    %v3653 = vld [vmem:[%s3000 + $0x88] sm:$0xf]
    %v3670 = vunpack.c.l.b16 %v3638
    %v3671 = vunpack.c.l.b16 %v3639
    %v3672 = vunpack.c.l.b16 %v3640
    %v3673 = vunpack.c.l.b16 %v3641
    %v3674 = vunpack.c.l.b16 %v3642
    %v3675 = vunpack.c.l.b16 %v3643
    %v3676 = vunpack.c.l.b16 %v3644
    %v3677 = vunpack.c.l.b16 %v3645
    %v3678 = vunpack.c.l.b16 %v3646
    %v3679 = vunpack.c.l.b16 %v3647
    %v3680 = vunpack.c.l.b16 %v3648
    %v3681 = vunpack.c.l.b16 %v3649
    %v3682 = vunpack.c.l.b16 %v3650
    %v3683 = vunpack.c.l.b16 %v3651
    %v3684 = vunpack.c.l.b16 %v3652
    %v3685 = vunpack.c.l.b16 %v3653
    %v3686 = vpack.c.b16 %v3671, %v3670
    %v3687 = vpack.c.b16 %v3673, %v3672
    %v3688 = vpack.c.b16 %v3675, %v3674
    %v3689 = vpack.c.b16 %v3677, %v3676
    %v3690 = vpack.c.b16 %v3679, %v3678
    %v3691 = vpack.c.b16 %v3681, %v3680
    %v3692 = vpack.c.b16 %v3683, %v3682
    %v3693 = vpack.c.b16 %v3685, %v3684
    %3702 = vst [vmem:[#allocation4 + $0x18] sm:$0xff] %v3686
    %3703 = vst [vmem:[#allocation4 + $0x60] sm:$0xff] %v3687
    %3704 = vst [vmem:[#allocation4 + $0xa8] sm:$0xff] %v3688
    %3705 = vst [vmem:[#allocation4 + $0xf0] sm:$0xff] %v3689
    %3706 = vst [vmem:[#allocation4 + $0x138] sm:$0xff] %v3690
    %3707 = vst [vmem:[#allocation4 + $0x180] sm:$0xff] %v3691
    %3708 = vst [vmem:[#allocation4 + $0x1c8] sm:$0xff] %v3692
    %3709 = vst [vmem:[#allocation4 + $0x210] sm:$0xff] %v3693
    %v3710 = vld [vmem:[%s3000] sm:$0xf]
    %v3711 = vld [vmem:[%s3000 + $0x4] sm:$0x1]
    %v3712 = vld [vmem:[%s3000 + $0x8] sm:$0xf]
    %v3713 = vld [vmem:[%s3000 + $0xc] sm:$0x1]
    %v3714 = vld [vmem:[%s3000 + $0x10] sm:$0xf]
    %v3715 = vld [vmem:[%s3000 + $0x14] sm:$0x1]
    %v3716 = vld [vmem:[%s3000 + $0x18] sm:$0xf]
    %v3717 = vld [vmem:[%s3000 + $0x1c] sm:$0x1]
    %v3718 = vld [vmem:[%s3000 + $0x20] sm:$0xf]
    %v3719 = vld [vmem:[%s3000 + $0x24] sm:$0x1]
    %v3720 = vld [vmem:[%s3000 + $0x28] sm:$0xf]
    %v3721 = vld [vmem:[%s3000 + $0x2c] sm:$0x1]
    %v3722 = vld [vmem:[%s3000 + $0x30] sm:$0xf]
    %v3723 = vld [vmem:[%s3000 + $0x34] sm:$0x1]
    %v3724 = vld [vmem:[%s3000 + $0x38] sm:$0xf]
    %v3725 = vld [vmem:[%s3000 + $0x3c] sm:$0x1]
    %v3726 = vld [vmem:[%s3000 + $0x50] sm:$0xf]
    %v3727 = vld [vmem:[%s3000 + $0x54] sm:$0x1]
    %v3728 = vld [vmem:[%s3000 + $0x58] sm:$0xf]
    %v3729 = vld [vmem:[%s3000 + $0x5c] sm:$0x1]
    %v3730 = vld [vmem:[%s3000 + $0x60] sm:$0xf]
    %v3731 = vld [vmem:[%s3000 + $0x64] sm:$0x1]
    %v3732 = vld [vmem:[%s3000 + $0x68] sm:$0xf]
    %v3733 = vld [vmem:[%s3000 + $0x6c] sm:$0x1]
    %v3734 = vld [vmem:[%s3000 + $0x70] sm:$0xf]
    %v3735 = vld [vmem:[%s3000 + $0x74] sm:$0x1]
    %v3736 = vld [vmem:[%s3000 + $0x78] sm:$0xf]
    %v3737 = vld [vmem:[%s3000 + $0x7c] sm:$0x1]
    %v3738 = vld [vmem:[%s3000 + $0x80] sm:$0xf]
    %v3739 = vld [vmem:[%s3000 + $0x84] sm:$0x1]
    %v3740 = vld [vmem:[%s3000 + $0x88] sm:$0xf]
    %v3741 = vld [vmem:[%s3000 + $0x8c] sm:$0x1]
    %v3743 = vshrl.u32 %v3710, 16
    %v3745 = vrot.slane %v3743, 4
    %v3746 = vshll.u32 %v3710, 16
    %v3748 = vrot.slane %v3746, 5
    %v3749 = vor.u32 %v3745, %v3748
    %v3750 = vrot.slane %v3749, 4
    %v3752 = vshll.u32 %v3711, 16
    %v3754 = vrot.slane %v3752, 5
    %v3755 = vsel %vm230, %v3750, %v3754
    %v3757 = vshrl.u32 %v3712, 16
    %v3759 = vrot.slane %v3757, 4
    %v3760 = vshll.u32 %v3712, 16
    %v3762 = vrot.slane %v3760, 5
    %v3763 = vor.u32 %v3759, %v3762
    %v3764 = vrot.slane %v3763, 4
    %v3766 = vshll.u32 %v3713, 16
    %v3768 = vrot.slane %v3766, 5
    %v3769 = vsel %vm230, %v3764, %v3768
    %v3771 = vshrl.u32 %v3714, 16
    %v3773 = vrot.slane %v3771, 4
    %v3774 = vshll.u32 %v3714, 16
    %v3776 = vrot.slane %v3774, 5
    %v3777 = vor.u32 %v3773, %v3776
    %v3778 = vrot.slane %v3777, 4
    %v3780 = vshll.u32 %v3715, 16
    %v3782 = vrot.slane %v3780, 5
    %v3783 = vsel %vm230, %v3778, %v3782
    %v3785 = vshrl.u32 %v3716, 16
    %v3787 = vrot.slane %v3785, 4
    %v3788 = vshll.u32 %v3716, 16
    %v3790 = vrot.slane %v3788, 5
    %v3791 = vor.u32 %v3787, %v3790
    %v3792 = vrot.slane %v3791, 4
    %v3794 = vshll.u32 %v3717, 16
    %v3796 = vrot.slane %v3794, 5
    %v3797 = vsel %vm230, %v3792, %v3796
    %v3799 = vshrl.u32 %v3718, 16
    %v3801 = vrot.slane %v3799, 4
    %v3802 = vshll.u32 %v3718, 16
    %v3804 = vrot.slane %v3802, 5
    %v3805 = vor.u32 %v3801, %v3804
    %v3806 = vrot.slane %v3805, 4
    %v3808 = vshll.u32 %v3719, 16
    %v3810 = vrot.slane %v3808, 5
    %v3811 = vsel %vm230, %v3806, %v3810
    %v3813 = vshrl.u32 %v3720, 16
    %v3815 = vrot.slane %v3813, 4
    %v3816 = vshll.u32 %v3720, 16
    %v3818 = vrot.slane %v3816, 5
    %v3819 = vor.u32 %v3815, %v3818
    %v3820 = vrot.slane %v3819, 4
    %v3822 = vshll.u32 %v3721, 16
    %v3824 = vrot.slane %v3822, 5
    %v3825 = vsel %vm230, %v3820, %v3824
    %v3827 = vshrl.u32 %v3722, 16
    %v3829 = vrot.slane %v3827, 4
    %v3830 = vshll.u32 %v3722, 16
    %v3832 = vrot.slane %v3830, 5
    %v3833 = vor.u32 %v3829, %v3832
    %v3834 = vrot.slane %v3833, 4
    %v3836 = vshll.u32 %v3723, 16
    %v3838 = vrot.slane %v3836, 5
    %v3839 = vsel %vm230, %v3834, %v3838
    %v3841 = vshrl.u32 %v3724, 16
    %v3843 = vrot.slane %v3841, 4
    %v3844 = vshll.u32 %v3724, 16
    %v3846 = vrot.slane %v3844, 5
    %v3847 = vor.u32 %v3843, %v3846
    %v3848 = vrot.slane %v3847, 4
    %v3850 = vshll.u32 %v3725, 16
    %v3852 = vrot.slane %v3850, 5
    %v3853 = vsel %vm230, %v3848, %v3852
    %v3855 = vshrl.u32 %v3726, 16
    %v3857 = vrot.slane %v3855, 4
    %v3858 = vshll.u32 %v3726, 16
    %v3860 = vrot.slane %v3858, 5
    %v3861 = vor.u32 %v3857, %v3860
    %v3862 = vrot.slane %v3861, 4
    %v3864 = vshll.u32 %v3727, 16
    %v3866 = vrot.slane %v3864, 5
    %v3867 = vsel %vm230, %v3862, %v3866
    %v3869 = vshrl.u32 %v3728, 16
    %v3871 = vrot.slane %v3869, 4
    %v3872 = vshll.u32 %v3728, 16
    %v3874 = vrot.slane %v3872, 5
    %v3875 = vor.u32 %v3871, %v3874
    %v3876 = vrot.slane %v3875, 4
    %v3878 = vshll.u32 %v3729, 16
    %v3880 = vrot.slane %v3878, 5
    %v3881 = vsel %vm230, %v3876, %v3880
    %v3883 = vshrl.u32 %v3730, 16
    %v3885 = vrot.slane %v3883, 4
    %v3886 = vshll.u32 %v3730, 16
    %v3888 = vrot.slane %v3886, 5
    %v3889 = vor.u32 %v3885, %v3888
    %v3890 = vrot.slane %v3889, 4
    %v3892 = vshll.u32 %v3731, 16
    %v3894 = vrot.slane %v3892, 5
    %v3895 = vsel %vm230, %v3890, %v3894
    %v3897 = vshrl.u32 %v3732, 16
    %v3899 = vrot.slane %v3897, 4
    %v3900 = vshll.u32 %v3732, 16
    %v3902 = vrot.slane %v3900, 5
    %v3903 = vor.u32 %v3899, %v3902
    %v3904 = vrot.slane %v3903, 4
    %v3906 = vshll.u32 %v3733, 16
    %v3908 = vrot.slane %v3906, 5
    %v3909 = vsel %vm230, %v3904, %v3908
    %v3911 = vshrl.u32 %v3734, 16
    %v3913 = vrot.slane %v3911, 4
    %v3914 = vshll.u32 %v3734, 16
    %v3916 = vrot.slane %v3914, 5
    %v3917 = vor.u32 %v3913, %v3916
    %v3918 = vrot.slane %v3917, 4
    %v3920 = vshll.u32 %v3735, 16
    %v3922 = vrot.slane %v3920, 5
    %v3923 = vsel %vm230, %v3918, %v3922
    %v3925 = vshrl.u32 %v3736, 16
    %v3927 = vrot.slane %v3925, 4
    %v3928 = vshll.u32 %v3736, 16
    %v3930 = vrot.slane %v3928, 5
    %v3931 = vor.u32 %v3927, %v3930
    %v3932 = vrot.slane %v3931, 4
    %v3934 = vshll.u32 %v3737, 16
    %v3936 = vrot.slane %v3934, 5
    %v3937 = vsel %vm230, %v3932, %v3936
    %v3939 = vshrl.u32 %v3738, 16
    %v3941 = vrot.slane %v3939, 4
    %v3942 = vshll.u32 %v3738, 16
    %v3944 = vrot.slane %v3942, 5
    %v3945 = vor.u32 %v3941, %v3944
    %v3946 = vrot.slane %v3945, 4
    %v3948 = vshll.u32 %v3739, 16
    %v3950 = vrot.slane %v3948, 5
    %v3951 = vsel %vm230, %v3946, %v3950
    %v3953 = vshrl.u32 %v3740, 16
    %v3955 = vrot.slane %v3953, 4
    %v3956 = vshll.u32 %v3740, 16
    %v3958 = vrot.slane %v3956, 5
    %v3959 = vor.u32 %v3955, %v3958
    %v3960 = vrot.slane %v3959, 4
    %v3962 = vshll.u32 %v3741, 16
    %v3964 = vrot.slane %v3962, 5
    %v3965 = vsel %vm230, %v3960, %v3964
    %v3966 = vunpack.c.l.b16 %v3755
    %v3967 = vunpack.c.l.b16 %v3769
    %v3968 = vunpack.c.l.b16 %v3783
    %v3969 = vunpack.c.l.b16 %v3797
    %v3970 = vunpack.c.l.b16 %v3811
    %v3971 = vunpack.c.l.b16 %v3825
    %v3972 = vunpack.c.l.b16 %v3839
    %v3973 = vunpack.c.l.b16 %v3853
    %v3974 = vunpack.c.l.b16 %v3867
    %v3975 = vunpack.c.l.b16 %v3881
    %v3976 = vunpack.c.l.b16 %v3895
    %v3977 = vunpack.c.l.b16 %v3909
    %v3978 = vunpack.c.l.b16 %v3923
    %v3979 = vunpack.c.l.b16 %v3937
    %v3980 = vunpack.c.l.b16 %v3951
    %v3981 = vunpack.c.l.b16 %v3965
    %v3982 = vpack.c.b16 %v3967, %v3966
    %v3983 = vpack.c.b16 %v3969, %v3968
    %v3984 = vpack.c.b16 %v3971, %v3970
    %v3985 = vpack.c.b16 %v3973, %v3972
    %v3986 = vpack.c.b16 %v3975, %v3974
    %v3987 = vpack.c.b16 %v3977, %v3976
    %v3988 = vpack.c.b16 %v3979, %v3978
    %v3989 = vpack.c.b16 %v3981, %v3980
    %3998 = vst [vmem:[#allocation4 + $0x20] sm:$0xff] %v3982
    %3999 = vst [vmem:[#allocation4 + $0x68] sm:$0xff] %v3983
    %4000 = vst [vmem:[#allocation4 + $0xb0] sm:$0xff] %v3984
    %4001 = vst [vmem:[#allocation4 + $0xf8] sm:$0xff] %v3985
    %4002 = vst [vmem:[#allocation4 + $0x140] sm:$0xff] %v3986
    %4003 = vst [vmem:[#allocation4 + $0x188] sm:$0xff] %v3987
    %4004 = vst [vmem:[#allocation4 + $0x1d0] sm:$0xff] %v3988
    %4005 = vst [vmem:[#allocation4 + $0x218] sm:$0xff] %v3989
    %v4006 = vld [vmem:[%s3000] sm:$0xe]
    %v4007 = vld [vmem:[%s3000 + $0x4] sm:$0x1]
    %v4008 = vld [vmem:[%s3000 + $0x8] sm:$0xe]
    %v4009 = vld [vmem:[%s3000 + $0xc] sm:$0x1]
    %v4010 = vld [vmem:[%s3000 + $0x10] sm:$0xe]
    %v4011 = vld [vmem:[%s3000 + $0x14] sm:$0x1]
    %v4012 = vld [vmem:[%s3000 + $0x18] sm:$0xe]
    %v4013 = vld [vmem:[%s3000 + $0x1c] sm:$0x1]
    %v4014 = vld [vmem:[%s3000 + $0x20] sm:$0xe]
    %v4015 = vld [vmem:[%s3000 + $0x24] sm:$0x1]
    %v4016 = vld [vmem:[%s3000 + $0x28] sm:$0xe]
    %v4017 = vld [vmem:[%s3000 + $0x2c] sm:$0x1]
    %v4018 = vld [vmem:[%s3000 + $0x30] sm:$0xe]
    %v4019 = vld [vmem:[%s3000 + $0x34] sm:$0x1]
    %v4020 = vld [vmem:[%s3000 + $0x38] sm:$0xe]
    %v4021 = vld [vmem:[%s3000 + $0x3c] sm:$0x1]
    %v4022 = vld [vmem:[%s3000 + $0x50] sm:$0xe]
    %v4023 = vld [vmem:[%s3000 + $0x54] sm:$0x1]
    %v4024 = vld [vmem:[%s3000 + $0x58] sm:$0xe]
    %v4025 = vld [vmem:[%s3000 + $0x5c] sm:$0x1]
    %v4026 = vld [vmem:[%s3000 + $0x60] sm:$0xe]
    %v4027 = vld [vmem:[%s3000 + $0x64] sm:$0x1]
    %v4028 = vld [vmem:[%s3000 + $0x68] sm:$0xe]
    %v4029 = vld [vmem:[%s3000 + $0x6c] sm:$0x1]
    %v4030 = vld [vmem:[%s3000 + $0x70] sm:$0xe]
    %v4031 = vld [vmem:[%s3000 + $0x74] sm:$0x1]
    %v4032 = vld [vmem:[%s3000 + $0x78] sm:$0xe]
    %v4033 = vld [vmem:[%s3000 + $0x7c] sm:$0x1]
    %v4034 = vld [vmem:[%s3000 + $0x80] sm:$0xe]
    %v4035 = vld [vmem:[%s3000 + $0x84] sm:$0x1]
    %v4036 = vld [vmem:[%s3000 + $0x88] sm:$0xe]
    %v4037 = vld [vmem:[%s3000 + $0x8c] sm:$0x1]
    %v4070 = vrot.slane %v4006, 5
    %v4071 = vrot.slane %v4070, 4
    %v4072 = vrot.slane %v4007, 5
    %v4073 = vsel %vm3533, %v4071, %v4072
    %v4074 = vrot.slane %v4008, 5
    %v4075 = vrot.slane %v4074, 4
    %v4076 = vrot.slane %v4009, 5
    %v4077 = vsel %vm3533, %v4075, %v4076
    %v4078 = vrot.slane %v4010, 5
    %v4079 = vrot.slane %v4078, 4
    %v4080 = vrot.slane %v4011, 5
    %v4081 = vsel %vm3533, %v4079, %v4080
    %v4082 = vrot.slane %v4012, 5
    %v4083 = vrot.slane %v4082, 4
    %v4084 = vrot.slane %v4013, 5
    %v4085 = vsel %vm3533, %v4083, %v4084
    %v4086 = vrot.slane %v4014, 5
    %v4087 = vrot.slane %v4086, 4
    %v4088 = vrot.slane %v4015, 5
    %v4089 = vsel %vm3533, %v4087, %v4088
    %v4090 = vrot.slane %v4016, 5
    %v4091 = vrot.slane %v4090, 4
    %v4092 = vrot.slane %v4017, 5
    %v4093 = vsel %vm3533, %v4091, %v4092
    %v4094 = vrot.slane %v4018, 5
    %v4095 = vrot.slane %v4094, 4
    %v4096 = vrot.slane %v4019, 5
    %v4097 = vsel %vm3533, %v4095, %v4096
    %v4098 = vrot.slane %v4020, 5
    %v4099 = vrot.slane %v4098, 4
    %v4100 = vrot.slane %v4021, 5
    %v4101 = vsel %vm3533, %v4099, %v4100
    %v4102 = vrot.slane %v4022, 5
    %v4103 = vrot.slane %v4102, 4
    %v4104 = vrot.slane %v4023, 5
    %v4105 = vsel %vm3533, %v4103, %v4104
    %v4106 = vrot.slane %v4024, 5
    %v4107 = vrot.slane %v4106, 4
    %v4108 = vrot.slane %v4025, 5
    %v4109 = vsel %vm3533, %v4107, %v4108
    %v4110 = vrot.slane %v4026, 5
    %v4111 = vrot.slane %v4110, 4
    %v4112 = vrot.slane %v4027, 5
    %v4113 = vsel %vm3533, %v4111, %v4112
    %v4114 = vrot.slane %v4028, 5
    %v4115 = vrot.slane %v4114, 4
    %v4116 = vrot.slane %v4029, 5
    %v4117 = vsel %vm3533, %v4115, %v4116
    %v4118 = vrot.slane %v4030, 5
    %v4119 = vrot.slane %v4118, 4
    %v4120 = vrot.slane %v4031, 5
    %v4121 = vsel %vm3533, %v4119, %v4120
    %v4122 = vrot.slane %v4032, 5
    %v4123 = vrot.slane %v4122, 4
    %v4124 = vrot.slane %v4033, 5
    %v4125 = vsel %vm3533, %v4123, %v4124
    %v4126 = vrot.slane %v4034, 5
    %v4127 = vrot.slane %v4126, 4
    %v4128 = vrot.slane %v4035, 5
    %v4129 = vsel %vm3533, %v4127, %v4128
    %v4130 = vrot.slane %v4036, 5
    %v4131 = vrot.slane %v4130, 4
    %v4132 = vrot.slane %v4037, 5
    %v4133 = vsel %vm3533, %v4131, %v4132
    %v4134 = vunpack.c.l.b16 %v4073
    %v4135 = vunpack.c.l.b16 %v4077
    %v4136 = vunpack.c.l.b16 %v4081
    %v4137 = vunpack.c.l.b16 %v4085
    %v4138 = vunpack.c.l.b16 %v4089
    %v4139 = vunpack.c.l.b16 %v4093
    %v4140 = vunpack.c.l.b16 %v4097
    %v4141 = vunpack.c.l.b16 %v4101
    %v4142 = vunpack.c.l.b16 %v4105
    %v4143 = vunpack.c.l.b16 %v4109
    %v4144 = vunpack.c.l.b16 %v4113
    %v4145 = vunpack.c.l.b16 %v4117
    %v4146 = vunpack.c.l.b16 %v4121
    %v4147 = vunpack.c.l.b16 %v4125
    %v4148 = vunpack.c.l.b16 %v4129
    %v4149 = vunpack.c.l.b16 %v4133
    %v4150 = vpack.c.b16 %v4135, %v4134
    %v4151 = vpack.c.b16 %v4137, %v4136
    %v4152 = vpack.c.b16 %v4139, %v4138
    %v4153 = vpack.c.b16 %v4141, %v4140
    %v4154 = vpack.c.b16 %v4143, %v4142
    %v4155 = vpack.c.b16 %v4145, %v4144
    %v4156 = vpack.c.b16 %v4147, %v4146
    %v4157 = vpack.c.b16 %v4149, %v4148
    %4166 = vst [vmem:[#allocation4 + $0x28] sm:$0xff] %v4150
    %4167 = vst [vmem:[#allocation4 + $0x70] sm:$0xff] %v4151
    %4168 = vst [vmem:[#allocation4 + $0xb8] sm:$0xff] %v4152
    %4169 = vst [vmem:[#allocation4 + $0x100] sm:$0xff] %v4153
    %4170 = vst [vmem:[#allocation4 + $0x148] sm:$0xff] %v4154
    %4171 = vst [vmem:[#allocation4 + $0x190] sm:$0xff] %v4155
    %4172 = vst [vmem:[#allocation4 + $0x1d8] sm:$0xff] %v4156
    %4173 = vst [vmem:[#allocation4 + $0x220] sm:$0xff] %v4157
    %s4174 = scalar_lea.vmem [#allocation2], 16
    %v4175 = vld [vmem:[%s4174] sm:$0xf]
    %v4176 = vld [vmem:[%s4174 + $0x8] sm:$0xf]
    %v4177 = vld [vmem:[%s4174 + $0x10] sm:$0xf]
    %v4178 = vld [vmem:[%s4174 + $0x18] sm:$0xf]
    %v4179 = vld [vmem:[%s4174 + $0x20] sm:$0xf]
    %v4180 = vld [vmem:[%s4174 + $0x28] sm:$0xf]
    %v4181 = vld [vmem:[%s4174 + $0x30] sm:$0xf]
    %v4182 = vld [vmem:[%s4174 + $0x38] sm:$0xf]
    %v4183 = vld [vmem:[%s4174 + $0x50] sm:$0xf]
    %v4184 = vld [vmem:[%s4174 + $0x58] sm:$0xf]
    %v4185 = vld [vmem:[%s4174 + $0x60] sm:$0xf]
    %v4186 = vld [vmem:[%s4174 + $0x68] sm:$0xf]
    %v4187 = vld [vmem:[%s4174 + $0x70] sm:$0xf]
    %v4188 = vld [vmem:[%s4174 + $0x78] sm:$0xf]
    %v4189 = vld [vmem:[%s4174 + $0x80] sm:$0xf]
    %v4190 = vld [vmem:[%s4174 + $0x88] sm:$0xf]
    %v4207 = vunpack.c.l.b16 %v4175
    %v4208 = vunpack.c.l.b16 %v4176
    %v4209 = vunpack.c.l.b16 %v4177
    %v4210 = vunpack.c.l.b16 %v4178
    %v4211 = vunpack.c.l.b16 %v4179
    %v4212 = vunpack.c.l.b16 %v4180
    %v4213 = vunpack.c.l.b16 %v4181
    %v4214 = vunpack.c.l.b16 %v4182
    %v4215 = vunpack.c.l.b16 %v4183
    %v4216 = vunpack.c.l.b16 %v4184
    %v4217 = vunpack.c.l.b16 %v4185
    %v4218 = vunpack.c.l.b16 %v4186
    %v4219 = vunpack.c.l.b16 %v4187
    %v4220 = vunpack.c.l.b16 %v4188
    %v4221 = vunpack.c.l.b16 %v4189
    %v4222 = vunpack.c.l.b16 %v4190
    %v4223 = vpack.c.b16 %v4208, %v4207
    %v4224 = vpack.c.b16 %v4210, %v4209
    %v4225 = vpack.c.b16 %v4212, %v4211
    %v4226 = vpack.c.b16 %v4214, %v4213
    %v4227 = vpack.c.b16 %v4216, %v4215
    %v4228 = vpack.c.b16 %v4218, %v4217
    %v4229 = vpack.c.b16 %v4220, %v4219
    %v4230 = vpack.c.b16 %v4222, %v4221
    %4239 = vst [vmem:[#allocation4 + $0x30] sm:$0xff] %v4223
    %4240 = vst [vmem:[#allocation4 + $0x78] sm:$0xff] %v4224
    %4241 = vst [vmem:[#allocation4 + $0xc0] sm:$0xff] %v4225
    %4242 = vst [vmem:[#allocation4 + $0x108] sm:$0xff] %v4226
    %4243 = vst [vmem:[#allocation4 + $0x150] sm:$0xff] %v4227
    %4244 = vst [vmem:[#allocation4 + $0x198] sm:$0xff] %v4228
    %4245 = vst [vmem:[#allocation4 + $0x1e0] sm:$0xff] %v4229
    %4246 = vst [vmem:[#allocation4 + $0x228] sm:$0xff] %v4230
    %v4247 = vld [vmem:[%s4174] sm:$0xf]
    %v4248 = vld [vmem:[%s4174 + $0x4] sm:$0x1]
    %v4249 = vld [vmem:[%s4174 + $0x8] sm:$0xf]
    %v4250 = vld [vmem:[%s4174 + $0xc] sm:$0x1]
    %v4251 = vld [vmem:[%s4174 + $0x10] sm:$0xf]
    %v4252 = vld [vmem:[%s4174 + $0x14] sm:$0x1]
    %v4253 = vld [vmem:[%s4174 + $0x18] sm:$0xf]
    %v4254 = vld [vmem:[%s4174 + $0x1c] sm:$0x1]
    %v4255 = vld [vmem:[%s4174 + $0x20] sm:$0xf]
    %v4256 = vld [vmem:[%s4174 + $0x24] sm:$0x1]
    %v4257 = vld [vmem:[%s4174 + $0x28] sm:$0xf]
    %v4258 = vld [vmem:[%s4174 + $0x2c] sm:$0x1]
    %v4259 = vld [vmem:[%s4174 + $0x30] sm:$0xf]
    %v4260 = vld [vmem:[%s4174 + $0x34] sm:$0x1]
    %v4261 = vld [vmem:[%s4174 + $0x38] sm:$0xf]
    %v4262 = vld [vmem:[%s4174 + $0x3c] sm:$0x1]
    %v4263 = vld [vmem:[%s4174 + $0x50] sm:$0xf]
    %v4264 = vld [vmem:[%s4174 + $0x54] sm:$0x1]
    %v4265 = vld [vmem:[%s4174 + $0x58] sm:$0xf]
    %v4266 = vld [vmem:[%s4174 + $0x5c] sm:$0x1]
    %v4267 = vld [vmem:[%s4174 + $0x60] sm:$0xf]
    %v4268 = vld [vmem:[%s4174 + $0x64] sm:$0x1]
    %v4269 = vld [vmem:[%s4174 + $0x68] sm:$0xf]
    %v4270 = vld [vmem:[%s4174 + $0x6c] sm:$0x1]
    %v4271 = vld [vmem:[%s4174 + $0x70] sm:$0xf]
    %v4272 = vld [vmem:[%s4174 + $0x74] sm:$0x1]
    %v4273 = vld [vmem:[%s4174 + $0x78] sm:$0xf]
    %v4274 = vld [vmem:[%s4174 + $0x7c] sm:$0x1]
    %v4275 = vld [vmem:[%s4174 + $0x80] sm:$0xf]
    %v4276 = vld [vmem:[%s4174 + $0x84] sm:$0x1]
    %v4277 = vld [vmem:[%s4174 + $0x88] sm:$0xf]
    %v4278 = vld [vmem:[%s4174 + $0x8c] sm:$0x1]
    %v4280 = vshrl.u32 %v4247, 16
    %v4282 = vrot.slane %v4280, 4
    %v4283 = vshll.u32 %v4247, 16
    %v4285 = vrot.slane %v4283, 5
    %v4286 = vor.u32 %v4282, %v4285
    %v4287 = vrot.slane %v4286, 4
    %v4289 = vshll.u32 %v4248, 16
    %v4291 = vrot.slane %v4289, 5
    %v4292 = vsel %vm230, %v4287, %v4291
    %v4294 = vshrl.u32 %v4249, 16
    %v4296 = vrot.slane %v4294, 4
    %v4297 = vshll.u32 %v4249, 16
    %v4299 = vrot.slane %v4297, 5
    %v4300 = vor.u32 %v4296, %v4299
    %v4301 = vrot.slane %v4300, 4
    %v4303 = vshll.u32 %v4250, 16
    %v4305 = vrot.slane %v4303, 5
    %v4306 = vsel %vm230, %v4301, %v4305
    %v4308 = vshrl.u32 %v4251, 16
    %v4310 = vrot.slane %v4308, 4
    %v4311 = vshll.u32 %v4251, 16
    %v4313 = vrot.slane %v4311, 5
    %v4314 = vor.u32 %v4310, %v4313
    %v4315 = vrot.slane %v4314, 4
    %v4317 = vshll.u32 %v4252, 16
    %v4319 = vrot.slane %v4317, 5
    %v4320 = vsel %vm230, %v4315, %v4319
    %v4322 = vshrl.u32 %v4253, 16
    %v4324 = vrot.slane %v4322, 4
    %v4325 = vshll.u32 %v4253, 16
    %v4327 = vrot.slane %v4325, 5
    %v4328 = vor.u32 %v4324, %v4327
    %v4329 = vrot.slane %v4328, 4
    %v4331 = vshll.u32 %v4254, 16
    %v4333 = vrot.slane %v4331, 5
    %v4334 = vsel %vm230, %v4329, %v4333
    %v4336 = vshrl.u32 %v4255, 16
    %v4338 = vrot.slane %v4336, 4
    %v4339 = vshll.u32 %v4255, 16
    %v4341 = vrot.slane %v4339, 5
    %v4342 = vor.u32 %v4338, %v4341
    %v4343 = vrot.slane %v4342, 4
    %v4345 = vshll.u32 %v4256, 16
    %v4347 = vrot.slane %v4345, 5
    %v4348 = vsel %vm230, %v4343, %v4347
    %v4350 = vshrl.u32 %v4257, 16
    %v4352 = vrot.slane %v4350, 4
    %v4353 = vshll.u32 %v4257, 16
    %v4355 = vrot.slane %v4353, 5
    %v4356 = vor.u32 %v4352, %v4355
    %v4357 = vrot.slane %v4356, 4
    %v4359 = vshll.u32 %v4258, 16
    %v4361 = vrot.slane %v4359, 5
    %v4362 = vsel %vm230, %v4357, %v4361
    %v4364 = vshrl.u32 %v4259, 16
    %v4366 = vrot.slane %v4364, 4
    %v4367 = vshll.u32 %v4259, 16
    %v4369 = vrot.slane %v4367, 5
    %v4370 = vor.u32 %v4366, %v4369
    %v4371 = vrot.slane %v4370, 4
    %v4373 = vshll.u32 %v4260, 16
    %v4375 = vrot.slane %v4373, 5
    %v4376 = vsel %vm230, %v4371, %v4375
    %v4378 = vshrl.u32 %v4261, 16
    %v4380 = vrot.slane %v4378, 4
    %v4381 = vshll.u32 %v4261, 16
    %v4383 = vrot.slane %v4381, 5
    %v4384 = vor.u32 %v4380, %v4383
    %v4385 = vrot.slane %v4384, 4
    %v4387 = vshll.u32 %v4262, 16
    %v4389 = vrot.slane %v4387, 5
    %v4390 = vsel %vm230, %v4385, %v4389
    %v4392 = vshrl.u32 %v4263, 16
    %v4394 = vrot.slane %v4392, 4
    %v4395 = vshll.u32 %v4263, 16
    %v4397 = vrot.slane %v4395, 5
    %v4398 = vor.u32 %v4394, %v4397
    %v4399 = vrot.slane %v4398, 4
    %v4401 = vshll.u32 %v4264, 16
    %v4403 = vrot.slane %v4401, 5
    %v4404 = vsel %vm230, %v4399, %v4403
    %v4406 = vshrl.u32 %v4265, 16
    %v4408 = vrot.slane %v4406, 4
    %v4409 = vshll.u32 %v4265, 16
    %v4411 = vrot.slane %v4409, 5
    %v4412 = vor.u32 %v4408, %v4411
    %v4413 = vrot.slane %v4412, 4
    %v4415 = vshll.u32 %v4266, 16
    %v4417 = vrot.slane %v4415, 5
    %v4418 = vsel %vm230, %v4413, %v4417
    %v4420 = vshrl.u32 %v4267, 16
    %v4422 = vrot.slane %v4420, 4
    %v4423 = vshll.u32 %v4267, 16
    %v4425 = vrot.slane %v4423, 5
    %v4426 = vor.u32 %v4422, %v4425
    %v4427 = vrot.slane %v4426, 4
    %v4429 = vshll.u32 %v4268, 16
    %v4431 = vrot.slane %v4429, 5
    %v4432 = vsel %vm230, %v4427, %v4431
    %v4434 = vshrl.u32 %v4269, 16
    %v4436 = vrot.slane %v4434, 4
    %v4437 = vshll.u32 %v4269, 16
    %v4439 = vrot.slane %v4437, 5
    %v4440 = vor.u32 %v4436, %v4439
    %v4441 = vrot.slane %v4440, 4
    %v4443 = vshll.u32 %v4270, 16
    %v4445 = vrot.slane %v4443, 5
    %v4446 = vsel %vm230, %v4441, %v4445
    %v4448 = vshrl.u32 %v4271, 16
    %v4450 = vrot.slane %v4448, 4
    %v4451 = vshll.u32 %v4271, 16
    %v4453 = vrot.slane %v4451, 5
    %v4454 = vor.u32 %v4450, %v4453
    %v4455 = vrot.slane %v4454, 4
    %v4457 = vshll.u32 %v4272, 16
    %v4459 = vrot.slane %v4457, 5
    %v4460 = vsel %vm230, %v4455, %v4459
    %v4462 = vshrl.u32 %v4273, 16
    %v4464 = vrot.slane %v4462, 4
    %v4465 = vshll.u32 %v4273, 16
    %v4467 = vrot.slane %v4465, 5
    %v4468 = vor.u32 %v4464, %v4467
    %v4469 = vrot.slane %v4468, 4
    %v4471 = vshll.u32 %v4274, 16
    %v4473 = vrot.slane %v4471, 5
    %v4474 = vsel %vm230, %v4469, %v4473
    %v4476 = vshrl.u32 %v4275, 16
    %v4478 = vrot.slane %v4476, 4
    %v4479 = vshll.u32 %v4275, 16
    %v4481 = vrot.slane %v4479, 5
    %v4482 = vor.u32 %v4478, %v4481
    %v4483 = vrot.slane %v4482, 4
    %v4485 = vshll.u32 %v4276, 16
    %v4487 = vrot.slane %v4485, 5
    %v4488 = vsel %vm230, %v4483, %v4487
    %v4490 = vshrl.u32 %v4277, 16
    %v4492 = vrot.slane %v4490, 4
    %v4493 = vshll.u32 %v4277, 16
    %v4495 = vrot.slane %v4493, 5
    %v4496 = vor.u32 %v4492, %v4495
    %v4497 = vrot.slane %v4496, 4
    %v4499 = vshll.u32 %v4278, 16
    %v4501 = vrot.slane %v4499, 5
    %v4502 = vsel %vm230, %v4497, %v4501
    %v4503 = vunpack.c.l.b16 %v4292
    %v4504 = vunpack.c.l.b16 %v4306
    %v4505 = vunpack.c.l.b16 %v4320
    %v4506 = vunpack.c.l.b16 %v4334
    %v4507 = vunpack.c.l.b16 %v4348
    %v4508 = vunpack.c.l.b16 %v4362
    %v4509 = vunpack.c.l.b16 %v4376
    %v4510 = vunpack.c.l.b16 %v4390
    %v4511 = vunpack.c.l.b16 %v4404
    %v4512 = vunpack.c.l.b16 %v4418
    %v4513 = vunpack.c.l.b16 %v4432
    %v4514 = vunpack.c.l.b16 %v4446
    %v4515 = vunpack.c.l.b16 %v4460
    %v4516 = vunpack.c.l.b16 %v4474
    %v4517 = vunpack.c.l.b16 %v4488
    %v4518 = vunpack.c.l.b16 %v4502
    %v4519 = vpack.c.b16 %v4504, %v4503
    %v4520 = vpack.c.b16 %v4506, %v4505
    %v4521 = vpack.c.b16 %v4508, %v4507
    %v4522 = vpack.c.b16 %v4510, %v4509
    %v4523 = vpack.c.b16 %v4512, %v4511
    %v4524 = vpack.c.b16 %v4514, %v4513
    %v4525 = vpack.c.b16 %v4516, %v4515
    %v4526 = vpack.c.b16 %v4518, %v4517
    %4535 = vst [vmem:[#allocation4 + $0x38] sm:$0xff] %v4519
    %4536 = vst [vmem:[#allocation4 + $0x80] sm:$0xff] %v4520
    %4537 = vst [vmem:[#allocation4 + $0xc8] sm:$0xff] %v4521
    %4538 = vst [vmem:[#allocation4 + $0x110] sm:$0xff] %v4522
    %4539 = vst [vmem:[#allocation4 + $0x158] sm:$0xff] %v4523
    %4540 = vst [vmem:[#allocation4 + $0x1a0] sm:$0xff] %v4524
    %4541 = vst [vmem:[#allocation4 + $0x1e8] sm:$0xff] %v4525
    %4542 = vst [vmem:[#allocation4 + $0x230] sm:$0xff] %v4526
    %v4543 = vld [vmem:[%s4174] sm:$0xe]
    %v4544 = vld [vmem:[%s4174 + $0x4] sm:$0x1]
    %v4545 = vld [vmem:[%s4174 + $0x8] sm:$0xe]
    %v4546 = vld [vmem:[%s4174 + $0xc] sm:$0x1]
    %v4547 = vld [vmem:[%s4174 + $0x10] sm:$0xe]
    %v4548 = vld [vmem:[%s4174 + $0x14] sm:$0x1]
    %v4549 = vld [vmem:[%s4174 + $0x18] sm:$0xe]
    %v4550 = vld [vmem:[%s4174 + $0x1c] sm:$0x1]
    %v4551 = vld [vmem:[%s4174 + $0x20] sm:$0xe]
    %v4552 = vld [vmem:[%s4174 + $0x24] sm:$0x1]
    %v4553 = vld [vmem:[%s4174 + $0x28] sm:$0xe]
    %v4554 = vld [vmem:[%s4174 + $0x2c] sm:$0x1]
    %v4555 = vld [vmem:[%s4174 + $0x30] sm:$0xe]
    %v4556 = vld [vmem:[%s4174 + $0x34] sm:$0x1]
    %v4557 = vld [vmem:[%s4174 + $0x38] sm:$0xe]
    %v4558 = vld [vmem:[%s4174 + $0x3c] sm:$0x1]
    %v4559 = vld [vmem:[%s4174 + $0x50] sm:$0xe]
    %v4560 = vld [vmem:[%s4174 + $0x54] sm:$0x1]
    %v4561 = vld [vmem:[%s4174 + $0x58] sm:$0xe]
    %v4562 = vld [vmem:[%s4174 + $0x5c] sm:$0x1]
    %v4563 = vld [vmem:[%s4174 + $0x60] sm:$0xe]
    %v4564 = vld [vmem:[%s4174 + $0x64] sm:$0x1]
    %v4565 = vld [vmem:[%s4174 + $0x68] sm:$0xe]
    %v4566 = vld [vmem:[%s4174 + $0x6c] sm:$0x1]
    %v4567 = vld [vmem:[%s4174 + $0x70] sm:$0xe]
    %v4568 = vld [vmem:[%s4174 + $0x74] sm:$0x1]
    %v4569 = vld [vmem:[%s4174 + $0x78] sm:$0xe]
    %v4570 = vld [vmem:[%s4174 + $0x7c] sm:$0x1]
    %v4571 = vld [vmem:[%s4174 + $0x80] sm:$0xe]
    %v4572 = vld [vmem:[%s4174 + $0x84] sm:$0x1]
    %v4573 = vld [vmem:[%s4174 + $0x88] sm:$0xe]
    %v4574 = vld [vmem:[%s4174 + $0x8c] sm:$0x1]
    %v4607 = vrot.slane %v4543, 5
    %v4608 = vrot.slane %v4607, 4
    %v4609 = vrot.slane %v4544, 5
    %v4610 = vsel %vm3533, %v4608, %v4609
    %v4611 = vrot.slane %v4545, 5
    %v4612 = vrot.slane %v4611, 4
    %v4613 = vrot.slane %v4546, 5
    %v4614 = vsel %vm3533, %v4612, %v4613
    %v4615 = vrot.slane %v4547, 5
    %v4616 = vrot.slane %v4615, 4
    %v4617 = vrot.slane %v4548, 5
    %v4618 = vsel %vm3533, %v4616, %v4617
    %v4619 = vrot.slane %v4549, 5
    %v4620 = vrot.slane %v4619, 4
    %v4621 = vrot.slane %v4550, 5
    %v4622 = vsel %vm3533, %v4620, %v4621
    %v4623 = vrot.slane %v4551, 5
    %v4624 = vrot.slane %v4623, 4
    %v4625 = vrot.slane %v4552, 5
    %v4626 = vsel %vm3533, %v4624, %v4625
    %v4627 = vrot.slane %v4553, 5
    %v4628 = vrot.slane %v4627, 4
    %v4629 = vrot.slane %v4554, 5
    %v4630 = vsel %vm3533, %v4628, %v4629
    %v4631 = vrot.slane %v4555, 5
    %v4632 = vrot.slane %v4631, 4
    %v4633 = vrot.slane %v4556, 5
    %v4634 = vsel %vm3533, %v4632, %v4633
    %v4635 = vrot.slane %v4557, 5
    %v4636 = vrot.slane %v4635, 4
    %v4637 = vrot.slane %v4558, 5
    %v4638 = vsel %vm3533, %v4636, %v4637
    %v4639 = vrot.slane %v4559, 5
    %v4640 = vrot.slane %v4639, 4
    %v4641 = vrot.slane %v4560, 5
    %v4642 = vsel %vm3533, %v4640, %v4641
    %v4643 = vrot.slane %v4561, 5
    %v4644 = vrot.slane %v4643, 4
    %v4645 = vrot.slane %v4562, 5
    %v4646 = vsel %vm3533, %v4644, %v4645
    %v4647 = vrot.slane %v4563, 5
    %v4648 = vrot.slane %v4647, 4
    %v4649 = vrot.slane %v4564, 5
    %v4650 = vsel %vm3533, %v4648, %v4649
    %v4651 = vrot.slane %v4565, 5
    %v4652 = vrot.slane %v4651, 4
    %v4653 = vrot.slane %v4566, 5
    %v4654 = vsel %vm3533, %v4652, %v4653
    %v4655 = vrot.slane %v4567, 5
    %v4656 = vrot.slane %v4655, 4
    %v4657 = vrot.slane %v4568, 5
    %v4658 = vsel %vm3533, %v4656, %v4657
    %v4659 = vrot.slane %v4569, 5
    %v4660 = vrot.slane %v4659, 4
    %v4661 = vrot.slane %v4570, 5
    %v4662 = vsel %vm3533, %v4660, %v4661
    %v4663 = vrot.slane %v4571, 5
    %v4664 = vrot.slane %v4663, 4
    %v4665 = vrot.slane %v4572, 5
    %v4666 = vsel %vm3533, %v4664, %v4665
    %v4667 = vrot.slane %v4573, 5
    %v4668 = vrot.slane %v4667, 4
    %v4669 = vrot.slane %v4574, 5
    %v4670 = vsel %vm3533, %v4668, %v4669
    %v4671 = vunpack.c.l.b16 %v4610
    %v4672 = vunpack.c.l.b16 %v4614
    %v4673 = vunpack.c.l.b16 %v4618
    %v4674 = vunpack.c.l.b16 %v4622
    %v4675 = vunpack.c.l.b16 %v4626
    %v4676 = vunpack.c.l.b16 %v4630
    %v4677 = vunpack.c.l.b16 %v4634
    %v4678 = vunpack.c.l.b16 %v4638
    %v4679 = vunpack.c.l.b16 %v4642
    %v4680 = vunpack.c.l.b16 %v4646
    %v4681 = vunpack.c.l.b16 %v4650
    %v4682 = vunpack.c.l.b16 %v4654
    %v4683 = vunpack.c.l.b16 %v4658
    %v4684 = vunpack.c.l.b16 %v4662
    %v4685 = vunpack.c.l.b16 %v4666
    %v4686 = vunpack.c.l.b16 %v4670
    %v4687 = vpack.c.b16 %v4672, %v4671
    %v4688 = vpack.c.b16 %v4674, %v4673
    %v4689 = vpack.c.b16 %v4676, %v4675
    %v4690 = vpack.c.b16 %v4678, %v4677
    %v4691 = vpack.c.b16 %v4680, %v4679
    %v4692 = vpack.c.b16 %v4682, %v4681
    %v4693 = vpack.c.b16 %v4684, %v4683
    %v4694 = vpack.c.b16 %v4686, %v4685
    %4703 = vst [vmem:[#allocation4 + $0x40] sm:$0xff] %v4687
    %4704 = vst [vmem:[#allocation4 + $0x88] sm:$0xff] %v4688
    %4705 = vst [vmem:[#allocation4 + $0xd0] sm:$0xff] %v4689
    %4706 = vst [vmem:[#allocation4 + $0x118] sm:$0xff] %v4690
    %4707 = vst [vmem:[#allocation4 + $0x160] sm:$0xff] %v4691
    %4708 = vst [vmem:[#allocation4 + $0x1a8] sm:$0xff] %v4692
    %4709 = vst [vmem:[#allocation4 + $0x1f0] sm:$0xff] %v4693
    %4710 = vst [vmem:[#allocation4 + $0x238] sm:$0xff] %v4694
    %v4711 = vld [vmem:[#allocation4] sm:$0xff]
    %v4712 = vld [vmem:[#allocation4 + $0x8] sm:$0xff]
    %v4713 = vld [vmem:[#allocation4 + $0x10] sm:$0xff]
    %v4714 = vld [vmem:[#allocation4 + $0x18] sm:$0xff]
    %v4715 = vld [vmem:[#allocation4 + $0x20] sm:$0xff]
    %v4716 = vld [vmem:[#allocation4 + $0x28] sm:$0xff]
    %v4717 = vld [vmem:[#allocation4 + $0x30] sm:$0xff]
    %v4718 = vld [vmem:[#allocation4 + $0x38] sm:$0xff]
    %v4719 = vld [vmem:[#allocation4 + $0x40] sm:$0xff]
    %v4720 = vld [vmem:[#allocation4 + $0x48] sm:$0xff]
    %v4721 = vld [vmem:[#allocation4 + $0x50] sm:$0xff]
    %v4722 = vld [vmem:[#allocation4 + $0x58] sm:$0xff]
    %v4723 = vld [vmem:[#allocation4 + $0x60] sm:$0xff]
    %v4724 = vld [vmem:[#allocation4 + $0x68] sm:$0xff]
    %v4725 = vld [vmem:[#allocation4 + $0x70] sm:$0xff]
    %v4726 = vld [vmem:[#allocation4 + $0x78] sm:$0xff]
    %v4727 = vld [vmem:[#allocation4 + $0x80] sm:$0xff]
    %v4728 = vld [vmem:[#allocation4 + $0x88] sm:$0xff]
    %v4729 = vld [vmem:[#allocation4 + $0x90] sm:$0xff]
    %v4730 = vld [vmem:[#allocation4 + $0x98] sm:$0xff]
    %v4731 = vld [vmem:[#allocation4 + $0xa0] sm:$0xff]
    %v4732 = vld [vmem:[#allocation4 + $0xa8] sm:$0xff]
    %v4733 = vld [vmem:[#allocation4 + $0xb0] sm:$0xff]
    %v4734 = vld [vmem:[#allocation4 + $0xb8] sm:$0xff]
    %v4735 = vld [vmem:[#allocation4 + $0xc0] sm:$0xff]
    %v4736 = vld [vmem:[#allocation4 + $0xc8] sm:$0xff]
    %v4737 = vld [vmem:[#allocation4 + $0xd0] sm:$0xff]
    %v4738 = vld [vmem:[#allocation4 + $0xd8] sm:$0xff]
    %v4739 = vld [vmem:[#allocation4 + $0xe0] sm:$0xff]
    %v4740 = vld [vmem:[#allocation4 + $0xe8] sm:$0xff]
    %v4741 = vld [vmem:[#allocation4 + $0xf0] sm:$0xff]
    %v4742 = vld [vmem:[#allocation4 + $0xf8] sm:$0xff]
    %v4743 = vld [vmem:[#allocation4 + $0x100] sm:$0xff]
    %v4744 = vld [vmem:[#allocation4 + $0x108] sm:$0xff]
    %v4745 = vld [vmem:[#allocation4 + $0x110] sm:$0xff]
    %v4746 = vld [vmem:[#allocation4 + $0x118] sm:$0xff]
    %v4747 = vld [vmem:[#allocation4 + $0x120] sm:$0xff]
    %v4748 = vld [vmem:[#allocation4 + $0x128] sm:$0xff]
    %v4749 = vld [vmem:[#allocation4 + $0x130] sm:$0xff]
    %v4750 = vld [vmem:[#allocation4 + $0x138] sm:$0xff]
    %v4751 = vld [vmem:[#allocation4 + $0x140] sm:$0xff]
    %v4752 = vld [vmem:[#allocation4 + $0x148] sm:$0xff]
    %v4753 = vld [vmem:[#allocation4 + $0x150] sm:$0xff]
    %v4754 = vld [vmem:[#allocation4 + $0x158] sm:$0xff]
    %v4755 = vld [vmem:[#allocation4 + $0x160] sm:$0xff]
    %v4756 = vld [vmem:[#allocation4 + $0x168] sm:$0xff]
    %v4757 = vld [vmem:[#allocation4 + $0x170] sm:$0xff]
    %v4758 = vld [vmem:[#allocation4 + $0x178] sm:$0xff]
    %v4759 = vld [vmem:[#allocation4 + $0x180] sm:$0xff]
    %v4760 = vld [vmem:[#allocation4 + $0x188] sm:$0xff]
    %v4761 = vld [vmem:[#allocation4 + $0x190] sm:$0xff]
    %v4762 = vld [vmem:[#allocation4 + $0x198] sm:$0xff]
    %v4763 = vld [vmem:[#allocation4 + $0x1a0] sm:$0xff]
    %v4764 = vld [vmem:[#allocation4 + $0x1a8] sm:$0xff]
    %v4765 = vld [vmem:[#allocation4 + $0x1b0] sm:$0xff]
    %v4766 = vld [vmem:[#allocation4 + $0x1b8] sm:$0xff]
    %v4767 = vld [vmem:[#allocation4 + $0x1c0] sm:$0xff]
    %v4768 = vld [vmem:[#allocation4 + $0x1c8] sm:$0xff]
    %v4769 = vld [vmem:[#allocation4 + $0x1d0] sm:$0xff]
    %v4770 = vld [vmem:[#allocation4 + $0x1d8] sm:$0xff]
    %v4771 = vld [vmem:[#allocation4 + $0x1e0] sm:$0xff]
    %v4772 = vld [vmem:[#allocation4 + $0x1e8] sm:$0xff]
    %v4773 = vld [vmem:[#allocation4 + $0x1f0] sm:$0xff]
    %v4774 = vld [vmem:[#allocation4 + $0x1f8] sm:$0xff]
    %v4775 = vld [vmem:[#allocation4 + $0x200] sm:$0xff]
    %v4776 = vld [vmem:[#allocation4 + $0x208] sm:$0xff]
    %v4777 = vld [vmem:[#allocation4 + $0x210] sm:$0xff]
    %v4778 = vld [vmem:[#allocation4 + $0x218] sm:$0xff]
    %v4779 = vld [vmem:[#allocation4 + $0x220] sm:$0xff]
    %v4780 = vld [vmem:[#allocation4 + $0x228] sm:$0xff]
    %v4781 = vld [vmem:[#allocation4 + $0x230] sm:$0xff]
    %v4782 = vld [vmem:[#allocation4 + $0x238] sm:$0xff]
    %v4783 = vld [vmem:[#allocation5] sm:$0xf]
    %v4784 = vld [vmem:[#allocation5 + $0x4] sm:$0xf]
    %v4785 = vld [vmem:[#allocation5 + $0x8] sm:$0xf]
    %v4786 = vld [vmem:[#allocation5 + $0xc] sm:$0xf]
    %v4787 = vld [vmem:[#allocation5 + $0x10] sm:$0xf]
    %v4788 = vld [vmem:[#allocation5 + $0x14] sm:$0xf]
    %v4789 = vld [vmem:[#allocation5 + $0x18] sm:$0xf]
    %v4790 = vld [vmem:[#allocation5 + $0x1c] sm:$0xf]
    %v4791 = vld [vmem:[#allocation5 + $0x20] sm:$0xf]
    %v4792 = vld [vmem:[#allocation5 + $0x24] sm:$0xf]
    %v4793 = vld [vmem:[#allocation5 + $0x28] sm:$0xf]
    %v4794 = vld [vmem:[#allocation5 + $0x2c] sm:$0xf]
    %v4795 = vld [vmem:[#allocation5 + $0x30] sm:$0xf]
    %v4796 = vld [vmem:[#allocation5 + $0x34] sm:$0xf]
    %v4797 = vld [vmem:[#allocation5 + $0x38] sm:$0xf]
    %v4798 = vld [vmem:[#allocation5 + $0x3c] sm:$0xf]
    %v4799 = vld [vmem:[#allocation5 + $0x40] sm:$0xf]
    %v4800 = vld [vmem:[#allocation5 + $0x44] sm:$0xf]
    %v4801 = vld [vmem:[#allocation5 + $0x48] sm:$0xf]
    %v4802 = vld [vmem:[#allocation5 + $0x4c] sm:$0xf]
    %v4803 = vld [vmem:[#allocation5 + $0x50] sm:$0xf]
    %v4804 = vld [vmem:[#allocation5 + $0x54] sm:$0xf]
    %v4805 = vld [vmem:[#allocation5 + $0x58] sm:$0xf]
    %v4806 = vld [vmem:[#allocation5 + $0x5c] sm:$0xf]
    %v4807 = vld [vmem:[#allocation5 + $0x60] sm:$0xf]
    %v4808 = vld [vmem:[#allocation5 + $0x64] sm:$0xf]
    %v4809 = vld [vmem:[#allocation5 + $0x68] sm:$0xf]
    %v4810 = vld [vmem:[#allocation5 + $0x6c] sm:$0xf]
    %v4811 = vld [vmem:[#allocation5 + $0x70] sm:$0xf]
    %v4812 = vld [vmem:[#allocation5 + $0x74] sm:$0xf]
    %v4813 = vld [vmem:[#allocation5 + $0x78] sm:$0xf]
    %v4814 = vld [vmem:[#allocation5 + $0x7c] sm:$0xf]
    %v4815 = vld [vmem:[#allocation5 + $0x80] sm:$0xf]
    %v4816 = vld [vmem:[#allocation5 + $0x84] sm:$0xf]
    %v4817 = vld [vmem:[#allocation5 + $0x88] sm:$0xf]
    %v4818 = vld [vmem:[#allocation5 + $0x8c] sm:$0xf]
    %v4819 = vld [vmem:[#allocation5 + $0x90] sm:$0xf]
    %v4820 = vld [vmem:[#allocation5 + $0x94] sm:$0xf]
    %v4821 = vld [vmem:[#allocation5 + $0x98] sm:$0xf]
    %v4822 = vld [vmem:[#allocation5 + $0x9c] sm:$0xf]
    %v4823 = vld [vmem:[#allocation5 + $0xa0] sm:$0xf]
    %v4824 = vld [vmem:[#allocation5 + $0xa4] sm:$0xf]
    %v4825 = vld [vmem:[#allocation5 + $0xa8] sm:$0xf]
    %v4826 = vld [vmem:[#allocation5 + $0xac] sm:$0xf]
    %v4827 = vld [vmem:[#allocation5 + $0xb0] sm:$0xf]
    %v4828 = vld [vmem:[#allocation5 + $0xb4] sm:$0xf]
    %v4829 = vld [vmem:[#allocation5 + $0xb8] sm:$0xf]
    %v4830 = vld [vmem:[#allocation5 + $0xbc] sm:$0xf]
    %v4831 = vld [vmem:[#allocation5 + $0xc0] sm:$0xf]
    %v4832 = vld [vmem:[#allocation5 + $0xc4] sm:$0xf]
    %v4833 = vld [vmem:[#allocation5 + $0xc8] sm:$0xf]
    %v4834 = vld [vmem:[#allocation5 + $0xcc] sm:$0xf]
    %v4835 = vld [vmem:[#allocation5 + $0xd0] sm:$0xf]
    %v4836 = vld [vmem:[#allocation5 + $0xd4] sm:$0xf]
    %v4837 = vld [vmem:[#allocation5 + $0xd8] sm:$0xf]
    %v4838 = vld [vmem:[#allocation5 + $0xdc] sm:$0xf]
    %v4839 = vld [vmem:[#allocation5 + $0xe0] sm:$0xf]
    %v4840 = vld [vmem:[#allocation5 + $0xe4] sm:$0xf]
    %v4841 = vld [vmem:[#allocation5 + $0xe8] sm:$0xf]
    %v4842 = vld [vmem:[#allocation5 + $0xec] sm:$0xf]
    %v4843 = vld [vmem:[#allocation5 + $0xf0] sm:$0xf]
    %v4844 = vld [vmem:[#allocation5 + $0xf4] sm:$0xf]
    %v4845 = vld [vmem:[#allocation5 + $0xf8] sm:$0xf]
    %v4846 = vld [vmem:[#allocation5 + $0xfc] sm:$0xf]
    %v4847 = vld [vmem:[#allocation5 + $0x100] sm:$0xf]
    %v4848 = vld [vmem:[#allocation5 + $0x104] sm:$0xf]
    %v4849 = vld [vmem:[#allocation5 + $0x108] sm:$0xf]
    %v4850 = vld [vmem:[#allocation5 + $0x10c] sm:$0xf]
    %v4851 = vld [vmem:[#allocation5 + $0x110] sm:$0xf]
    %v4852 = vld [vmem:[#allocation5 + $0x114] sm:$0xf]
    %v4853 = vld [vmem:[#allocation5 + $0x118] sm:$0xf]
    %v4854 = vld [vmem:[#allocation5 + $0x11c] sm:$0xf]
    %v4855 = vld [vmem:[#allocation5 + $0x120] sm:$0xf]
    %v4856 = vld [vmem:[#allocation5 + $0x124] sm:$0xf]
    %v4857 = vld [vmem:[#allocation5 + $0x128] sm:$0xf]
    %v4858 = vld [vmem:[#allocation5 + $0x12c] sm:$0xf]
    %v4859 = vld [vmem:[#allocation5 + $0x130] sm:$0xf]
    %v4860 = vld [vmem:[#allocation5 + $0x134] sm:$0xf]
    %v4861 = vld [vmem:[#allocation5 + $0x138] sm:$0xf]
    %v4862 = vld [vmem:[#allocation5 + $0x13c] sm:$0xf]
    %v4863 = vld [vmem:[#allocation5 + $0x140] sm:$0xf]
    %v4864 = vld [vmem:[#allocation5 + $0x144] sm:$0xf]
    %v4865 = vld [vmem:[#allocation5 + $0x148] sm:$0xf]
    %v4866 = vld [vmem:[#allocation5 + $0x14c] sm:$0xf]
    %v4867 = vld [vmem:[#allocation5 + $0x150] sm:$0xf]
    %v4868 = vld [vmem:[#allocation5 + $0x154] sm:$0xf]
    %v4869 = vld [vmem:[#allocation5 + $0x158] sm:$0xf]
    %v4870 = vld [vmem:[#allocation5 + $0x15c] sm:$0xf]
    %v4871 = vld [vmem:[#allocation5 + $0x160] sm:$0xf]
    %v4872 = vld [vmem:[#allocation5 + $0x164] sm:$0xf]
    %v4873 = vld [vmem:[#allocation5 + $0x168] sm:$0xf]
    %v4874 = vld [vmem:[#allocation5 + $0x16c] sm:$0xf]
    %v4875 = vld [vmem:[#allocation5 + $0x170] sm:$0xf]
    %v4876 = vld [vmem:[#allocation5 + $0x174] sm:$0xf]
    %v4877 = vld [vmem:[#allocation5 + $0x178] sm:$0xf]
    %v4878 = vld [vmem:[#allocation5 + $0x17c] sm:$0xf]
    %v4879 = vld [vmem:[#allocation5 + $0x180] sm:$0xf]
    %v4880 = vld [vmem:[#allocation5 + $0x184] sm:$0xf]
    %v4881 = vld [vmem:[#allocation5 + $0x188] sm:$0xf]
    %v4882 = vld [vmem:[#allocation5 + $0x18c] sm:$0xf]
    %v4883 = vld [vmem:[#allocation5 + $0x190] sm:$0xf]
    %v4884 = vld [vmem:[#allocation5 + $0x194] sm:$0xf]
    %v4885 = vld [vmem:[#allocation5 + $0x198] sm:$0xf]
    %v4886 = vld [vmem:[#allocation5 + $0x19c] sm:$0xf]
    %v4887 = vld [vmem:[#allocation5 + $0x1a0] sm:$0xf]
    %v4888 = vld [vmem:[#allocation5 + $0x1a4] sm:$0xf]
    %v4889 = vld [vmem:[#allocation5 + $0x1a8] sm:$0xf]
    %v4890 = vld [vmem:[#allocation5 + $0x1ac] sm:$0xf]
    %v4891 = vld [vmem:[#allocation5 + $0x1b0] sm:$0xf]
    %v4892 = vld [vmem:[#allocation5 + $0x1b4] sm:$0xf]
    %v4893 = vld [vmem:[#allocation5 + $0x1b8] sm:$0xf]
    %v4894 = vld [vmem:[#allocation5 + $0x1bc] sm:$0xf]
    %v4895 = vld [vmem:[#allocation5 + $0x1c0] sm:$0xf]
    %v4896 = vld [vmem:[#allocation5 + $0x1c4] sm:$0xf]
    %v4897 = vld [vmem:[#allocation5 + $0x1c8] sm:$0xf]
    %v4898 = vld [vmem:[#allocation5 + $0x1cc] sm:$0xf]
    %v4899 = vld [vmem:[#allocation5 + $0x1d0] sm:$0xf]
    %v4900 = vld [vmem:[#allocation5 + $0x1d4] sm:$0xf]
    %v4901 = vld [vmem:[#allocation5 + $0x1d8] sm:$0xf]
    %v4902 = vld [vmem:[#allocation5 + $0x1dc] sm:$0xf]
    %v4903 = vld [vmem:[#allocation5 + $0x1e0] sm:$0xf]
    %v4904 = vld [vmem:[#allocation5 + $0x1e4] sm:$0xf]
    %v4905 = vld [vmem:[#allocation5 + $0x1e8] sm:$0xf]
    %v4906 = vld [vmem:[#allocation5 + $0x1ec] sm:$0xf]
    %v4907 = vld [vmem:[#allocation5 + $0x1f0] sm:$0xf]
    %v4908 = vld [vmem:[#allocation5 + $0x1f4] sm:$0xf]
    %v4909 = vld [vmem:[#allocation5 + $0x1f8] sm:$0xf]
    %v4910 = vld [vmem:[#allocation5 + $0x1fc] sm:$0xf]
    %v4911 = vld [vmem:[#allocation5 + $0x200] sm:$0xf]
    %v4912 = vld [vmem:[#allocation5 + $0x204] sm:$0xf]
    %v4913 = vld [vmem:[#allocation5 + $0x208] sm:$0xf]
    %v4914 = vld [vmem:[#allocation5 + $0x20c] sm:$0xf]
    %v4915 = vld [vmem:[#allocation5 + $0x210] sm:$0xf]
    %v4916 = vld [vmem:[#allocation5 + $0x214] sm:$0xf]
    %v4917 = vld [vmem:[#allocation5 + $0x218] sm:$0xf]
    %v4918 = vld [vmem:[#allocation5 + $0x21c] sm:$0xf]
    %v4919 = vld [vmem:[#allocation5 + $0x220] sm:$0xf]
    %v4920 = vld [vmem:[#allocation5 + $0x224] sm:$0xf]
    %v4921 = vld [vmem:[#allocation5 + $0x228] sm:$0xf]
    %v4922 = vld [vmem:[#allocation5 + $0x22c] sm:$0xf]
    %v4923 = vld [vmem:[#allocation5 + $0x230] sm:$0xf]
    %v4924 = vld [vmem:[#allocation5 + $0x234] sm:$0xf]
    %v4925 = vld [vmem:[#allocation5 + $0x238] sm:$0xf]
    %v4926 = vld [vmem:[#allocation5 + $0x23c] sm:$0xf]
    %v5071 = vunpack.c.l.b16 %v4783
    %v5072 = vunpack.c.l.b16 %v4784
    %v5073 = vunpack.c.l.b16 %v4785
    %v5074 = vunpack.c.l.b16 %v4786
    %v5075 = vunpack.c.l.b16 %v4787
    %v5076 = vunpack.c.l.b16 %v4788
    %v5077 = vunpack.c.l.b16 %v4789
    %v5078 = vunpack.c.l.b16 %v4790
    %v5079 = vunpack.c.l.b16 %v4791
    %v5080 = vunpack.c.l.b16 %v4792
    %v5081 = vunpack.c.l.b16 %v4793
    %v5082 = vunpack.c.l.b16 %v4794
    %v5083 = vunpack.c.l.b16 %v4795
    %v5084 = vunpack.c.l.b16 %v4796
    %v5085 = vunpack.c.l.b16 %v4797
    %v5086 = vunpack.c.l.b16 %v4798
    %v5087 = vunpack.c.l.b16 %v4799
    %v5088 = vunpack.c.l.b16 %v4800
    %v5089 = vunpack.c.l.b16 %v4801
    %v5090 = vunpack.c.l.b16 %v4802
    %v5091 = vunpack.c.l.b16 %v4803
    %v5092 = vunpack.c.l.b16 %v4804
    %v5093 = vunpack.c.l.b16 %v4805
    %v5094 = vunpack.c.l.b16 %v4806
    %v5095 = vunpack.c.l.b16 %v4807
    %v5096 = vunpack.c.l.b16 %v4808
    %v5097 = vunpack.c.l.b16 %v4809
    %v5098 = vunpack.c.l.b16 %v4810
    %v5099 = vunpack.c.l.b16 %v4811
    %v5100 = vunpack.c.l.b16 %v4812
    %v5101 = vunpack.c.l.b16 %v4813
    %v5102 = vunpack.c.l.b16 %v4814
    %v5103 = vunpack.c.l.b16 %v4815
    %v5104 = vunpack.c.l.b16 %v4816
    %v5105 = vunpack.c.l.b16 %v4817
    %v5106 = vunpack.c.l.b16 %v4818
    %v5107 = vunpack.c.l.b16 %v4819
    %v5108 = vunpack.c.l.b16 %v4820
    %v5109 = vunpack.c.l.b16 %v4821
    %v5110 = vunpack.c.l.b16 %v4822
    %v5111 = vunpack.c.l.b16 %v4823
    %v5112 = vunpack.c.l.b16 %v4824
    %v5113 = vunpack.c.l.b16 %v4825
    %v5114 = vunpack.c.l.b16 %v4826
    %v5115 = vunpack.c.l.b16 %v4827
    %v5116 = vunpack.c.l.b16 %v4828
    %v5117 = vunpack.c.l.b16 %v4829
    %v5118 = vunpack.c.l.b16 %v4830
    %v5119 = vunpack.c.l.b16 %v4831
    %v5120 = vunpack.c.l.b16 %v4832
    %v5121 = vunpack.c.l.b16 %v4833
    %v5122 = vunpack.c.l.b16 %v4834
    %v5123 = vunpack.c.l.b16 %v4835
    %v5124 = vunpack.c.l.b16 %v4836
    %v5125 = vunpack.c.l.b16 %v4837
    %v5126 = vunpack.c.l.b16 %v4838
    %v5127 = vunpack.c.l.b16 %v4839
    %v5128 = vunpack.c.l.b16 %v4840
    %v5129 = vunpack.c.l.b16 %v4841
    %v5130 = vunpack.c.l.b16 %v4842
    %v5131 = vunpack.c.l.b16 %v4843
    %v5132 = vunpack.c.l.b16 %v4844
    %v5133 = vunpack.c.l.b16 %v4845
    %v5134 = vunpack.c.l.b16 %v4846
    %v5135 = vunpack.c.l.b16 %v4847
    %v5136 = vunpack.c.l.b16 %v4848
    %v5137 = vunpack.c.l.b16 %v4849
    %v5138 = vunpack.c.l.b16 %v4850
    %v5139 = vunpack.c.l.b16 %v4851
    %v5140 = vunpack.c.l.b16 %v4852
    %v5141 = vunpack.c.l.b16 %v4853
    %v5142 = vunpack.c.l.b16 %v4854
    %v5143 = vunpack.c.l.b16 %v4855
    %v5144 = vunpack.c.l.b16 %v4856
    %v5145 = vunpack.c.l.b16 %v4857
    %v5146 = vunpack.c.l.b16 %v4858
    %v5147 = vunpack.c.l.b16 %v4859
    %v5148 = vunpack.c.l.b16 %v4860
    %v5149 = vunpack.c.l.b16 %v4861
    %v5150 = vunpack.c.l.b16 %v4862
    %v5151 = vunpack.c.l.b16 %v4863
    %v5152 = vunpack.c.l.b16 %v4864
    %v5153 = vunpack.c.l.b16 %v4865
    %v5154 = vunpack.c.l.b16 %v4866
    %v5155 = vunpack.c.l.b16 %v4867
    %v5156 = vunpack.c.l.b16 %v4868
    %v5157 = vunpack.c.l.b16 %v4869
    %v5158 = vunpack.c.l.b16 %v4870
    %v5159 = vunpack.c.l.b16 %v4871
    %v5160 = vunpack.c.l.b16 %v4872
    %v5161 = vunpack.c.l.b16 %v4873
    %v5162 = vunpack.c.l.b16 %v4874
    %v5163 = vunpack.c.l.b16 %v4875
    %v5164 = vunpack.c.l.b16 %v4876
    %v5165 = vunpack.c.l.b16 %v4877
    %v5166 = vunpack.c.l.b16 %v4878
    %v5167 = vunpack.c.l.b16 %v4879
    %v5168 = vunpack.c.l.b16 %v4880
    %v5169 = vunpack.c.l.b16 %v4881
    %v5170 = vunpack.c.l.b16 %v4882
    %v5171 = vunpack.c.l.b16 %v4883
    %v5172 = vunpack.c.l.b16 %v4884
    %v5173 = vunpack.c.l.b16 %v4885
    %v5174 = vunpack.c.l.b16 %v4886
    %v5175 = vunpack.c.l.b16 %v4887
    %v5176 = vunpack.c.l.b16 %v4888
    %v5177 = vunpack.c.l.b16 %v4889
    %v5178 = vunpack.c.l.b16 %v4890
    %v5179 = vunpack.c.l.b16 %v4891
    %v5180 = vunpack.c.l.b16 %v4892
    %v5181 = vunpack.c.l.b16 %v4893
    %v5182 = vunpack.c.l.b16 %v4894
    %v5183 = vunpack.c.l.b16 %v4895
    %v5184 = vunpack.c.l.b16 %v4896
    %v5185 = vunpack.c.l.b16 %v4897
    %v5186 = vunpack.c.l.b16 %v4898
    %v5187 = vunpack.c.l.b16 %v4899
    %v5188 = vunpack.c.l.b16 %v4900
    %v5189 = vunpack.c.l.b16 %v4901
    %v5190 = vunpack.c.l.b16 %v4902
    %v5191 = vunpack.c.l.b16 %v4903
    %v5192 = vunpack.c.l.b16 %v4904
    %v5193 = vunpack.c.l.b16 %v4905
    %v5194 = vunpack.c.l.b16 %v4906
    %v5195 = vunpack.c.l.b16 %v4907
    %v5196 = vunpack.c.l.b16 %v4908
    %v5197 = vunpack.c.l.b16 %v4909
    %v5198 = vunpack.c.l.b16 %v4910
    %v5199 = vunpack.c.l.b16 %v4911
    %v5200 = vunpack.c.l.b16 %v4912
    %v5201 = vunpack.c.l.b16 %v4913
    %v5202 = vunpack.c.l.b16 %v4914
    %v5203 = vunpack.c.l.b16 %v4915
    %v5204 = vunpack.c.l.b16 %v4916
    %v5205 = vunpack.c.l.b16 %v4917
    %v5206 = vunpack.c.l.b16 %v4918
    %v5207 = vunpack.c.l.b16 %v4919
    %v5208 = vunpack.c.l.b16 %v4920
    %v5209 = vunpack.c.l.b16 %v4921
    %v5210 = vunpack.c.l.b16 %v4922
    %v5211 = vunpack.c.l.b16 %v4923
    %v5212 = vunpack.c.l.b16 %v4924
    %v5213 = vunpack.c.l.b16 %v4925
    %v5214 = vunpack.c.l.b16 %v4926
    %v5215 = vpack.c.b16 %v5072, %v5071
    %v5216 = vpack.c.b16 %v5074, %v5073
    %v5217 = vpack.c.b16 %v5076, %v5075
    %v5218 = vpack.c.b16 %v5078, %v5077
    %v5219 = vpack.c.b16 %v5080, %v5079
    %v5220 = vpack.c.b16 %v5082, %v5081
    %v5221 = vpack.c.b16 %v5084, %v5083
    %v5222 = vpack.c.b16 %v5086, %v5085
    %v5223 = vpack.c.b16 %v5088, %v5087
    %v5224 = vpack.c.b16 %v5090, %v5089
    %v5225 = vpack.c.b16 %v5092, %v5091
    %v5226 = vpack.c.b16 %v5094, %v5093
    %v5227 = vpack.c.b16 %v5096, %v5095
    %v5228 = vpack.c.b16 %v5098, %v5097
    %v5229 = vpack.c.b16 %v5100, %v5099
    %v5230 = vpack.c.b16 %v5102, %v5101
    %v5231 = vpack.c.b16 %v5104, %v5103
    %v5232 = vpack.c.b16 %v5106, %v5105
    %v5233 = vpack.c.b16 %v5108, %v5107
    %v5234 = vpack.c.b16 %v5110, %v5109
    %v5235 = vpack.c.b16 %v5112, %v5111
    %v5236 = vpack.c.b16 %v5114, %v5113
    %v5237 = vpack.c.b16 %v5116, %v5115
    %v5238 = vpack.c.b16 %v5118, %v5117
    %v5239 = vpack.c.b16 %v5120, %v5119
    %v5240 = vpack.c.b16 %v5122, %v5121
    %v5241 = vpack.c.b16 %v5124, %v5123
    %v5242 = vpack.c.b16 %v5126, %v5125
    %v5243 = vpack.c.b16 %v5128, %v5127
    %v5244 = vpack.c.b16 %v5130, %v5129
    %v5245 = vpack.c.b16 %v5132, %v5131
    %v5246 = vpack.c.b16 %v5134, %v5133
    %v5247 = vpack.c.b16 %v5136, %v5135
    %v5248 = vpack.c.b16 %v5138, %v5137
    %v5249 = vpack.c.b16 %v5140, %v5139
    %v5250 = vpack.c.b16 %v5142, %v5141
    %v5251 = vpack.c.b16 %v5144, %v5143
    %v5252 = vpack.c.b16 %v5146, %v5145
    %v5253 = vpack.c.b16 %v5148, %v5147
    %v5254 = vpack.c.b16 %v5150, %v5149
    %v5255 = vpack.c.b16 %v5152, %v5151
    %v5256 = vpack.c.b16 %v5154, %v5153
    %v5257 = vpack.c.b16 %v5156, %v5155
    %v5258 = vpack.c.b16 %v5158, %v5157
    %v5259 = vpack.c.b16 %v5160, %v5159
    %v5260 = vpack.c.b16 %v5162, %v5161
    %v5261 = vpack.c.b16 %v5164, %v5163
    %v5262 = vpack.c.b16 %v5166, %v5165
    %v5263 = vpack.c.b16 %v5168, %v5167
    %v5264 = vpack.c.b16 %v5170, %v5169
    %v5265 = vpack.c.b16 %v5172, %v5171
    %v5266 = vpack.c.b16 %v5174, %v5173
    %v5267 = vpack.c.b16 %v5176, %v5175
    %v5268 = vpack.c.b16 %v5178, %v5177
    %v5269 = vpack.c.b16 %v5180, %v5179
    %v5270 = vpack.c.b16 %v5182, %v5181
    %v5271 = vpack.c.b16 %v5184, %v5183
    %v5272 = vpack.c.b16 %v5186, %v5185
    %v5273 = vpack.c.b16 %v5188, %v5187
    %v5274 = vpack.c.b16 %v5190, %v5189
    %v5275 = vpack.c.b16 %v5192, %v5191
    %v5276 = vpack.c.b16 %v5194, %v5193
    %v5277 = vpack.c.b16 %v5196, %v5195
    %v5278 = vpack.c.b16 %v5198, %v5197
    %v5279 = vpack.c.b16 %v5200, %v5199
    %v5280 = vpack.c.b16 %v5202, %v5201
    %v5281 = vpack.c.b16 %v5204, %v5203
    %v5282 = vpack.c.b16 %v5206, %v5205
    %v5283 = vpack.c.b16 %v5208, %v5207
    %v5284 = vpack.c.b16 %v5210, %v5209
    %v5285 = vpack.c.b16 %v5212, %v5211
    %v5286 = vpack.c.b16 %v5214, %v5213
    %5359 = vmatprep.subr.bf16.mxu0 0
    %5360 = vmatpush1.bf16.msra.mxu0 %v5215
    %5361 = vmatprep.subr.bf16.mxu0 0
    %5362 = vmatpush1.bf16.msra.mxu0 %v5216
    %5363 = vmatprep.subr.bf16.mxu0 0
    %5364 = vmatpush1.bf16.msra.mxu0 %v5217
    %5365 = vmatprep.subr.bf16.mxu0 0
    %5366 = vmatpush1.bf16.msra.mxu0 %v5218
    %5367 = vmatprep.subr.bf16.mxu0 0
    %5368 = vmatpush1.bf16.msra.mxu0 %v5219
    %5369 = vmatprep.subr.bf16.mxu0 0
    %5370 = vmatpush1.bf16.msra.mxu0 %v5220
    %5371 = vmatprep.subr.bf16.mxu0 0
    %5372 = vmatpush1.bf16.msra.mxu0 %v5221
    %5373 = vmatprep.subr.bf16.mxu0 0
    %5374 = vmatpush1.bf16.msra.mxu0 %v5222
    %5375 = vmatprep.subr.bf16.mxu0 0
    %5376 = vmatpush1.bf16.msra.mxu0 %v5223
    %5377 = vmatprep.subr.bf16.mxu0 0
    %5378 = vmatpush1.bf16.msra.mxu0 %v5224
    %5379 = vmatprep.subr.bf16.mxu0 0
    %5380 = vmatpush1.bf16.msra.mxu0 %v5225
    %5381 = vmatprep.subr.bf16.mxu0 0
    %5382 = vmatpush1.bf16.msra.mxu0 %v5226
    %5383 = vmatprep.subr.bf16.mxu0 0
    %5384 = vmatpush1.bf16.msra.mxu0 %v5227
    %5385 = vmatprep.subr.bf16.mxu0 0
    %5386 = vmatpush1.bf16.msra.mxu0 %v5228
    %5387 = vmatprep.subr.bf16.mxu0 0
    %5388 = vmatpush1.bf16.msra.mxu0 %v5229
    %5389 = vmatprep.subr.bf16.mxu0 0
    %5390 = vmatpush1.bf16.msra.mxu0 %v5230
    %5391 = vmatprep.mubr.bf16.mxu0 %v4712
    %5392 = vmatmul.mubr.bf16.gmra.mrb[0].mxu0 %v4711
    %v5393 = vpop.f32.mrb[0].mxu0
    %v5394 = vadd.f32 0.0, %v5393
    %v5395 = vpop.f32.mrb[0].mxu0
    %v5396 = vpop.f32.mrb[0].mxu0
    %v5397 = vadd.f32 0.0, %v5396
    %v5398 = vpop.f32.mrb[0].mxu0
    %5399 = vmatprep.mubr.bf16.mxu0 %v4721
    %5400 = vmatmul.mubr.bf16.gmra.mrb[0].mxu0 %v4720
    %v5401 = vpop.f32.mrb[0].mxu0
    %v5402 = vadd.f32 0.0, %v5401
    %v5403 = vpop.f32.mrb[0].mxu0
    %v5404 = vpop.f32.mrb[0].mxu0
    %v5405 = vadd.f32 0.0, %v5404
    %v5406 = vpop.f32.mrb[0].mxu0
    %5407 = vmatprep.mubr.bf16.mxu0 %v4730
    %5408 = vmatmul.mubr.bf16.gmra.mrb[0].mxu0 %v4729
    %v5409 = vpop.f32.mrb[0].mxu0
    %v5410 = vadd.f32 0.0, %v5409
    %v5411 = vpop.f32.mrb[0].mxu0
    %v5412 = vpop.f32.mrb[0].mxu0
    %v5413 = vadd.f32 0.0, %v5412
    %v5414 = vpop.f32.mrb[0].mxu0
    %5415 = vmatprep.mubr.bf16.mxu0 %v4739
    %5416 = vmatmul.mubr.bf16.gmra.mrb[0].mxu0 %v4738
    %v5417 = vpop.f32.mrb[0].mxu0
    %v5418 = vadd.f32 0.0, %v5417
    %v5419 = vpop.f32.mrb[0].mxu0
    %v5420 = vpop.f32.mrb[0].mxu0
    %v5421 = vadd.f32 0.0, %v5420
    %v5422 = vpop.f32.mrb[0].mxu0
    %5423 = vmatprep.mubr.bf16.mxu0 %v4748
    %5424 = vmatmul.mubr.bf16.gmra.mrb[0].mxu0 %v4747
    %v5425 = vpop.f32.mrb[0].mxu0
    %v5426 = vadd.f32 0.0, %v5425
    %v5427 = vpop.f32.mrb[0].mxu0
    %v5428 = vpop.f32.mrb[0].mxu0
    %v5429 = vadd.f32 0.0, %v5428
    %v5430 = vpop.f32.mrb[0].mxu0
    %5431 = vmatprep.mubr.bf16.mxu0 %v4757
    %5432 = vmatmul.mubr.bf16.gmra.mrb[0].mxu0 %v4756
    %v5433 = vpop.f32.mrb[0].mxu0
    %v5434 = vadd.f32 0.0, %v5433
    %v5435 = vpop.f32.mrb[0].mxu0
    %v5436 = vpop.f32.mrb[0].mxu0
    %v5437 = vadd.f32 0.0, %v5436
    %v5438 = vpop.f32.mrb[0].mxu0
    %5439 = vmatprep.mubr.bf16.mxu0 %v4766
    %5440 = vmatmul.mubr.bf16.gmra.mrb[0].mxu0 %v4765
    %v5441 = vpop.f32.mrb[0].mxu0
    %v5442 = vadd.f32 0.0, %v5441
    %v5443 = vpop.f32.mrb[0].mxu0
    %v5444 = vpop.f32.mrb[0].mxu0
    %v5445 = vadd.f32 0.0, %v5444
    %v5446 = vpop.f32.mrb[0].mxu0
    %5447 = vmatprep.mubr.bf16.mxu0 %v4775
    %5448 = vmatmul.mubr.bf16.gmra.mrb[0].mxu0 %v4774
    %v5449 = vpop.f32.mrb[0].mxu0
    %v5450 = vadd.f32 0.0, %v5449
    %v5451 = vpop.f32.mrb[0].mxu0
    %v5452 = vpop.f32.mrb[0].mxu0
    %v5453 = vadd.f32 0.0, %v5452
    %v5454 = vpop.f32.mrb[0].mxu0
    %5455 = vdwg.mxu0
    %5456 = vmatprep.subr.bf16.mxu0 0
    %5457 = vmatpush1.bf16.msra.mxu0 %v5231
    %5458 = vmatprep.subr.bf16.mxu0 0
    %5459 = vmatpush1.bf16.msra.mxu0 %v5232
    %5460 = vmatprep.subr.bf16.mxu0 0
    %5461 = vmatpush1.bf16.msra.mxu0 %v5233
    %5462 = vmatprep.subr.bf16.mxu0 0
    %5463 = vmatpush1.bf16.msra.mxu0 %v5234
    %5464 = vmatprep.subr.bf16.mxu0 0
    %5465 = vmatpush1.bf16.msra.mxu0 %v5235
    %5466 = vmatprep.subr.bf16.mxu0 0
    %5467 = vmatpush1.bf16.msra.mxu0 %v5236
    %5468 = vmatprep.subr.bf16.mxu0 0
    %5469 = vmatpush1.bf16.msra.mxu0 %v5237
    %5470 = vmatprep.subr.bf16.mxu0 0
    %5471 = vmatpush1.bf16.msra.mxu0 %v5238
    %5472 = vmatprep.subr.bf16.mxu0 0
    %5473 = vmatpush1.bf16.msra.mxu0 %v5239
    %5474 = vmatprep.subr.bf16.mxu0 0
    %5475 = vmatpush1.bf16.msra.mxu0 %v5240
    %5476 = vmatprep.subr.bf16.mxu0 0
    %5477 = vmatpush1.bf16.msra.mxu0 %v5241
    %5478 = vmatprep.subr.bf16.mxu0 0
    %5479 = vmatpush1.bf16.msra.mxu0 %v5242
    %5480 = vmatprep.subr.bf16.mxu0 0
    %5481 = vmatpush1.bf16.msra.mxu0 %v5243
    %5482 = vmatprep.subr.bf16.mxu0 0
    %5483 = vmatpush1.bf16.msra.mxu0 %v5244
    %5484 = vmatprep.subr.bf16.mxu0 0
    %5485 = vmatpush1.bf16.msra.mxu0 %v5245
    %5486 = vmatprep.subr.bf16.mxu0 0
    %5487 = vmatpush1.bf16.msra.mxu0 %v5246
    %5488 = vmatprep.mubr.bf16.mxu0 %v4714
    %5489 = vmatmul.mubr.bf16.gmra.mrb[0].mxu0 %v4713
    %v5490 = vpop.f32.mrb[0].mxu0
    %v5491 = vadd.f32 %v5394, %v5490
    %v5492 = vpop.f32.mrb[0].mxu0
    %v5493 = vpop.f32.mrb[0].mxu0
    %v5494 = vadd.f32 %v5397, %v5493
    %v5495 = vpop.f32.mrb[0].mxu0
    %5496 = vmatprep.mubr.bf16.mxu0 %v4723
    %5497 = vmatmul.mubr.bf16.gmra.mrb[0].mxu0 %v4722
    %v5498 = vpop.f32.mrb[0].mxu0
    %v5499 = vadd.f32 %v5402, %v5498
    %v5500 = vpop.f32.mrb[0].mxu0
    %v5501 = vpop.f32.mrb[0].mxu0
    %v5502 = vadd.f32 %v5405, %v5501
    %v5503 = vpop.f32.mrb[0].mxu0
    %5504 = vmatprep.mubr.bf16.mxu0 %v4732
    %5505 = vmatmul.mubr.bf16.gmra.mrb[0].mxu0 %v4731
    %v5506 = vpop.f32.mrb[0].mxu0
    %v5507 = vadd.f32 %v5410, %v5506
    %v5508 = vpop.f32.mrb[0].mxu0
    %v5509 = vpop.f32.mrb[0].mxu0
    %v5510 = vadd.f32 %v5413, %v5509
    %v5511 = vpop.f32.mrb[0].mxu0
    %5512 = vmatprep.mubr.bf16.mxu0 %v4741
    %5513 = vmatmul.mubr.bf16.gmra.mrb[0].mxu0 %v4740
    %v5514 = vpop.f32.mrb[0].mxu0
    %v5515 = vadd.f32 %v5418, %v5514
    %v5516 = vpop.f32.mrb[0].mxu0
    %v5517 = vpop.f32.mrb[0].mxu0
    %v5518 = vadd.f32 %v5421, %v5517
    %v5519 = vpop.f32.mrb[0].mxu0
    %5520 = vmatprep.mubr.bf16.mxu0 %v4750
    %5521 = vmatmul.mubr.bf16.gmra.mrb[0].mxu0 %v4749
    %v5522 = vpop.f32.mrb[0].mxu0
    %v5523 = vadd.f32 %v5426, %v5522
    %v5524 = vpop.f32.mrb[0].mxu0
    %v5525 = vpop.f32.mrb[0].mxu0
    %v5526 = vadd.f32 %v5429, %v5525
    %v5527 = vpop.f32.mrb[0].mxu0
    %5528 = vmatprep.mubr.bf16.mxu0 %v4759
    %5529 = vmatmul.mubr.bf16.gmra.mrb[0].mxu0 %v4758
    %v5530 = vpop.f32.mrb[0].mxu0
    %v5531 = vadd.f32 %v5434, %v5530
    %v5532 = vpop.f32.mrb[0].mxu0
    %v5533 = vpop.f32.mrb[0].mxu0
    %v5534 = vadd.f32 %v5437, %v5533
    %v5535 = vpop.f32.mrb[0].mxu0
    %5536 = vmatprep.mubr.bf16.mxu0 %v4768
    %5537 = vmatmul.mubr.bf16.gmra.mrb[0].mxu0 %v4767
    %v5538 = vpop.f32.mrb[0].mxu0
    %v5539 = vadd.f32 %v5442, %v5538
    %v5540 = vpop.f32.mrb[0].mxu0
    %v5541 = vpop.f32.mrb[0].mxu0
    %v5542 = vadd.f32 %v5445, %v5541
    %v5543 = vpop.f32.mrb[0].mxu0
    %5544 = vmatprep.mubr.bf16.mxu0 %v4777
    %5545 = vmatmul.mubr.bf16.gmra.mrb[0].mxu0 %v4776
    %v5546 = vpop.f32.mrb[0].mxu0
    %v5547 = vadd.f32 %v5450, %v5546
    %v5548 = vpop.f32.mrb[0].mxu0
    %v5549 = vpop.f32.mrb[0].mxu0
    %v5550 = vadd.f32 %v5453, %v5549
    %v5551 = vpop.f32.mrb[0].mxu0
    %5552 = vdwg.mxu0
    %5553 = vmatprep.subr.bf16.mxu0 0
    %5554 = vmatpush1.bf16.msra.mxu0 %v5247
    %5555 = vmatprep.subr.bf16.mxu0 0
    %5556 = vmatpush1.bf16.msra.mxu0 %v5248
    %5557 = vmatprep.subr.bf16.mxu0 0
    %5558 = vmatpush1.bf16.msra.mxu0 %v5249
    %5559 = vmatprep.subr.bf16.mxu0 0
    %5560 = vmatpush1.bf16.msra.mxu0 %v5250
    %5561 = vmatprep.subr.bf16.mxu0 0
    %5562 = vmatpush1.bf16.msra.mxu0 %v5251
    %5563 = vmatprep.subr.bf16.mxu0 0
    %5564 = vmatpush1.bf16.msra.mxu0 %v5252
    %5565 = vmatprep.subr.bf16.mxu0 0
    %5566 = vmatpush1.bf16.msra.mxu0 %v5253
    %5567 = vmatprep.subr.bf16.mxu0 0
    %5568 = vmatpush1.bf16.msra.mxu0 %v5254
    %5569 = vmatprep.subr.bf16.mxu0 0
    %5570 = vmatpush1.bf16.msra.mxu0 %v5255
    %5571 = vmatprep.subr.bf16.mxu0 0
    %5572 = vmatpush1.bf16.msra.mxu0 %v5256
    %5573 = vmatprep.subr.bf16.mxu0 0
    %5574 = vmatpush1.bf16.msra.mxu0 %v5257
    %5575 = vmatprep.subr.bf16.mxu0 0
    %5576 = vmatpush1.bf16.msra.mxu0 %v5258
    %5577 = vmatprep.subr.bf16.mxu0 0
    %5578 = vmatpush1.bf16.msra.mxu0 %v5259
    %5579 = vmatprep.subr.bf16.mxu0 0
    %5580 = vmatpush1.bf16.msra.mxu0 %v5260
    %5581 = vmatprep.subr.bf16.mxu0 0
    %5582 = vmatpush1.bf16.msra.mxu0 %v5261
    %5583 = vmatprep.subr.bf16.mxu0 0
    %5584 = vmatpush1.bf16.msra.mxu0 %v5262
    %5585 = vmatprep.mubr.bf16.mxu0 %v4716
    %5586 = vmatmul.mubr.bf16.gmra.mrb[0].mxu0 %v4715
    %v5587 = vpop.f32.mrb[0].mxu0
    %v5588 = vadd.f32 %v5491, %v5587
    %v5589 = vpop.f32.mrb[0].mxu0
    %v5590 = vpop.f32.mrb[0].mxu0
    %v5591 = vadd.f32 %v5494, %v5590
    %v5592 = vpop.f32.mrb[0].mxu0
    %5593 = vmatprep.mubr.bf16.mxu0 %v4725
    %5594 = vmatmul.mubr.bf16.gmra.mrb[0].mxu0 %v4724
    %v5595 = vpop.f32.mrb[0].mxu0
    %v5596 = vadd.f32 %v5499, %v5595
    %v5597 = vpop.f32.mrb[0].mxu0
    %v5598 = vpop.f32.mrb[0].mxu0
    %v5599 = vadd.f32 %v5502, %v5598
    %v5600 = vpop.f32.mrb[0].mxu0
    %5601 = vmatprep.mubr.bf16.mxu0 %v4734
    %5602 = vmatmul.mubr.bf16.gmra.mrb[0].mxu0 %v4733
    %v5603 = vpop.f32.mrb[0].mxu0
    %v5604 = vadd.f32 %v5507, %v5603
    %v5605 = vpop.f32.mrb[0].mxu0
    %v5606 = vpop.f32.mrb[0].mxu0
    %v5607 = vadd.f32 %v5510, %v5606
    %v5608 = vpop.f32.mrb[0].mxu0
    %5609 = vmatprep.mubr.bf16.mxu0 %v4743
    %5610 = vmatmul.mubr.bf16.gmra.mrb[0].mxu0 %v4742
    %v5611 = vpop.f32.mrb[0].mxu0
    %v5612 = vadd.f32 %v5515, %v5611
    %v5613 = vpop.f32.mrb[0].mxu0
    %v5614 = vpop.f32.mrb[0].mxu0
    %v5615 = vadd.f32 %v5518, %v5614
    %v5616 = vpop.f32.mrb[0].mxu0
    %5617 = vmatprep.mubr.bf16.mxu0 %v4752
    %5618 = vmatmul.mubr.bf16.gmra.mrb[0].mxu0 %v4751
    %v5619 = vpop.f32.mrb[0].mxu0
    %v5620 = vadd.f32 %v5523, %v5619
    %v5621 = vpop.f32.mrb[0].mxu0
    %v5622 = vpop.f32.mrb[0].mxu0
    %v5623 = vadd.f32 %v5526, %v5622
    %v5624 = vpop.f32.mrb[0].mxu0
    %5625 = vmatprep.mubr.bf16.mxu0 %v4761
    %5626 = vmatmul.mubr.bf16.gmra.mrb[0].mxu0 %v4760
    %v5627 = vpop.f32.mrb[0].mxu0
    %v5628 = vadd.f32 %v5531, %v5627
    %v5629 = vpop.f32.mrb[0].mxu0
    %v5630 = vpop.f32.mrb[0].mxu0
    %v5631 = vadd.f32 %v5534, %v5630
    %v5632 = vpop.f32.mrb[0].mxu0
    %5633 = vmatprep.mubr.bf16.mxu0 %v4770
    %5634 = vmatmul.mubr.bf16.gmra.mrb[0].mxu0 %v4769
    %v5635 = vpop.f32.mrb[0].mxu0
    %v5636 = vadd.f32 %v5539, %v5635
    %v5637 = vpop.f32.mrb[0].mxu0
    %v5638 = vpop.f32.mrb[0].mxu0
    %v5639 = vadd.f32 %v5542, %v5638
    %v5640 = vpop.f32.mrb[0].mxu0
    %5641 = vmatprep.mubr.bf16.mxu0 %v4779
    %5642 = vmatmul.mubr.bf16.gmra.mrb[0].mxu0 %v4778
    %v5643 = vpop.f32.mrb[0].mxu0
    %v5644 = vadd.f32 %v5547, %v5643
    %v5645 = vpop.f32.mrb[0].mxu0
    %v5646 = vpop.f32.mrb[0].mxu0
    %v5647 = vadd.f32 %v5550, %v5646
    %v5648 = vpop.f32.mrb[0].mxu0
    %5649 = vdwg.mxu0
    %5650 = vmatprep.subr.bf16.mxu0 0
    %5651 = vmatpush1.bf16.msra.mxu0 %v5263
    %5652 = vmatprep.subr.bf16.mxu0 0
    %5653 = vmatpush1.bf16.msra.mxu0 %v5264
    %5654 = vmatprep.subr.bf16.mxu0 0
    %5655 = vmatpush1.bf16.msra.mxu0 %v5265
    %5656 = vmatprep.subr.bf16.mxu0 0
    %5657 = vmatpush1.bf16.msra.mxu0 %v5266
    %5658 = vmatprep.subr.bf16.mxu0 0
    %5659 = vmatpush1.bf16.msra.mxu0 %v5267
    %5660 = vmatprep.subr.bf16.mxu0 0
    %5661 = vmatpush1.bf16.msra.mxu0 %v5268
    %5662 = vmatprep.subr.bf16.mxu0 0
    %5663 = vmatpush1.bf16.msra.mxu0 %v5269
    %5664 = vmatprep.subr.bf16.mxu0 0
    %5665 = vmatpush1.bf16.msra.mxu0 %v5270
    %5666 = vmatprep.subr.bf16.mxu0 0
    %5667 = vmatpush1.bf16.msra.mxu0 %v5271
    %5668 = vmatprep.subr.bf16.mxu0 0
    %5669 = vmatpush1.bf16.msra.mxu0 %v5272
    %5670 = vmatprep.subr.bf16.mxu0 0
    %5671 = vmatpush1.bf16.msra.mxu0 %v5273
    %5672 = vmatprep.subr.bf16.mxu0 0
    %5673 = vmatpush1.bf16.msra.mxu0 %v5274
    %5674 = vmatprep.subr.bf16.mxu0 0
    %5675 = vmatpush1.bf16.msra.mxu0 %v5275
    %5676 = vmatprep.subr.bf16.mxu0 0
    %5677 = vmatpush1.bf16.msra.mxu0 %v5276
    %5678 = vmatprep.subr.bf16.mxu0 0
    %5679 = vmatpush1.bf16.msra.mxu0 %v5277
    %5680 = vmatprep.subr.bf16.mxu0 0
    %5681 = vmatpush1.bf16.msra.mxu0 %v5278
    %5682 = vmatprep.mubr.bf16.mxu0 %v4718
    %5683 = vmatmul.mubr.bf16.gmra.mrb[0].mxu0 %v4717
    %v5684 = vpop.f32.mrb[0].mxu0
    %v5685 = vadd.f32 %v5588, %v5684
    %v5686 = vpop.f32.mrb[0].mxu0
    %v5687 = vpop.f32.mrb[0].mxu0
    %v5688 = vadd.f32 %v5591, %v5687
    %v5689 = vpop.f32.mrb[0].mxu0
    %5690 = vmatprep.mubr.bf16.mxu0 %v4727
    %5691 = vmatmul.mubr.bf16.gmra.mrb[0].mxu0 %v4726
    %v5692 = vpop.f32.mrb[0].mxu0
    %v5693 = vadd.f32 %v5596, %v5692
    %v5694 = vpop.f32.mrb[0].mxu0
    %v5695 = vpop.f32.mrb[0].mxu0
    %v5696 = vadd.f32 %v5599, %v5695
    %v5697 = vpop.f32.mrb[0].mxu0
    %5698 = vmatprep.mubr.bf16.mxu0 %v4736
    %5699 = vmatmul.mubr.bf16.gmra.mrb[0].mxu0 %v4735
    %v5700 = vpop.f32.mrb[0].mxu0
    %v5701 = vadd.f32 %v5604, %v5700
    %v5702 = vpop.f32.mrb[0].mxu0
    %v5703 = vpop.f32.mrb[0].mxu0
    %v5704 = vadd.f32 %v5607, %v5703
    %v5705 = vpop.f32.mrb[0].mxu0
    %5706 = vmatprep.mubr.bf16.mxu0 %v4745
    %5707 = vmatmul.mubr.bf16.gmra.mrb[0].mxu0 %v4744
    %v5708 = vpop.f32.mrb[0].mxu0
    %v5709 = vadd.f32 %v5612, %v5708
    %v5710 = vpop.f32.mrb[0].mxu0
    %v5711 = vpop.f32.mrb[0].mxu0
    %v5712 = vadd.f32 %v5615, %v5711
    %v5713 = vpop.f32.mrb[0].mxu0
    %5714 = vmatprep.mubr.bf16.mxu0 %v4754
    %5715 = vmatmul.mubr.bf16.gmra.mrb[0].mxu0 %v4753
    %v5716 = vpop.f32.mrb[0].mxu0
    %v5717 = vadd.f32 %v5620, %v5716
    %v5718 = vpop.f32.mrb[0].mxu0
    %v5719 = vpop.f32.mrb[0].mxu0
    %v5720 = vadd.f32 %v5623, %v5719
    %v5721 = vpop.f32.mrb[0].mxu0
    %5722 = vmatprep.mubr.bf16.mxu0 %v4763
    %5723 = vmatmul.mubr.bf16.gmra.mrb[0].mxu0 %v4762
    %v5724 = vpop.f32.mrb[0].mxu0
    %v5725 = vadd.f32 %v5628, %v5724
    %v5726 = vpop.f32.mrb[0].mxu0
    %v5727 = vpop.f32.mrb[0].mxu0
    %v5728 = vadd.f32 %v5631, %v5727
    %v5729 = vpop.f32.mrb[0].mxu0
    %5730 = vmatprep.mubr.bf16.mxu0 %v4772
    %5731 = vmatmul.mubr.bf16.gmra.mrb[0].mxu0 %v4771
    %v5732 = vpop.f32.mrb[0].mxu0
    %v5733 = vadd.f32 %v5636, %v5732
    %v5734 = vpop.f32.mrb[0].mxu0
    %v5735 = vpop.f32.mrb[0].mxu0
    %v5736 = vadd.f32 %v5639, %v5735
    %v5737 = vpop.f32.mrb[0].mxu0
    %5738 = vmatprep.mubr.bf16.mxu0 %v4781
    %5739 = vmatmul.mubr.bf16.gmra.mrb[0].mxu0 %v4780
    %v5740 = vpop.f32.mrb[0].mxu0
    %v5741 = vadd.f32 %v5644, %v5740
    %v5742 = vpop.f32.mrb[0].mxu0
    %v5743 = vpop.f32.mrb[0].mxu0
    %v5744 = vadd.f32 %v5647, %v5743
    %v5745 = vpop.f32.mrb[0].mxu0
    %5746 = vdwg.mxu0
    %5747 = vmatprep.subr.bf16.mxu0 0
    %5748 = vmatpush1.bf16.msra.mxu0 %v5279
    %5749 = vmatprep.subr.bf16.mxu0 0
    %5750 = vmatpush1.bf16.msra.mxu0 %v5280
    %5751 = vmatprep.subr.bf16.mxu0 0
    %5752 = vmatpush1.bf16.msra.mxu0 %v5281
    %5753 = vmatprep.subr.bf16.mxu0 0
    %5754 = vmatpush1.bf16.msra.mxu0 %v5282
    %5755 = vmatprep.subr.bf16.mxu0 0
    %5756 = vmatpush1.bf16.msra.mxu0 %v5283
    %5757 = vmatprep.subr.bf16.mxu0 0
    %5758 = vmatpush1.bf16.msra.mxu0 %v5284
    %5759 = vmatprep.subr.bf16.mxu0 0
    %5760 = vmatpush1.bf16.msra.mxu0 %v5285
    %5761 = vmatprep.subr.bf16.mxu0 0
    %5762 = vmatpush1.bf16.msra.mxu0 %v5286
    %5763 = vmatprep.subr.bf16.mxu0 0
    %5764 = vmatpush1.bf16.msra.mxu0 0
    %5765 = vmatprep.subr.bf16.mxu0 0
    %5766 = vmatpush1.bf16.msra.mxu0 0
    %5767 = vmatprep.subr.bf16.mxu0 0
    %5768 = vmatpush1.bf16.msra.mxu0 0
    %5769 = vmatprep.subr.bf16.mxu0 0
    %5770 = vmatpush1.bf16.msra.mxu0 0
    %5771 = vmatprep.subr.bf16.mxu0 0
    %5772 = vmatpush1.bf16.msra.mxu0 0
    %5773 = vmatprep.subr.bf16.mxu0 0
    %5774 = vmatpush1.bf16.msra.mxu0 0
    %5775 = vmatprep.subr.bf16.mxu0 0
    %5776 = vmatpush1.bf16.msra.mxu0 0
    %5777 = vmatprep.subr.bf16.mxu0 0
    %5778 = vmatpush1.bf16.msra.mxu0 0
    %5779 = vmatprep.mubr.bf16.mxu0 0
    %5780 = vmatmul.mubr.bf16.gmra.mrb[0].mxu0 %v4719
    %v5781 = vpop.f32.mrb[0].mxu0
    %v5782 = vadd.f32 %v5685, %v5781
    %v5783 = vpop.f32.mrb[0].mxu0
    %v5784 = vpop.f32.mrb[0].mxu0
    %v5785 = vadd.f32 %v5688, %v5784
    %v5786 = vpop.f32.mrb[0].mxu0
    %5787 = vmatprep.mubr.bf16.mxu0 0
    %5788 = vmatmul.mubr.bf16.gmra.mrb[0].mxu0 %v4728
    %v5789 = vpop.f32.mrb[0].mxu0
    %v5790 = vadd.f32 %v5693, %v5789
    %v5791 = vpop.f32.mrb[0].mxu0
    %v5792 = vpop.f32.mrb[0].mxu0
    %v5793 = vadd.f32 %v5696, %v5792
    %v5794 = vpop.f32.mrb[0].mxu0
    %5795 = vmatprep.mubr.bf16.mxu0 0
    %5796 = vmatmul.mubr.bf16.gmra.mrb[0].mxu0 %v4737
    %v5797 = vpop.f32.mrb[0].mxu0
    %v5798 = vadd.f32 %v5701, %v5797
    %v5799 = vpop.f32.mrb[0].mxu0
    %v5800 = vpop.f32.mrb[0].mxu0
    %v5801 = vadd.f32 %v5704, %v5800
    %v5802 = vpop.f32.mrb[0].mxu0
    %5803 = vmatprep.mubr.bf16.mxu0 0
    %5804 = vmatmul.mubr.bf16.gmra.mrb[0].mxu0 %v4746
    %v5805 = vpop.f32.mrb[0].mxu0
    %v5806 = vadd.f32 %v5709, %v5805
    %v5807 = vpop.f32.mrb[0].mxu0
    %v5808 = vpop.f32.mrb[0].mxu0
    %v5809 = vadd.f32 %v5712, %v5808
    %v5810 = vpop.f32.mrb[0].mxu0
    %5811 = vmatprep.mubr.bf16.mxu0 0
    %5812 = vmatmul.mubr.bf16.gmra.mrb[0].mxu0 %v4755
    %v5813 = vpop.f32.mrb[0].mxu0
    %v5814 = vadd.f32 %v5717, %v5813
    %v5815 = vpop.f32.mrb[0].mxu0
    %v5816 = vpop.f32.mrb[0].mxu0
    %v5817 = vadd.f32 %v5720, %v5816
    %v5818 = vpop.f32.mrb[0].mxu0
    %5819 = vmatprep.mubr.bf16.mxu0 0
    %5820 = vmatmul.mubr.bf16.gmra.mrb[0].mxu0 %v4764
    %v5821 = vpop.f32.mrb[0].mxu0
    %v5822 = vadd.f32 %v5725, %v5821
    %v5823 = vpop.f32.mrb[0].mxu0
    %v5824 = vpop.f32.mrb[0].mxu0
    %v5825 = vadd.f32 %v5728, %v5824
    %v5826 = vpop.f32.mrb[0].mxu0
    %5827 = vmatprep.mubr.bf16.mxu0 0
    %5828 = vmatmul.mubr.bf16.gmra.mrb[0].mxu0 %v4773
    %v5829 = vpop.f32.mrb[0].mxu0
    %v5830 = vadd.f32 %v5733, %v5829
    %v5831 = vpop.f32.mrb[0].mxu0
    %v5832 = vpop.f32.mrb[0].mxu0
    %v5833 = vadd.f32 %v5736, %v5832
    %v5834 = vpop.f32.mrb[0].mxu0
    %5835 = vmatprep.mubr.bf16.mxu0 0
    %5836 = vmatmul.mubr.bf16.gmra.mrb[0].mxu0 %v4782
    %v5837 = vpop.f32.mrb[0].mxu0
    %v5838 = vadd.f32 %v5741, %v5837
    %v5839 = vpop.f32.mrb[0].mxu0
    %v5840 = vpop.f32.mrb[0].mxu0
    %v5841 = vadd.f32 %v5744, %v5840
    %v5842 = vpop.f32.mrb[0].mxu0
    %5843 = vdwg.mxu0
    %v5844 = vadd.f32 %v5782, %v5785
    %v5845 = vadd.f32 %v5844, %v5790
    %v5846 = vadd.f32 %v5845, %v5793
    %v5847 = vadd.f32 %v5846, %v5798
    %v5848 = vadd.f32 %v5847, %v5801
    %v5849 = vadd.f32 %v5848, %v5806
    %v5850 = vadd.f32 %v5849, %v5809
    %v5851 = vadd.f32 %v5850, %v5814
    %v5852 = vadd.f32 %v5851, %v5817
    %v5853 = vadd.f32 %v5852, %v5822
    %v5854 = vadd.f32 %v5853, %v5825
    %v5855 = vadd.f32 %v5854, %v5830
    %v5856 = vadd.f32 %v5855, %v5833
    %v5857 = vadd.f32 %v5856, %v5838
    %v5858 = vadd.f32 %v5857, %v5841
    %v5859 = vrot.slane %v5858, 4
    %v5860 = vadd.f32 %v5858, %v5859
    %v5861 = vrot.slane %v5860, 2
    %v5862 = vadd.f32 %v5860, %v5861
    %v5863 = vrot.slane %v5862, 1
    %v5864 = vadd.f32 %v5862, %v5863
    %v5865 = vmul.f32 %v5864, 0.0078125
    %v5866 = vmul.f32 %v5782, %v5782
    %v5867 = vmul.f32 %v5785, %v5785
    %v5868 = vmul.f32 %v5790, %v5790
    %v5869 = vmul.f32 %v5793, %v5793
    %v5870 = vmul.f32 %v5798, %v5798
    %v5871 = vmul.f32 %v5801, %v5801
    %v5872 = vmul.f32 %v5806, %v5806
    %v5873 = vmul.f32 %v5809, %v5809
    %v5874 = vmul.f32 %v5814, %v5814
    %v5875 = vmul.f32 %v5817, %v5817
    %v5876 = vmul.f32 %v5822, %v5822
    %v5877 = vmul.f32 %v5825, %v5825
    %v5878 = vmul.f32 %v5830, %v5830
    %v5879 = vmul.f32 %v5833, %v5833
    %v5880 = vmul.f32 %v5838, %v5838
    %v5881 = vmul.f32 %v5841, %v5841
    %v5882 = vadd.f32 %v5866, %v5867
    %v5883 = vadd.f32 %v5882, %v5868
    %v5884 = vadd.f32 %v5883, %v5869
    %v5885 = vadd.f32 %v5884, %v5870
    %v5886 = vadd.f32 %v5885, %v5871
    %v5887 = vadd.f32 %v5886, %v5872
    %v5888 = vadd.f32 %v5887, %v5873
    %v5889 = vadd.f32 %v5888, %v5874
    %v5890 = vadd.f32 %v5889, %v5875
    %v5891 = vadd.f32 %v5890, %v5876
    %v5892 = vadd.f32 %v5891, %v5877
    %v5893 = vadd.f32 %v5892, %v5878
    %v5894 = vadd.f32 %v5893, %v5879
    %v5895 = vadd.f32 %v5894, %v5880
    %v5896 = vadd.f32 %v5895, %v5881
    %v5897 = vrot.slane %v5896, 4
    %v5898 = vadd.f32 %v5896, %v5897
    %v5899 = vrot.slane %v5898, 2
    %v5900 = vadd.f32 %v5898, %v5899
    %v5901 = vrot.slane %v5900, 1
    %v5902 = vadd.f32 %v5900, %v5901
    %v5903 = vmul.f32 %v5902, 0.0078125
    %v5904 = vmul.f32 %v5865, %v5865
    %v5905 = vsub.f32 %v5903, %v5904
    %v5906 = vmax.f32 %v5905, 0.0
    %v5907 = vld [vmem:[%s6] sm:$0x1]
    %v5908 = vadd.f32 %v5906, 1e-05
    %v5909 = vrsqrt.pop %v5908
    %v5910 = vmul.f32 %v5907, %v5909
    %v5911 = vld [vmem:[%s7] sm:$0x1]
    %v5912 = vmul.f32 %v5865, %v5910
    %v5913 = vsub.f32 %v5911, %v5912
    %v5915 = vlaneseq
    %v5916 = vshrl.u32 %v5915, 7
    %v5917 = vsub.s32 0, %v5916
    %v5918 = vrot.slane %v5910, %v5917
    %v5920 = vmul.f32 %v5782, %v5918
    %v5921 = vmul.f32 %v5785, %v5918
    %v5922 = vmul.f32 %v5790, %v5918
    %v5923 = vmul.f32 %v5793, %v5918
    %v5924 = vmul.f32 %v5798, %v5918
    %v5925 = vmul.f32 %v5801, %v5918
    %v5926 = vmul.f32 %v5806, %v5918
    %v5927 = vmul.f32 %v5809, %v5918
    %v5928 = vmul.f32 %v5814, %v5918
    %v5929 = vmul.f32 %v5817, %v5918
    %v5930 = vmul.f32 %v5822, %v5918
    %v5931 = vmul.f32 %v5825, %v5918
    %v5932 = vmul.f32 %v5830, %v5918
    %v5933 = vmul.f32 %v5833, %v5918
    %v5934 = vmul.f32 %v5838, %v5918
    %v5935 = vmul.f32 %v5841, %v5918
    %v5937 = vlaneseq
    %v5938 = vshrl.u32 %v5937, 7
    %v5939 = vsub.s32 0, %v5938
    %v5940 = vrot.slane %v5913, %v5939
    %v5942 = vadd.f32 %v5920, %v5940
    %v5943 = vadd.f32 %v5921, %v5940
    %v5944 = vadd.f32 %v5922, %v5940
    %v5945 = vadd.f32 %v5923, %v5940
    %v5946 = vadd.f32 %v5924, %v5940
    %v5947 = vadd.f32 %v5925, %v5940
    %v5948 = vadd.f32 %v5926, %v5940
    %v5949 = vadd.f32 %v5927, %v5940
    %v5950 = vadd.f32 %v5928, %v5940
    %v5951 = vadd.f32 %v5929, %v5940
    %v5952 = vadd.f32 %v5930, %v5940
    %v5953 = vadd.f32 %v5931, %v5940
    %v5954 = vadd.f32 %v5932, %v5940
    %v5955 = vadd.f32 %v5933, %v5940
    %v5956 = vadd.f32 %v5934, %v5940
    %v5957 = vadd.f32 %v5935, %v5940
    %v5958 = vld [vmem:[%s568] sm:$0xf]
    %v5959 = vld [vmem:[%s568 + $0x8] sm:$0xf]
    %v5960 = vld [vmem:[%s568 + $0x10] sm:$0xf]
    %v5961 = vld [vmem:[%s568 + $0x18] sm:$0xf]
    %v5962 = vld [vmem:[%s568 + $0x20] sm:$0xf]
    %v5963 = vld [vmem:[%s568 + $0x28] sm:$0xf]
    %v5964 = vld [vmem:[%s568 + $0x30] sm:$0xf]
    %v5965 = vld [vmem:[%s568 + $0x38] sm:$0xf]
    %v5966 = vld [vmem:[%s568 + $0x48] sm:$0xf]
    %v5967 = vld [vmem:[%s568 + $0x50] sm:$0xf]
    %v5968 = vld [vmem:[%s568 + $0x58] sm:$0xf]
    %v5969 = vld [vmem:[%s568 + $0x60] sm:$0xf]
    %v5970 = vld [vmem:[%s568 + $0x68] sm:$0xf]
    %v5971 = vld [vmem:[%s568 + $0x70] sm:$0xf]
    %v5972 = vld [vmem:[%s568 + $0x78] sm:$0xf]
    %v5973 = vld [vmem:[%s568 + $0x80] sm:$0xf]
    %v5974 = vld [vmem:[%s3] sm:$0xf]
    %v5975 = vld [vmem:[%s3 + $0x4] sm:$0xf]
    %v5976 = vld [vmem:[%s3 + $0x8] sm:$0xf]
    %v5977 = vld [vmem:[%s3 + $0xc] sm:$0xf]
    %v5978 = vld [vmem:[%s3 + $0x10] sm:$0xf]
    %v5979 = vld [vmem:[%s3 + $0x14] sm:$0xf]
    %v5980 = vld [vmem:[%s3 + $0x18] sm:$0xf]
    %v5981 = vld [vmem:[%s3 + $0x1c] sm:$0xf]
    %v5982 = vld [vmem:[%s3 + $0x20] sm:$0xf]
    %v5983 = vld [vmem:[%s3 + $0x24] sm:$0xf]
    %v5984 = vld [vmem:[%s3 + $0x28] sm:$0xf]
    %v5985 = vld [vmem:[%s3 + $0x2c] sm:$0xf]
    %v5986 = vld [vmem:[%s3 + $0x30] sm:$0xf]
    %v5987 = vld [vmem:[%s3 + $0x34] sm:$0xf]
    %v5988 = vld [vmem:[%s3 + $0x38] sm:$0xf]
    %v5989 = vld [vmem:[%s3 + $0x3c] sm:$0xf]
    %v6006 = vunpack.c.l.b16 %v5958
    %v6007 = vunpack.c.l.b16 %v5959
    %v6008 = vunpack.c.l.b16 %v5960
    %v6009 = vunpack.c.l.b16 %v5961
    %v6010 = vunpack.c.l.b16 %v5962
    %v6011 = vunpack.c.l.b16 %v5963
    %v6012 = vunpack.c.l.b16 %v5964
    %v6013 = vunpack.c.l.b16 %v5965
    %v6014 = vunpack.c.l.b16 %v5966
    %v6015 = vunpack.c.l.b16 %v5967
    %v6016 = vunpack.c.l.b16 %v5968
    %v6017 = vunpack.c.l.b16 %v5969
    %v6018 = vunpack.c.l.b16 %v5970
    %v6019 = vunpack.c.l.b16 %v5971
    %v6020 = vunpack.c.l.b16 %v5972
    %v6021 = vunpack.c.l.b16 %v5973
    %v6022 = vpack.c.b16 %v6007, %v6006
    %v6023 = vpack.c.b16 %v6009, %v6008
    %v6024 = vpack.c.b16 %v6011, %v6010
    %v6025 = vpack.c.b16 %v6013, %v6012
    %v6026 = vpack.c.b16 %v6015, %v6014
    %v6027 = vpack.c.b16 %v6017, %v6016
    %v6028 = vpack.c.b16 %v6019, %v6018
    %v6029 = vpack.c.b16 %v6021, %v6020
    %v6054 = vunpack.c.l.b16 %v5974
    %v6055 = vunpack.c.l.b16 %v5975
    %v6056 = vunpack.c.l.b16 %v5976
    %v6057 = vunpack.c.l.b16 %v5977
    %v6058 = vunpack.c.l.b16 %v5978
    %v6059 = vunpack.c.l.b16 %v5979
    %v6060 = vunpack.c.l.b16 %v5980
    %v6061 = vunpack.c.l.b16 %v5981
    %v6062 = vunpack.c.l.b16 %v5982
    %v6063 = vunpack.c.l.b16 %v5983
    %v6064 = vunpack.c.l.b16 %v5984
    %v6065 = vunpack.c.l.b16 %v5985
    %v6066 = vunpack.c.l.b16 %v5986
    %v6067 = vunpack.c.l.b16 %v5987
    %v6068 = vunpack.c.l.b16 %v5988
    %v6069 = vunpack.c.l.b16 %v5989
    %v6070 = vpack.c.b16 %v6055, %v6054
    %v6071 = vpack.c.b16 %v6057, %v6056
    %v6072 = vpack.c.b16 %v6059, %v6058
    %v6073 = vpack.c.b16 %v6061, %v6060
    %v6074 = vpack.c.b16 %v6063, %v6062
    %v6075 = vpack.c.b16 %v6065, %v6064
    %v6076 = vpack.c.b16 %v6067, %v6066
    %v6077 = vpack.c.b16 %v6069, %v6068
    %6086 = vmatprep.subr.bf16.mxu0 0
    %6087 = vmatpush1.bf16.msra.mxu0 %v6070
    %6088 = vmatprep.subr.bf16.mxu0 0
    %6089 = vmatpush1.bf16.msra.mxu0 %v6071
    %6090 = vmatprep.subr.bf16.mxu0 0
    %6091 = vmatpush1.bf16.msra.mxu0 %v6072
    %6092 = vmatprep.subr.bf16.mxu0 0
    %6093 = vmatpush1.bf16.msra.mxu0 %v6073
    %6094 = vmatprep.subr.bf16.mxu0 0
    %6095 = vmatpush1.bf16.msra.mxu0 %v6074
    %6096 = vmatprep.subr.bf16.mxu0 0
    %6097 = vmatpush1.bf16.msra.mxu0 %v6075
    %6098 = vmatprep.subr.bf16.mxu0 0
    %6099 = vmatpush1.bf16.msra.mxu0 %v6076
    %6100 = vmatprep.subr.bf16.mxu0 0
    %6101 = vmatpush1.bf16.msra.mxu0 %v6077
    %6102 = vmatprep.subr.bf16.mxu0 0
    %6103 = vmatpush1.bf16.msra.mxu0 0
    %6104 = vmatprep.subr.bf16.mxu0 0
    %6105 = vmatpush1.bf16.msra.mxu0 0
    %6106 = vmatprep.subr.bf16.mxu0 0
    %6107 = vmatpush1.bf16.msra.mxu0 0
    %6108 = vmatprep.subr.bf16.mxu0 0
    %6109 = vmatpush1.bf16.msra.mxu0 0
    %6110 = vmatprep.subr.bf16.mxu0 0
    %6111 = vmatpush1.bf16.msra.mxu0 0
    %6112 = vmatprep.subr.bf16.mxu0 0
    %6113 = vmatpush1.bf16.msra.mxu0 0
    %6114 = vmatprep.subr.bf16.mxu0 0
    %6115 = vmatpush1.bf16.msra.mxu0 0
    %6116 = vmatprep.subr.bf16.mxu0 0
    %6117 = vmatpush1.bf16.msra.mxu0 0
    %6118 = vmatprep.mubr.bf16.mxu0 0
    %6119 = vmatmul.mubr.bf16.gmra.mrb[0].mxu0 %v6022
    %v6120 = vpop.f32.mrb[0].mxu0
    %v6121 = vadd.f32 0.0, %v6120
    %v6122 = vpop.f32.mrb[0].mxu0
    %v6123 = vpop.f32.mrb[0].mxu0
    %v6124 = vadd.f32 0.0, %v6123
    %v6125 = vpop.f32.mrb[0].mxu0
    %6126 = vmatprep.mubr.bf16.mxu0 0
    %6127 = vmatmul.mubr.bf16.gmra.mrb[0].mxu0 %v6023
    %v6128 = vpop.f32.mrb[0].mxu0
    %v6129 = vadd.f32 0.0, %v6128
    %v6130 = vpop.f32.mrb[0].mxu0
    %v6131 = vpop.f32.mrb[0].mxu0
    %v6132 = vadd.f32 0.0, %v6131
    %v6133 = vpop.f32.mrb[0].mxu0
    %6134 = vmatprep.mubr.bf16.mxu0 0
    %6135 = vmatmul.mubr.bf16.gmra.mrb[0].mxu0 %v6024
    %v6136 = vpop.f32.mrb[0].mxu0
    %v6137 = vadd.f32 0.0, %v6136
    %v6138 = vpop.f32.mrb[0].mxu0
    %v6139 = vpop.f32.mrb[0].mxu0
    %v6140 = vadd.f32 0.0, %v6139
    %v6141 = vpop.f32.mrb[0].mxu0
    %6142 = vmatprep.mubr.bf16.mxu0 0
    %6143 = vmatmul.mubr.bf16.gmra.mrb[0].mxu0 %v6025
    %v6144 = vpop.f32.mrb[0].mxu0
    %v6145 = vadd.f32 0.0, %v6144
    %v6146 = vpop.f32.mrb[0].mxu0
    %v6147 = vpop.f32.mrb[0].mxu0
    %v6148 = vadd.f32 0.0, %v6147
    %v6149 = vpop.f32.mrb[0].mxu0
    %6150 = vmatprep.mubr.bf16.mxu0 0
    %6151 = vmatmul.mubr.bf16.gmra.mrb[0].mxu0 %v6026
    %v6152 = vpop.f32.mrb[0].mxu0
    %v6153 = vadd.f32 0.0, %v6152
    %v6154 = vpop.f32.mrb[0].mxu0
    %v6155 = vpop.f32.mrb[0].mxu0
    %v6156 = vadd.f32 0.0, %v6155
    %v6157 = vpop.f32.mrb[0].mxu0
    %6158 = vmatprep.mubr.bf16.mxu0 0
    %6159 = vmatmul.mubr.bf16.gmra.mrb[0].mxu0 %v6027
    %v6160 = vpop.f32.mrb[0].mxu0
    %v6161 = vadd.f32 0.0, %v6160
    %v6162 = vpop.f32.mrb[0].mxu0
    %v6163 = vpop.f32.mrb[0].mxu0
    %v6164 = vadd.f32 0.0, %v6163
    %v6165 = vpop.f32.mrb[0].mxu0
    %6166 = vmatprep.mubr.bf16.mxu0 0
    %6167 = vmatmul.mubr.bf16.gmra.mrb[0].mxu0 %v6028
    %v6168 = vpop.f32.mrb[0].mxu0
    %v6169 = vadd.f32 0.0, %v6168
    %v6170 = vpop.f32.mrb[0].mxu0
    %v6171 = vpop.f32.mrb[0].mxu0
    %v6172 = vadd.f32 0.0, %v6171
    %v6173 = vpop.f32.mrb[0].mxu0
    %6174 = vmatprep.mubr.bf16.mxu0 0
    %6175 = vmatmul.mubr.bf16.gmra.mrb[0].mxu0 %v6029
    %v6176 = vpop.f32.mrb[0].mxu0
    %v6177 = vadd.f32 0.0, %v6176
    %v6178 = vpop.f32.mrb[0].mxu0
    %v6179 = vpop.f32.mrb[0].mxu0
    %v6180 = vadd.f32 0.0, %v6179
    %v6181 = vpop.f32.mrb[0].mxu0
    %6182 = vdwg.mxu0
    %v6183 = vadd.f32 %v6121, %v6124
    %v6184 = vadd.f32 %v6183, %v6129
    %v6185 = vadd.f32 %v6184, %v6132
    %v6186 = vadd.f32 %v6185, %v6137
    %v6187 = vadd.f32 %v6186, %v6140
    %v6188 = vadd.f32 %v6187, %v6145
    %v6189 = vadd.f32 %v6188, %v6148
    %v6190 = vadd.f32 %v6189, %v6153
    %v6191 = vadd.f32 %v6190, %v6156
    %v6192 = vadd.f32 %v6191, %v6161
    %v6193 = vadd.f32 %v6192, %v6164
    %v6194 = vadd.f32 %v6193, %v6169
    %v6195 = vadd.f32 %v6194, %v6172
    %v6196 = vadd.f32 %v6195, %v6177
    %v6197 = vadd.f32 %v6196, %v6180
    %v6198 = vrot.slane %v6197, 4
    %v6199 = vadd.f32 %v6197, %v6198
    %v6200 = vrot.slane %v6199, 2
    %v6201 = vadd.f32 %v6199, %v6200
    %v6202 = vrot.slane %v6201, 1
    %v6203 = vadd.f32 %v6201, %v6202
    %v6204 = vmul.f32 %v6203, 0.0078125
    %v6205 = vmul.f32 %v6121, %v6121
    %v6206 = vmul.f32 %v6124, %v6124
    %v6207 = vmul.f32 %v6129, %v6129
    %v6208 = vmul.f32 %v6132, %v6132
    %v6209 = vmul.f32 %v6137, %v6137
    %v6210 = vmul.f32 %v6140, %v6140
    %v6211 = vmul.f32 %v6145, %v6145
    %v6212 = vmul.f32 %v6148, %v6148
    %v6213 = vmul.f32 %v6153, %v6153
    %v6214 = vmul.f32 %v6156, %v6156
    %v6215 = vmul.f32 %v6161, %v6161
    %v6216 = vmul.f32 %v6164, %v6164
    %v6217 = vmul.f32 %v6169, %v6169
    %v6218 = vmul.f32 %v6172, %v6172
    %v6219 = vmul.f32 %v6177, %v6177
    %v6220 = vmul.f32 %v6180, %v6180
    %v6221 = vadd.f32 %v6205, %v6206
    %v6222 = vadd.f32 %v6221, %v6207
    %v6223 = vadd.f32 %v6222, %v6208
    %v6224 = vadd.f32 %v6223, %v6209
    %v6225 = vadd.f32 %v6224, %v6210
    %v6226 = vadd.f32 %v6225, %v6211
    %v6227 = vadd.f32 %v6226, %v6212
    %v6228 = vadd.f32 %v6227, %v6213
    %v6229 = vadd.f32 %v6228, %v6214
    %v6230 = vadd.f32 %v6229, %v6215
    %v6231 = vadd.f32 %v6230, %v6216
    %v6232 = vadd.f32 %v6231, %v6217
    %v6233 = vadd.f32 %v6232, %v6218
    %v6234 = vadd.f32 %v6233, %v6219
    %v6235 = vadd.f32 %v6234, %v6220
    %v6236 = vrot.slane %v6235, 4
    %v6237 = vadd.f32 %v6235, %v6236
    %v6238 = vrot.slane %v6237, 2
    %v6239 = vadd.f32 %v6237, %v6238
    %v6240 = vrot.slane %v6239, 1
    %v6241 = vadd.f32 %v6239, %v6240
    %v6242 = vmul.f32 %v6241, 0.0078125
    %v6243 = vmul.f32 %v6204, %v6204
    %v6244 = vsub.f32 %v6242, %v6243
    %v6245 = vmax.f32 %v6244, 0.0
    %v6246 = vld [vmem:[%s8] sm:$0x1]
    %v6247 = vadd.f32 %v6245, 1e-05
    %v6248 = vrsqrt.pop %v6247
    %v6249 = vmul.f32 %v6246, %v6248
    %v6250 = vld [vmem:[%s9] sm:$0x1]
    %v6251 = vmul.f32 %v6204, %v6249
    %v6252 = vsub.f32 %v6250, %v6251
    %v6254 = vlaneseq
    %v6255 = vshrl.u32 %v6254, 7
    %v6256 = vsub.s32 0, %v6255
    %v6257 = vrot.slane %v6249, %v6256
    %v6259 = vmul.f32 %v6121, %v6257
    %v6260 = vmul.f32 %v6124, %v6257
    %v6261 = vmul.f32 %v6129, %v6257
    %v6262 = vmul.f32 %v6132, %v6257
    %v6263 = vmul.f32 %v6137, %v6257
    %v6264 = vmul.f32 %v6140, %v6257
    %v6265 = vmul.f32 %v6145, %v6257
    %v6266 = vmul.f32 %v6148, %v6257
    %v6267 = vmul.f32 %v6153, %v6257
    %v6268 = vmul.f32 %v6156, %v6257
    %v6269 = vmul.f32 %v6161, %v6257
    %v6270 = vmul.f32 %v6164, %v6257
    %v6271 = vmul.f32 %v6169, %v6257
    %v6272 = vmul.f32 %v6172, %v6257
    %v6273 = vmul.f32 %v6177, %v6257
    %v6274 = vmul.f32 %v6180, %v6257
    %v6276 = vlaneseq
    %v6277 = vshrl.u32 %v6276, 7
    %v6278 = vsub.s32 0, %v6277
    %v6279 = vrot.slane %v6252, %v6278
    %v6281 = vadd.f32 %v6259, %v6279
    %v6282 = vadd.f32 %v6260, %v6279
    %v6283 = vadd.f32 %v6261, %v6279
    %v6284 = vadd.f32 %v6262, %v6279
    %v6285 = vadd.f32 %v6263, %v6279
    %v6286 = vadd.f32 %v6264, %v6279
    %v6287 = vadd.f32 %v6265, %v6279
    %v6288 = vadd.f32 %v6266, %v6279
    %v6289 = vadd.f32 %v6267, %v6279
    %v6290 = vadd.f32 %v6268, %v6279
    %v6291 = vadd.f32 %v6269, %v6279
    %v6292 = vadd.f32 %v6270, %v6279
    %v6293 = vadd.f32 %v6271, %v6279
    %v6294 = vadd.f32 %v6272, %v6279
    %v6295 = vadd.f32 %v6273, %v6279
    %v6296 = vadd.f32 %v6274, %v6279
    %v6297 = vadd.f32 %v6281, %v5942
    %v6298 = vadd.f32 %v6282, %v5943
    %v6299 = vadd.f32 %v6283, %v5944
    %v6300 = vadd.f32 %v6284, %v5945
    %v6301 = vadd.f32 %v6285, %v5946
    %v6302 = vadd.f32 %v6286, %v5947
    %v6303 = vadd.f32 %v6287, %v5948
    %v6304 = vadd.f32 %v6288, %v5949
    %v6305 = vadd.f32 %v6289, %v5950
    %v6306 = vadd.f32 %v6290, %v5951
    %v6307 = vadd.f32 %v6291, %v5952
    %v6308 = vadd.f32 %v6292, %v5953
    %v6309 = vadd.f32 %v6293, %v5954
    %v6310 = vadd.f32 %v6294, %v5955
    %v6311 = vadd.f32 %v6295, %v5956
    %v6312 = vadd.f32 %v6296, %v5957
    %v6313 = vmax.f32 %v6297, 0.0
    %v6314 = vmax.f32 %v6298, 0.0
    %v6315 = vmax.f32 %v6299, 0.0
    %v6316 = vmax.f32 %v6300, 0.0
    %v6317 = vmax.f32 %v6301, 0.0
    %v6318 = vmax.f32 %v6302, 0.0
    %v6319 = vmax.f32 %v6303, 0.0
    %v6320 = vmax.f32 %v6304, 0.0
    %v6321 = vmax.f32 %v6305, 0.0
    %v6322 = vmax.f32 %v6306, 0.0
    %v6323 = vmax.f32 %v6307, 0.0
    %v6324 = vmax.f32 %v6308, 0.0
    %v6325 = vmax.f32 %v6309, 0.0
    %v6326 = vmax.f32 %v6310, 0.0
    %v6327 = vmax.f32 %v6311, 0.0
    %v6328 = vmax.f32 %v6312, 0.0
    %6329 = vst [vmem:[#allocation8] sm:$0xff] %v6313
    %6330 = vst [vmem:[#allocation8 + $0x8] sm:$0xff] %v6314
    %6331 = vst [vmem:[#allocation8 + $0x10] sm:$0xff] %v6315
    %6332 = vst [vmem:[#allocation8 + $0x18] sm:$0xff] %v6316
    %6333 = vst [vmem:[#allocation8 + $0x20] sm:$0xff] %v6317
    %6334 = vst [vmem:[#allocation8 + $0x28] sm:$0xff] %v6318
    %6335 = vst [vmem:[#allocation8 + $0x30] sm:$0xff] %v6319
    %6336 = vst [vmem:[#allocation8 + $0x38] sm:$0xff] %v6320
    %6337 = vst [vmem:[#allocation8 + $0x40] sm:$0xff] %v6321
    %6338 = vst [vmem:[#allocation8 + $0x48] sm:$0xff] %v6322
    %6339 = vst [vmem:[#allocation8 + $0x50] sm:$0xff] %v6323
    %6340 = vst [vmem:[#allocation8 + $0x58] sm:$0xff] %v6324
    %6341 = vst [vmem:[#allocation8 + $0x60] sm:$0xff] %v6325
    %6342 = vst [vmem:[#allocation8 + $0x68] sm:$0xff] %v6326
    %6343 = vst [vmem:[#allocation8 + $0x70] sm:$0xff] %v6327
    %6344 = vst [vmem:[#allocation8 + $0x78] sm:$0xff] %v6328
    // Predicated region
    $region46: #{tpu_custom_call.1} parent=1 // pred_check
      _
    $region47: #{tpu_custom_call.1} parent=1 // pred_check_branch
      %6346 = sbr.rel (0) target = $region49
    $region48: #{tpu_custom_call.1} parent=1 // pred_region
      %s6348 = ssub.s32 2048, 2048
      %6349 = vsyncadd [#allocation7], %s6348
      %s6350 = sshll.u32 [#allocation8], 4
      %s6351 = int_to_ptr.vmem [resolvable:$true] %s6350
      %6356 = dma.vmem_to_hbm [thread:$0]  %s6351, 2048, %s10, [#allocation7], 128, 128, 8
    $region49: #{tpu_custom_call.1} parent=1 // pred_fallthru
      _
    // Predicated region
    $region50: #{tpu_custom_call.1} parent=1 // pred_check
      _
    $region51: #{tpu_custom_call.1} parent=1 // pred_check_branch
      %6358 = sbr.rel (0) target = $region53
    $region52: #{tpu_custom_call.1} parent=1 // pred_region
      %6359 = dma.done [#allocation7], 2048
    $region53: #{tpu_custom_call.1} parent=1 // pred_fallthru
      _
    %6360 = vsyncpa [#allocation6], 1
    %6361 = vsyncpa [#allocation7], 1

</llo_original>
